<compile_context>
chip_gen: v7x
topology: tpu7x:2x2x1
jax: 0.10.0
libtpu: 0.0.40
codegen_flags: <defaults>
</compile_context>

<pallas_src>
import functools

import jax
import jax.numpy as jnp
from jax import lax
from jax.experimental import pallas as pl
from jax.experimental.pallas import tpu as pltpu

EPS = 1e-5  # nn.BatchNorm2d default


# --------------------------------------------------------------------------
# Fused _DenseLayer kernel (one grid step = one batch element)
# --------------------------------------------------------------------------
def _dense_layer_kernel(x_ref, w1_ref, b1_ref, wb_ref, bb_ref, wc_ref, bc_ref,
                        out_ref, pad_ab, pad_c):
    # x_ref   : (1, H, W, Cin)           input image (f32)
    # w1_ref  : (Cin, 2*inter)           merged branch{1,2}a 1x1 weights (BN folded)
    # b1_ref  : (1, 2*inter)             merged branch{1,2}a biases (f32)
    # wb_ref  : (9*2*inter, 2*gr)        merged branch{1,2}b im2col weights (block-diag)
    # bb_ref  : (1, 2*gr)
    # wc_ref  : (9*gr, gr)               branch2c im2col weights
    # bc_ref  : (1, gr)
    # out_ref : (1, H, W, Cin + 2*gr)    torch.cat([x, branch1, branch2], dim=1)
    # pad_ab  : VMEM (H+2, W+2, 2*inter) zero-padded merged 1x1 output (scratch)
    # pad_c   : VMEM (H+2, W+2, gr)      zero-padded branch2b output (scratch)
    _, H, W, Cin = x_ref.shape
    two_inter = pad_ab.shape[-1]
    gr = pad_c.shape[-1]
    cdt = pad_ab.dtype  # matmul compute dtype (f32 or bf16)

    x2d = x_ref[0].reshape(H * W, Cin)  # f32; reused untouched for the output

    # ---- merged branch1a + branch2a: one 1x1 matmul, + bias, ReLU ----------
    y = jnp.dot(x2d.astype(cdt), w1_ref[...], preferred_element_type=jnp.float32)
    y = jnp.maximum(y + b1_ref[...], 0.0)                    # (H*W, 2*inter) f32

    # ---- in-kernel zero padding (padding=1) --------------------------------
    pad_ab[...] = jnp.zeros_like(pad_ab)
    pad_ab[1:H + 1, 1:W + 1, :] = y.astype(cdt).reshape(H, W, two_inter)

    def im2col(p_ref, c):
        # (H*W, 9*c) patch matrix; tap-major columns matching the weight layout.
        taps = []
        for dy in range(3):
            for dx in range(3):
                taps.append(p_ref[dy:dy + H, dx:dx + W, :].reshape(H * W, c))
        return jnp.concatenate(taps, axis=-1)

    # ---- merged branch1b + branch2b: one im2col matmul (K = 9*2*inter) -----
    yb = jnp.dot(im2col(pad_ab, two_inter), wb_ref[...],
                 preferred_element_type=jnp.float32)
    yb = jnp.maximum(yb + bb_ref[...], 0.0)                  # (H*W, 2*gr) f32
    br1 = yb[:, :gr]                                         # branch1 output
    t2b = yb[:, gr:]                                         # branch2b output

    # ---- branch2c: pad + one im2col matmul (K = 9*gr) ----------------------
    pad_c[...] = jnp.zeros_like(pad_c)
    pad_c[1:H + 1, 1:W + 1, :] = t2b.astype(cdt).reshape(H, W, gr)
    br2 = jnp.dot(im2col(pad_c, gr), wc_ref[...],
                  preferred_element_type=jnp.float32)
    br2 = jnp.maximum(br2 + bc_ref[...], 0.0)                # (H*W, gr) f32

    # ---- torch.cat([x, branch1, branch2], dim=1): single lane-dense store --
    out = jnp.concatenate([x2d, br1, br2], axis=-1)          # (H*W, Cin + 2*gr)
    out_ref[...] = out.reshape(1, H, W, Cin + 2 * gr).astype(out_ref.dtype)


# --------------------------------------------------------------------------
# Trace-time parameter prep: fold BN, merge branches, build im2col weights
# --------------------------------------------------------------------------
def _fold_bn_into_conv(p):
    # Inference BN folded into the conv:  y = conv(x, w*scale) + bias
    scale = p["gamma"] / jnp.sqrt(p["var"] + EPS)
    bias = p["beta"] - p["mean"] * scale
    return p["w"] * scale, bias  # scale broadcasts over the Cout axis


def _prep_params(params, compute_dtype):
    w1a, b1a = _fold_bn_into_conv(params["branch1a"])
    w2a, b2a = _fold_bn_into_conv(params["branch2a"])
    w1b, b1b = _fold_bn_into_conv(params["branch1b"])
    w2b, b2b = _fold_bn_into_conv(params["branch2b"])
    w2c, b2c = _fold_bn_into_conv(params["branch2c"])

    cin = w1a.shape[2]
    inter = w1a.shape[3]
    gr = w1b.shape[3]

    # Merged 1x1 weight: (Cin, 2*inter)
    w_a = jnp.concatenate([w1a.reshape(cin, inter), w2a.reshape(cin, inter)], axis=1)
    b_a = jnp.concatenate([b1a, b2a]).reshape(1, 2 * inter)

    # Merged 3x3 stage-b weight, block-diagonal im2col layout: (9*2*inter, 2*gr)
    w_b = jnp.zeros((9, 2 * inter, 2 * gr), jnp.float32)
    w_b = w_b.at[:, :inter, :gr].set(w1b.reshape(9, inter, gr))
    w_b = w_b.at[:, inter:, gr:].set(w2b.reshape(9, inter, gr))
    w_b = w_b.reshape(9 * 2 * inter, 2 * gr)
    b_b = jnp.concatenate([b1b, b2b]).reshape(1, 2 * gr)

    # branch2c im2col weight: (9*gr, gr)
    w_c = w2c.reshape(9 * gr, gr)
    b_c = b2c.reshape(1, gr)

    cdt = compute_dtype
    return (w_a.astype(cdt), b_a, w_b.astype(cdt), b_b, w_c.astype(cdt), b_c,
            inter, gr)


# --------------------------------------------------------------------------
# Forward (Pallas)
# --------------------------------------------------------------------------
def dense_layer_forward(x_nchw, params, *, compute_dtype=jnp.float32):
    x = jnp.transpose(x_nchw, (0, 2, 3, 1))  # NCHW -> NHWC
    N, H, W, Cin = x.shape
    w_a, b_a, w_b, b_b, w_c, b_c, inter, gr = _prep_params(params, compute_dtype)
    Cout = Cin + 2 * gr

    out = pl.pallas_call(
        _dense_layer_kernel,
        out_shape=jax.ShapeDtypeStruct((N, H, W, Cout), x.dtype),
        grid=(N,),
        in_specs=[
            pl.BlockSpec((1, H, W, Cin), lambda n: (n, 0, 0, 0)),
            pl.BlockSpec((Cin, 2 * inter), lambda n: (0, 0)),
            pl.BlockSpec((1, 2 * inter), lambda n: (0, 0)),
            pl.BlockSpec((9 * 2 * inter, 2 * gr), lambda n: (0, 0)),
            pl.BlockSpec((1, 2 * gr), lambda n: (0, 0)),
            pl.BlockSpec((9 * gr, gr), lambda n: (0, 0)),
            pl.BlockSpec((1, gr), lambda n: (0, 0)),
        ],
        out_specs=pl.BlockSpec((1, H, W, Cout), lambda n: (n, 0, 0, 0)),
        scratch_shapes=[
            pltpu.VMEM((H + 2, W + 2, 2 * inter), compute_dtype),
            pltpu.VMEM((H + 2, W + 2, gr), compute_dtype),
        ],
        compiler_params=pltpu.CompilerParams(
            # one image per step -> 2 parallel steps feed both v7x TensorCores
            dimension_semantics=("parallel",),
        ),
    )(x, w_a, b_a, w_b, b_b, w_c, b_c)

    return jnp.transpose(out, (0, 3, 1, 2))  # back to NCHW


# --------------------------------------------------------------------------
# Parameter construction (deterministic, synthetic)
# --------------------------------------------------------------------------
def init_basic_conv2d(key, cin, cout, ksize):
    k1, k2, k3, k4, k5 = jax.random.split(key, 5)
    fan_in = cin * ksize * ksize
    w = jax.random.normal(k1, (ksize, ksize, cin, cout), jnp.float32)
    w = w * (1.0 / jnp.sqrt(jnp.float32(fan_in)))
    gamma = 1.0 + 0.1 * jax.random.normal(k2, (cout,), jnp.float32)
    beta = 0.1 * jax.random.normal(k3, (cout,), jnp.float32)
    mean = 0.1 * jax.random.normal(k4, (cout,), jnp.float32)
    var = jnp.abs(jax.random.normal(k5, (cout,), jnp.float32)) + 0.5
    return dict(w=w, gamma=gamma, beta=beta, mean=mean, var=var)


def make_dense_layer_params(key, num_input_features, growth_rate, bn_size):
    # Mirrors _DenseLayer.__init__ arithmetic.
    growth_rate = int(growth_rate / 2)
    inter_channel = int(growth_rate * bn_size / 4) * 4
    if inter_channel > num_input_features / 2:
        inter_channel = int(num_input_features / 8) * 4
    keys = jax.random.split(key, 5)
    return {
        "branch1a": init_basic_conv2d(keys[0], num_input_features, inter_channel, 1),
        "branch1b": init_basic_conv2d(keys[1], inter_channel, growth_rate, 3),
        "branch2a": init_basic_conv2d(keys[2], num_input_features, inter_channel, 1),
        "branch2b": init_basic_conv2d(keys[3], inter_channel, growth_rate, 3),
        "branch2c": init_basic_conv2d(keys[4], growth_rate, growth_rate, 3),
    }


# --------------------------------------------------------------------------
# Pure-JAX reference (conv -> BN -> ReLU per branch) for verification
# --------------------------------------------------------------------------
def _ref_basic_conv(x, p, padding):
    y = lax.conv_general_dilated(
        x, p["w"], window_strides=(1, 1), padding=padding,
        dimension_numbers=("NHWC", "HWIO", "NHWC"),
        precision=lax.Precision.HIGHEST)
    y = p["gamma"] * (y - p["mean"]) / jnp.sqrt(p["var"] + EPS) + p["beta"]
    return jnp.maximum(y, 0.0)


def dense_layer_ref(x_nchw, params):
    x = jnp.transpose(x_nchw, (0, 2, 3, 1))
    b1 = _ref_basic_conv(x, params["branch1a"], "VALID")
    b1 = _ref_basic_conv(b1, params["branch1b"], "SAME")
    b2 = _ref_basic_conv(x, params["branch2a"], "VALID")
    b2 = _ref_basic_conv(b2, params["branch2b"], "SAME")
    b2 = _ref_basic_conv(b2, params["branch2c"], "SAME")
    out = jnp.concatenate([x, b1, b2], axis=-1)
    return jnp.transpose(out, (0, 3, 1, 2))


# --------------------------------------------------------------------------
if __name__ == "__main__":
    key = jax.random.PRNGKey(0)
    kx, kp = jax.random.split(key)

    # _DenseLayer(num_input_features=32, growth_rate=16, bn_size=4, drop_rate=0)
    #   -> internal growth_rate = 8, inter_channel = 16
    #   -> output channels = 32 + 8 + 8 = 48
    N, C, H, W = 2, 32, 16, 16
    x = jax.random.normal(kx, (N, C, H, W), jnp.float32)
    params = make_dense_layer_params(kp, num_input_features=C,
                                     growth_rate=16, bn_size=4)

    ref = dense_layer_ref(x, params)

    # f32 matmul path (accurate; v5e-friendly)
    fwd_f32 = jax.jit(functools.partial(dense_layer_forward, params=params,
                                        compute_dtype=jnp.float32))
    out_f32 = jax.block_until_ready(fwd_f32(x))
    assert out_f32.shape == (N, C + 8 + 8, H, W), out_f32.shape
    assert jnp.allclose(out_f32, ref, atol=1e-3, rtol=1e-3), "f32 mismatch vs reference"

    # bf16 matmul operands (v6e/v7x MXU fast path), f32 accumulation + epilogue
    fwd_bf16 = jax.jit(functools.partial(dense_layer_forward, params=params,
                                         compute_dtype=jnp.bfloat16))
    out_bf16 = jax.block_until_ready(fwd_bf16(x))
    assert jnp.allclose(out_bf16, ref, atol=5e-2, rtol=5e-2), "bf16 mismatch vs reference"

    print("KERNEL_OK")
</pallas_src>

<mosaic_0001>
module attributes {stable_mosaic.version = 11 : i64} {
  func.func @_dense_layer_kernel(%arg0: i32, %arg1: memref<1x16x16x32xf32, #tpu.memory_space<vmem>>, %arg2: memref<32x32xf32, #tpu.memory_space<vmem>>, %arg3: memref<1x32xf32, #tpu.memory_space<vmem>>, %arg4: memref<288x16xf32, #tpu.memory_space<vmem>>, %arg5: memref<1x16xf32, #tpu.memory_space<vmem>>, %arg6: memref<72x8xf32, #tpu.memory_space<vmem>>, %arg7: memref<1x8xf32, #tpu.memory_space<vmem>>, %arg8: memref<1x16x16x48xf32, #tpu.memory_space<vmem>>, %arg9: memref<18x18x32xf32, #tpu.memory_space<vmem>>, %arg10: memref<18x18x8xf32, #tpu.memory_space<vmem>>) attributes {dimension_semantics = [#tpu.dimension_semantics<parallel>], iteration_bounds = array<i64: 2>, scalar_prefetch = 0 : i64, scratch_operands = 2 : i64, tpu.core_type = #tpu.core_type<tc>, window_params = [{transform_indices = @transform_0, window_bounds = array<i64: 1, 16, 16, 32>}, {pipeline_mode = #tpu.pipeline_mode<synchronous>, transform_indices = @transform_1, window_bounds = array<i64: 32, 32>}, {pipeline_mode = #tpu.pipeline_mode<synchronous>, transform_indices = @transform_2, window_bounds = array<i64: 1, 32>}, {pipeline_mode = #tpu.pipeline_mode<synchronous>, transform_indices = @transform_3, window_bounds = array<i64: 288, 16>}, {pipeline_mode = #tpu.pipeline_mode<synchronous>, transform_indices = @transform_4, window_bounds = array<i64: 1, 16>}, {pipeline_mode = #tpu.pipeline_mode<synchronous>, transform_indices = @transform_5, window_bounds = array<i64: 72, 8>}, {pipeline_mode = #tpu.pipeline_mode<synchronous>, transform_indices = @transform_6, window_bounds = array<i64: 1, 8>}, {transform_indices = @transform_7, window_bounds = array<i64: 1, 16, 16, 48>}]} {
    %c0 = arith.constant 0 : index
    %c0_0 = arith.constant 0 : index
    %c0_1 = arith.constant 0 : index
    %c0_2 = arith.constant 0 : index
    %0 = vector.load %arg1[%c0, %c0_0, %c0_1, %c0_2] : memref<1x16x16x32xf32, #tpu.memory_space<vmem>>, vector<1x16x16x32xf32>
    %1 = vector.shape_cast %0 : vector<1x16x16x32xf32> to vector<16x16x32xf32>
    %2 = vector.shape_cast %1 : vector<16x16x32xf32> to vector<256x32xf32>
    %c0_3 = arith.constant 0 : index
    %c0_4 = arith.constant 0 : index
    %3 = vector.load %arg2[%c0_3, %c0_4] : memref<32x32xf32, #tpu.memory_space<vmem>>, vector<32x32xf32>
    %cst = arith.constant dense<0.000000e+00> : vector<256x32xf32>
    %4 = tpu.matmul %2, %3, %cst {dimension_numbers = #tpu.dot_dimension_numbers<[1], [0], [0], [1], [0, 0, 1, 1], [], []>} : vector<256x32xf32>, vector<32x32xf32>, vector<256x32xf32> -> vector<256x32xf32>
    %c0_5 = arith.constant 0 : index
    %c0_6 = arith.constant 0 : index
    %5 = vector.load %arg3[%c0_5, %c0_6] : memref<1x32xf32, #tpu.memory_space<vmem>>, vector<1x32xf32>
    %6 = vector.broadcast %5 : vector<1x32xf32> to vector<256x32xf32>
    %7 = arith.addf %4, %6 : vector<256x32xf32>
    %cst_7 = arith.constant 0.000000e+00 : f32
    %8 = vector.broadcast %cst_7 : f32 to vector<256x32xf32>
    %9 = arith.maximumf %7, %8 : vector<256x32xf32>
    %cst_8 = arith.constant 0.000000e+00 : f32
    %10 = vector.broadcast %cst_8 : f32 to vector<18x18x32xf32>
    %c0_9 = arith.constant 0 : index
    %c0_10 = arith.constant 0 : index
    %c0_11 = arith.constant 0 : index
    %11 = vector.load %arg9[%c0_9, %c0_10, %c0_11] : memref<18x18x32xf32, #tpu.memory_space<vmem>>, vector<18x18x32xf32>
    tpu.vector_store %arg9[%c0_9, %c0_10, %c0_11], %10 {strides = array<i32>} : memref<18x18x32xf32, #tpu.memory_space<vmem>>, vector<18x18x32xf32>,
    %12 = vector.shape_cast %9 : vector<256x32xf32> to vector<16x16x32xf32>
    %c1 = arith.constant 1 : index
    %c1_12 = arith.constant 1 : index
    %c0_13 = arith.constant 0 : index
    %13 = vector.load %arg9[%c1, %c1_12, %c0_13] : memref<18x18x32xf32, #tpu.memory_space<vmem>>, vector<16x16x32xf32>
    tpu.vector_store %arg9[%c1, %c1_12, %c0_13], %12 {strides = array<i32>} : memref<18x18x32xf32, #tpu.memory_space<vmem>>, vector<16x16x32xf32>,
    %c0_14 = arith.constant 0 : index
    %c0_15 = arith.constant 0 : index
    %c0_16 = arith.constant 0 : index
    %14 = vector.load %arg9[%c0_14, %c0_15, %c0_16] : memref<18x18x32xf32, #tpu.memory_space<vmem>>, vector<16x16x32xf32>
    %15 = vector.shape_cast %14 : vector<16x16x32xf32> to vector<256x32xf32>
    %c0_17 = arith.constant 0 : index
    %c1_18 = arith.constant 1 : index
    %c0_19 = arith.constant 0 : index
    %16 = vector.load %arg9[%c0_17, %c1_18, %c0_19] : memref<18x18x32xf32, #tpu.memory_space<vmem>>, vector<16x16x32xf32>
    %17 = vector.shape_cast %16 : vector<16x16x32xf32> to vector<256x32xf32>
    %c0_20 = arith.constant 0 : index
    %c2 = arith.constant 2 : index
    %c0_21 = arith.constant 0 : index
    %18 = vector.load %arg9[%c0_20, %c2, %c0_21] : memref<18x18x32xf32, #tpu.memory_space<vmem>>, vector<16x16x32xf32>
    %19 = vector.shape_cast %18 : vector<16x16x32xf32> to vector<256x32xf32>
    %c1_22 = arith.constant 1 : index
    %c0_23 = arith.constant 0 : index
    %c0_24 = arith.constant 0 : index
    %20 = vector.load %arg9[%c1_22, %c0_23, %c0_24] : memref<18x18x32xf32, #tpu.memory_space<vmem>>, vector<16x16x32xf32>
    %21 = vector.shape_cast %20 : vector<16x16x32xf32> to vector<256x32xf32>
    %c1_25 = arith.constant 1 : index
    %c1_26 = arith.constant 1 : index
    %c0_27 = arith.constant 0 : index
    %22 = vector.load %arg9[%c1_25, %c1_26, %c0_27] : memref<18x18x32xf32, #tpu.memory_space<vmem>>, vector<16x16x32xf32>
    %23 = vector.shape_cast %22 : vector<16x16x32xf32> to vector<256x32xf32>
    %c1_28 = arith.constant 1 : index
    %c2_29 = arith.constant 2 : index
    %c0_30 = arith.constant 0 : index
    %24 = vector.load %arg9[%c1_28, %c2_29, %c0_30] : memref<18x18x32xf32, #tpu.memory_space<vmem>>, vector<16x16x32xf32>
    %25 = vector.shape_cast %24 : vector<16x16x32xf32> to vector<256x32xf32>
    %c2_31 = arith.constant 2 : index
    %c0_32 = arith.constant 0 : index
    %c0_33 = arith.constant 0 : index
    %26 = vector.load %arg9[%c2_31, %c0_32, %c0_33] : memref<18x18x32xf32, #tpu.memory_space<vmem>>, vector<16x16x32xf32>
    %27 = vector.shape_cast %26 : vector<16x16x32xf32> to vector<256x32xf32>
    %c2_34 = arith.constant 2 : index
    %c1_35 = arith.constant 1 : index
    %c0_36 = arith.constant 0 : index
    %28 = vector.load %arg9[%c2_34, %c1_35, %c0_36] : memref<18x18x32xf32, #tpu.memory_space<vmem>>, vector<16x16x32xf32>
    %29 = vector.shape_cast %28 : vector<16x16x32xf32> to vector<256x32xf32>
    %c2_37 = arith.constant 2 : index
    %c2_38 = arith.constant 2 : index
    %c0_39 = arith.constant 0 : index
    %30 = vector.load %arg9[%c2_37, %c2_38, %c0_39] : memref<18x18x32xf32, #tpu.memory_space<vmem>>, vector<16x16x32xf32>
    %31 = vector.shape_cast %30 : vector<16x16x32xf32> to vector<256x32xf32>
    %32 = tpu.concatenate %15, %17, %19, %21, %23, %25, %27, %29, %31 in 1 : vector<256x32xf32>, vector<256x32xf32>, vector<256x32xf32>, vector<256x32xf32>, vector<256x32xf32>, vector<256x32xf32>, vector<256x32xf32>, vector<256x32xf32>, vector<256x32xf32> -> vector<256x288xf32>
    %c0_40 = arith.constant 0 : index
    %c0_41 = arith.constant 0 : index
    %33 = vector.load %arg4[%c0_40, %c0_41] : memref<288x16xf32, #tpu.memory_space<vmem>>, vector<288x16xf32>
    %cst_42 = arith.constant dense<0.000000e+00> : vector<256x16xf32>
    %34 = tpu.matmul %32, %33, %cst_42 {dimension_numbers = #tpu.dot_dimension_numbers<[1], [0], [0], [1], [0, 0, 1, 1], [], []>} : vector<256x288xf32>, vector<288x16xf32>, vector<256x16xf32> -> vector<256x16xf32>
    %c0_43 = arith.constant 0 : index
    %c0_44 = arith.constant 0 : index
    %35 = vector.load %arg5[%c0_43, %c0_44] : memref<1x16xf32, #tpu.memory_space<vmem>>, vector<1x16xf32>
    %36 = vector.broadcast %35 : vector<1x16xf32> to vector<256x16xf32>
    %37 = arith.addf %34, %36 : vector<256x16xf32>
    %cst_45 = arith.constant 0.000000e+00 : f32
    %38 = vector.broadcast %cst_45 : f32 to vector<256x16xf32>
    %39 = arith.maximumf %37, %38 : vector<256x16xf32>
    %40 = vector.extract_strided_slice %39 {offsets = [0, 0], sizes = [256, 8], strides = [1, 1]} : vector<256x16xf32> to vector<256x8xf32>
    %41 = vector.extract_strided_slice %39 {offsets = [0, 8], sizes = [256, 8], strides = [1, 1]} : vector<256x16xf32> to vector<256x8xf32>
    %cst_46 = arith.constant 0.000000e+00 : f32
    %42 = vector.broadcast %cst_46 : f32 to vector<18x18x8xf32>
    %c0_47 = arith.constant 0 : index
    %c0_48 = arith.constant 0 : index
    %c0_49 = arith.constant 0 : index
    %43 = vector.load %arg10[%c0_47, %c0_48, %c0_49] : memref<18x18x8xf32, #tpu.memory_space<vmem>>, vector<18x18x8xf32>
    tpu.vector_store %arg10[%c0_47, %c0_48, %c0_49], %42 {strides = array<i32>} : memref<18x18x8xf32, #tpu.memory_space<vmem>>, vector<18x18x8xf32>,
    %44 = vector.shape_cast %41 : vector<256x8xf32> to vector<16x16x8xf32>
    %c1_50 = arith.constant 1 : index
    %c1_51 = arith.constant 1 : index
    %c0_52 = arith.constant 0 : index
    %45 = vector.load %arg10[%c1_50, %c1_51, %c0_52] : memref<18x18x8xf32, #tpu.memory_space<vmem>>, vector<16x16x8xf32>
    tpu.vector_store %arg10[%c1_50, %c1_51, %c0_52], %44 {strides = array<i32>} : memref<18x18x8xf32, #tpu.memory_space<vmem>>, vector<16x16x8xf32>,
    %c0_53 = arith.constant 0 : index
    %c0_54 = arith.constant 0 : index
    %c0_55 = arith.constant 0 : index
    %46 = vector.load %arg10[%c0_53, %c0_54, %c0_55] : memref<18x18x8xf32, #tpu.memory_space<vmem>>, vector<16x16x8xf32>
    %47 = vector.shape_cast %46 : vector<16x16x8xf32> to vector<256x8xf32>
    %c0_56 = arith.constant 0 : index
    %c1_57 = arith.constant 1 : index
    %c0_58 = arith.constant 0 : index
    %48 = vector.load %arg10[%c0_56, %c1_57, %c0_58] : memref<18x18x8xf32, #tpu.memory_space<vmem>>, vector<16x16x8xf32>
    %49 = vector.shape_cast %48 : vector<16x16x8xf32> to vector<256x8xf32>
    %c0_59 = arith.constant 0 : index
    %c2_60 = arith.constant 2 : index
    %c0_61 = arith.constant 0 : index
    %50 = vector.load %arg10[%c0_59, %c2_60, %c0_61] : memref<18x18x8xf32, #tpu.memory_space<vmem>>, vector<16x16x8xf32>
    %51 = vector.shape_cast %50 : vector<16x16x8xf32> to vector<256x8xf32>
    %c1_62 = arith.constant 1 : index
    %c0_63 = arith.constant 0 : index
    %c0_64 = arith.constant 0 : index
    %52 = vector.load %arg10[%c1_62, %c0_63, %c0_64] : memref<18x18x8xf32, #tpu.memory_space<vmem>>, vector<16x16x8xf32>
    %53 = vector.shape_cast %52 : vector<16x16x8xf32> to vector<256x8xf32>
    %c1_65 = arith.constant 1 : index
    %c1_66 = arith.constant 1 : index
    %c0_67 = arith.constant 0 : index
    %54 = vector.load %arg10[%c1_65, %c1_66, %c0_67] : memref<18x18x8xf32, #tpu.memory_space<vmem>>, vector<16x16x8xf32>
    %55 = vector.shape_cast %54 : vector<16x16x8xf32> to vector<256x8xf32>
    %c1_68 = arith.constant 1 : index
    %c2_69 = arith.constant 2 : index
    %c0_70 = arith.constant 0 : index
    %56 = vector.load %arg10[%c1_68, %c2_69, %c0_70] : memref<18x18x8xf32, #tpu.memory_space<vmem>>, vector<16x16x8xf32>
    %57 = vector.shape_cast %56 : vector<16x16x8xf32> to vector<256x8xf32>
    %c2_71 = arith.constant 2 : index
    %c0_72 = arith.constant 0 : index
    %c0_73 = arith.constant 0 : index
    %58 = vector.load %arg10[%c2_71, %c0_72, %c0_73] : memref<18x18x8xf32, #tpu.memory_space<vmem>>, vector<16x16x8xf32>
    %59 = vector.shape_cast %58 : vector<16x16x8xf32> to vector<256x8xf32>
    %c2_74 = arith.constant 2 : index
    %c1_75 = arith.constant 1 : index
    %c0_76 = arith.constant 0 : index
    %60 = vector.load %arg10[%c2_74, %c1_75, %c0_76] : memref<18x18x8xf32, #tpu.memory_space<vmem>>, vector<16x16x8xf32>
    %61 = vector.shape_cast %60 : vector<16x16x8xf32> to vector<256x8xf32>
    %c2_77 = arith.constant 2 : index
    %c2_78 = arith.constant 2 : index
    %c0_79 = arith.constant 0 : index
    %62 = vector.load %arg10[%c2_77, %c2_78, %c0_79] : memref<18x18x8xf32, #tpu.memory_space<vmem>>, vector<16x16x8xf32>
    %63 = vector.shape_cast %62 : vector<16x16x8xf32> to vector<256x8xf32>
    %64 = tpu.concatenate %47, %49, %51, %53, %55, %57, %59, %61, %63 in 1 : vector<256x8xf32>, vector<256x8xf32>, vector<256x8xf32>, vector<256x8xf32>, vector<256x8xf32>, vector<256x8xf32>, vector<256x8xf32>, vector<256x8xf32>, vector<256x8xf32> -> vector<256x72xf32>
    %c0_80 = arith.constant 0 : index
    %c0_81 = arith.constant 0 : index
    %65 = vector.load %arg6[%c0_80, %c0_81] : memref<72x8xf32, #tpu.memory_space<vmem>>, vector<72x8xf32>
    %cst_82 = arith.constant dense<0.000000e+00> : vector<256x8xf32>
    %66 = tpu.matmul %64, %65, %cst_82 {dimension_numbers = #tpu.dot_dimension_numbers<[1], [0], [0], [1], [0, 0, 1, 1], [], []>} : vector<256x72xf32>, vector<72x8xf32>, vector<256x8xf32> -> vector<256x8xf32>
    %c0_83 = arith.constant 0 : index
    %c0_84 = arith.constant 0 : index
    %67 = vector.load %arg7[%c0_83, %c0_84] : memref<1x8xf32, #tpu.memory_space<vmem>>, vector<1x8xf32>
    %68 = vector.broadcast %67 : vector<1x8xf32> to vector<256x8xf32>
    %69 = arith.addf %66, %68 : vector<256x8xf32>
    %cst_85 = arith.constant 0.000000e+00 : f32
    %70 = vector.broadcast %cst_85 : f32 to vector<256x8xf32>
    %71 = arith.maximumf %69, %70 : vector<256x8xf32>
    %72 = tpu.concatenate %2, %40, %71 in 1 : vector<256x32xf32>, vector<256x8xf32>, vector<256x8xf32> -> vector<256x48xf32>
    %73 = vector.shape_cast %72 : vector<256x48xf32> to vector<1x16x16x48xf32>
    %c0_86 = arith.constant 0 : index
    %c0_87 = arith.constant 0 : index
    %c0_88 = arith.constant 0 : index
    %c0_89 = arith.constant 0 : index
    %74 = vector.load %arg8[%c0_86, %c0_87, %c0_88, %c0_89] : memref<1x16x16x48xf32, #tpu.memory_space<vmem>>, vector<1x16x16x48xf32>
    tpu.vector_store %arg8[%c0_86, %c0_87, %c0_88, %c0_89], %73 {strides = array<i32>} : memref<1x16x16x48xf32, #tpu.memory_space<vmem>>, vector<1x16x16x48xf32>,
    return
  }
  func.func @transform_0(%arg0: i32) -> (i32, i32, i32, i32) {
    %c0_i32 = arith.constant 0 : i32
    %c0_i32_0 = arith.constant 0 : i32
    %c0_i32_1 = arith.constant 0 : i32
    %c0_i32_2 = arith.constant 0 : i32
    return %arg0, %c0_i32, %c0_i32_0, %c0_i32_1 : i32, i32, i32, i32
  }
  func.func @transform_1(%arg0: i32) -> (i32, i32) {
    %c0_i32 = arith.constant 0 : i32
    %c0_i32_0 = arith.constant 0 : i32
    %c0_i32_1 = arith.constant 0 : i32
    return %c0_i32, %c0_i32_0 : i32, i32
  }
  func.func @transform_2(%arg0: i32) -> (i32, i32) {
    %c0_i32 = arith.constant 0 : i32
    %c0_i32_0 = arith.constant 0 : i32
    %c0_i32_1 = arith.constant 0 : i32
    return %c0_i32, %c0_i32_0 : i32, i32
  }
  func.func @transform_3(%arg0: i32) -> (i32, i32) {
    %c0_i32 = arith.constant 0 : i32
    %c0_i32_0 = arith.constant 0 : i32
    %c0_i32_1 = arith.constant 0 : i32
    return %c0_i32, %c0_i32_0 : i32, i32
  }
  func.func @transform_4(%arg0: i32) -> (i32, i32) {
    %c0_i32 = arith.constant 0 : i32
    %c0_i32_0 = arith.constant 0 : i32
    %c0_i32_1 = arith.constant 0 : i32
    return %c0_i32, %c0_i32_0 : i32, i32
  }
  func.func @transform_5(%arg0: i32) -> (i32, i32) {
    %c0_i32 = arith.constant 0 : i32
    %c0_i32_0 = arith.constant 0 : i32
    %c0_i32_1 = arith.constant 0 : i32
    return %c0_i32, %c0_i32_0 : i32, i32
  }
  func.func @transform_6(%arg0: i32) -> (i32, i32) {
    %c0_i32 = arith.constant 0 : i32
    %c0_i32_0 = arith.constant 0 : i32
    %c0_i32_1 = arith.constant 0 : i32
    return %c0_i32, %c0_i32_0 : i32, i32
  }
  func.func @transform_7(%arg0: i32) -> (i32, i32, i32, i32) {
    %c0_i32 = arith.constant 0 : i32
    %c0_i32_0 = arith.constant 0 : i32
    %c0_i32_1 = arith.constant 0 : i32
    %c0_i32_2 = arith.constant 0 : i32
    return %arg0, %c0_i32, %c0_i32_0, %c0_i32_1 : i32, i32, i32, i32
  }
}

</mosaic_0001>

<llo_original>
// kernel: dense_layer_forward.1
$region0: #{dense_layer_forward.1}
  #allocation0 [shape = 'u32[]', space=smem, size = 0x4, offset = 0x4, fixed_abs, tag = 'smem constant byte address 0x4 - core index']
  #allocation1 [shape = 'u32[144,128]{1,0:T(1,128)}', space=vmem, size = 0x12000, scoped, tag = 'internal scratch']
  #allocation2 [shape = 'f32[18,18,32]{2,1,0:T(8,128)}', space=vmem, size = 0x36000, scoped, tag = 'scratch operand']
  #allocation3 [shape = 'f32[18,18,8]{2,1,0:T(8,128)}', space=vmem, size = 0x36000, scoped, tag = 'scratch operand']
  %s0 = inlined_call_operand.hbm [shape: f32[2,16,16,32], index: 0, kind: input, shape index: {}]
  %s1 = inlined_call_operand.hbm [shape: f32[32,32], index: 1, kind: input, shape index: {}]
  %s2 = inlined_call_operand.vmem [shape: f32[1,32], index: 2, kind: input, shape index: {}]
  %s3 = inlined_call_operand.hbm [shape: f32[288,16], index: 3, kind: input, shape index: {}]
  %s4 = inlined_call_operand.vmem [shape: f32[1,16], index: 4, kind: input, shape index: {}]
  %s5 = inlined_call_operand.hbm [shape: f32[72,8], index: 5, kind: input, shape index: {}]
  %s6 = inlined_call_operand.vmem [shape: f32[1,8], index: 6, kind: input, shape index: {}]
  %s7 = inlined_call_operand.hbm [shape: f32[2,16,16,48], index: 7, kind: output, shape index: {}]
  %s8 = sld [smem:[#allocation0]]
  $region77: #{dense_layer_forward.1} parent=0
    _
  %s10 = ssub.s32 1, %s8
  %s11 = scalar_select 0, %s10, %s8
  $region1: #{dense_layer_forward.1} parent=0
    #allocation4 [shape = 'u8[262144]{0}', space=vmem, size = 0x40000, scoped, tag = 'input window, operand 0']
    #allocation5 [shape = 's32[2]{0}', space=sflag, size = 0x8, scoped, tag = 'scoped memory for dense_layer_forward.1']
    #allocation6 [shape = 's32[2]{0}', space=sflag, size = 0x8, scoped, tag = 'scoped memory for dense_layer_forward.1']
    #allocation7 [shape = 'u8[16384]{0}', space=vmem, size = 0x4000, scoped, tag = 'input window, operand 1, single buffered']
    #allocation8 [shape = 's32[1]{0}', space=sflag, size = 0x4, scoped, tag = 'scoped memory for dense_layer_forward.1']
    #allocation9 [shape = 'u8[147456]{0}', space=vmem, size = 0x24000, scoped, tag = 'input window, operand 3, single buffered']
    #allocation10 [shape = 'u8[36864]{0}', space=vmem, size = 0x9000, scoped, tag = 'input window, operand 5, single buffered']
    #allocation11 [shape = 's32[1]{0}', space=sflag, size = 0x4, scoped, tag = 'scoped memory for dense_layer_forward.1']
    #allocation12 [shape = 'u8[262144]{0}', space=vmem, size = 0x40000, scoped, tag = 'output window, operand 0']
    %12 = vsyncpa [#allocation5], 0
    %s13 = scalar_lea.sflag [#allocation5], 1
    %14 = vsyncpa %s13, 0
    %15 = vsyncpa [#allocation8], 0
    %16 = vsyncpa [#allocation11], 0
    %17 = vsyncpa [#allocation6], 0
    %s18 = scalar_lea.sflag [#allocation6], 1
    %19 = vsyncpa %s18, 0
    loop: start=0, step=1, limit=4
    $region2: #{dense_layer_forward.1} parent=1 // loop_pre_header
      _
    $region3: #{dense_layer_forward.1} parent=1 // loop_header
      %s21 = sphi 0, %s25
      %p22 = scmp.ge.s32.totalorder %s21, 4
      %s31 = sphi 0, %s33
      %s34 = sphi 0, %s31
      %s35 = sphi 0, %s34
      %s51 = sphi 0, %s35
      %s55 = sphi 0, %s55
      %s57 = sphi 0, %s55
      %s58 = sphi 0, %s57
      %s72 = sphi 0, %s58
      %s76 = sphi 0, %s76
      %s78 = sphi 0, %s76
      %s79 = sphi 0, %s78
      %s93 = sphi 0, %s79
      %s97 = sphi 0, %s97
      %s99 = sphi 0, %s97
      %s100 = sphi 0, %s99
      %s114 = sphi 0, %s100
      %s118 = sphi 0, %s118
      %s120 = sphi 0, %s118
      %s121 = sphi 0, %s120
      %s135 = sphi 0, %s121
      %s139 = sphi 0, %s139
      %s141 = sphi 0, %s139
      %s142 = sphi 0, %s141
      %s156 = sphi 0, %s142
      %s160 = sphi 0, %s160
      %s162 = sphi 0, %s160
      %s163 = sphi 0, %s162
      %s177 = sphi 0, %s163
      %s183 = sphi 0, %s185
      %s186 = sphi 0, %s183
      %s187 = sphi 0, %s186
      %s203 = sphi 0, %s187
    $region4: #{dense_layer_forward.1} parent=1 // loop_header_branch
      %24 = sbr.rel (%p22) target = $region8
    $region5: #{dense_layer_forward.1} parent=1 // loop_body
      %s26 = ssub.s32 %s21, 1
      %s27 = ssub.s32 %s21, 2
      %s28 = sadd.s32 %s21, 1
      %s29 = ssub.s32 %s21, %s28
      %p30 = scmp.eq.s32.totalorder %s29, 0
      %s32 = sadd.s32 %s31, 1
      %s33 = scalar_select %p30, %s31, %s32
      %p36 = pneg %p30
      %p37 = scmp.eq.s32.totalorder %s21, 1
      %p38 = por %p36, %p37
      %p39 = scmp.ne.s32.totalorder %s31, %s34
      %p40 = scmp.eq.s32.totalorder %s21, 0
      %p41 = por %p39, %p40
      %p42 = scmp.ne.s32.totalorder %s31, %s34
      %p43 = scmp.eq.s32.totalorder %s26, 1
      %p44 = por %p42, %p43
      %p45 = scmp.ne.s32.totalorder %s34, %s35
      %p46 = scmp.eq.s32.totalorder %s26, 0
      %p47 = por %p45, %p46
      %p48 = scmp.ne.s32.totalorder %s34, %s35
      %p49 = scmp.eq.s32.totalorder %s27, 1
      %p50 = por %p48, %p49
      %p52 = scmp.ne.s32.totalorder %s35, %s51
      %p53 = scmp.eq.s32.totalorder %s27, 0
      %p54 = por %p52, %p53
      %s56 = sadd.s32 %s55, 1
      %p59 = scmp.eq.s32.totalorder %s21, 1
      %p60 = scmp.ne.s32.totalorder %s55, %s57
      %p61 = scmp.eq.s32.totalorder %s21, 0
      %p62 = por %p60, %p61
      %p63 = scmp.ne.s32.totalorder %s55, %s57
      %p64 = scmp.eq.s32.totalorder %s26, 1
      %p65 = por %p63, %p64
      %p66 = scmp.ne.s32.totalorder %s57, %s58
      %p67 = scmp.eq.s32.totalorder %s26, 0
      %p68 = por %p66, %p67
      %p69 = scmp.ne.s32.totalorder %s57, %s58
      %p70 = scmp.eq.s32.totalorder %s27, 1
      %p71 = por %p69, %p70
      %p73 = scmp.ne.s32.totalorder %s58, %s72
      %p74 = scmp.eq.s32.totalorder %s27, 0
      %p75 = por %p73, %p74
      %s77 = sadd.s32 %s76, 1
      %p80 = scmp.eq.s32.totalorder %s21, 1
      %p81 = scmp.ne.s32.totalorder %s76, %s78
      %p82 = scmp.eq.s32.totalorder %s21, 0
      %p83 = por %p81, %p82
      %p84 = scmp.ne.s32.totalorder %s76, %s78
      %p85 = scmp.eq.s32.totalorder %s26, 1
      %p86 = por %p84, %p85
      %p87 = scmp.ne.s32.totalorder %s78, %s79
      %p88 = scmp.eq.s32.totalorder %s26, 0
      %p89 = por %p87, %p88
      %p90 = scmp.ne.s32.totalorder %s78, %s79
      %p91 = scmp.eq.s32.totalorder %s27, 1
      %p92 = por %p90, %p91
      %p94 = scmp.ne.s32.totalorder %s79, %s93
      %p95 = scmp.eq.s32.totalorder %s27, 0
      %p96 = por %p94, %p95
      %s98 = sadd.s32 %s97, 1
      %p101 = scmp.eq.s32.totalorder %s21, 1
      %p102 = scmp.ne.s32.totalorder %s97, %s99
      %p103 = scmp.eq.s32.totalorder %s21, 0
      %p104 = por %p102, %p103
      %p105 = scmp.ne.s32.totalorder %s97, %s99
      %p106 = scmp.eq.s32.totalorder %s26, 1
      %p107 = por %p105, %p106
      %p108 = scmp.ne.s32.totalorder %s99, %s100
      %p109 = scmp.eq.s32.totalorder %s26, 0
      %p110 = por %p108, %p109
      %p111 = scmp.ne.s32.totalorder %s99, %s100
      %p112 = scmp.eq.s32.totalorder %s27, 1
      %p113 = por %p111, %p112
      %p115 = scmp.ne.s32.totalorder %s100, %s114
      %p116 = scmp.eq.s32.totalorder %s27, 0
      %p117 = por %p115, %p116
      %s119 = sadd.s32 %s118, 1
      %p122 = scmp.eq.s32.totalorder %s21, 1
      %p123 = scmp.ne.s32.totalorder %s118, %s120
      %p124 = scmp.eq.s32.totalorder %s21, 0
      %p125 = por %p123, %p124
      %p126 = scmp.ne.s32.totalorder %s118, %s120
      %p127 = scmp.eq.s32.totalorder %s26, 1
      %p128 = por %p126, %p127
      %p129 = scmp.ne.s32.totalorder %s120, %s121
      %p130 = scmp.eq.s32.totalorder %s26, 0
      %p131 = por %p129, %p130
      %p132 = scmp.ne.s32.totalorder %s120, %s121
      %p133 = scmp.eq.s32.totalorder %s27, 1
      %p134 = por %p132, %p133
      %p136 = scmp.ne.s32.totalorder %s121, %s135
      %p137 = scmp.eq.s32.totalorder %s27, 0
      %p138 = por %p136, %p137
      %s140 = sadd.s32 %s139, 1
      %p143 = scmp.eq.s32.totalorder %s21, 1
      %p144 = scmp.ne.s32.totalorder %s139, %s141
      %p145 = scmp.eq.s32.totalorder %s21, 0
      %p146 = por %p144, %p145
      %p147 = scmp.ne.s32.totalorder %s139, %s141
      %p148 = scmp.eq.s32.totalorder %s26, 1
      %p149 = por %p147, %p148
      %p150 = scmp.ne.s32.totalorder %s141, %s142
      %p151 = scmp.eq.s32.totalorder %s26, 0
      %p152 = por %p150, %p151
      %p153 = scmp.ne.s32.totalorder %s141, %s142
      %p154 = scmp.eq.s32.totalorder %s27, 1
      %p155 = por %p153, %p154
      %p157 = scmp.ne.s32.totalorder %s142, %s156
      %p158 = scmp.eq.s32.totalorder %s27, 0
      %p159 = por %p157, %p158
      %s161 = sadd.s32 %s160, 1
      %p164 = scmp.eq.s32.totalorder %s21, 1
      %p165 = scmp.ne.s32.totalorder %s160, %s162
      %p166 = scmp.eq.s32.totalorder %s21, 0
      %p167 = por %p165, %p166
      %p168 = scmp.ne.s32.totalorder %s160, %s162
      %p169 = scmp.eq.s32.totalorder %s26, 1
      %p170 = por %p168, %p169
      %p171 = scmp.ne.s32.totalorder %s162, %s163
      %p172 = scmp.eq.s32.totalorder %s26, 0
      %p173 = por %p171, %p172
      %p174 = scmp.ne.s32.totalorder %s162, %s163
      %p175 = scmp.eq.s32.totalorder %s27, 1
      %p176 = por %p174, %p175
      %p178 = scmp.ne.s32.totalorder %s163, %s177
      %p179 = scmp.eq.s32.totalorder %s27, 0
      %p180 = por %p178, %p179
      %s181 = ssub.s32 %s21, %s28
      %p182 = scmp.eq.s32.totalorder %s181, 0
      %s184 = sadd.s32 %s183, 1
      %s185 = scalar_select %p182, %s183, %s184
      %p188 = pneg %p182
      %p189 = scmp.eq.s32.totalorder %s21, 1
      %p190 = por %p188, %p189
      %p191 = scmp.ne.s32.totalorder %s183, %s186
      %p192 = scmp.eq.s32.totalorder %s21, 0
      %p193 = por %p191, %p192
      %p194 = scmp.ne.s32.totalorder %s183, %s186
      %p195 = scmp.eq.s32.totalorder %s26, 1
      %p196 = por %p194, %p195
      %p197 = scmp.ne.s32.totalorder %s186, %s187
      %p198 = scmp.eq.s32.totalorder %s26, 0
      %p199 = por %p197, %p198
      %p200 = scmp.ne.s32.totalorder %s186, %s187
      %p201 = scmp.eq.s32.totalorder %s27, 1
      %p202 = por %p200, %p201
      %p204 = scmp.ne.s32.totalorder %s187, %s203
      %p205 = scmp.eq.s32.totalorder %s27, 0
      %p206 = por %p204, %p205
      %p207 = scmp.le.s32.totalorder 1, %s21
      %p208 = scmp.lt.s32.totalorder %s21, 3
      %p209 = pnand %p207, %p208
      %p210 = pneg %p209
      // Predicated region
      $region9: #{dense_layer_forward.1} parent=5 // pred_check
        _
      $region10: #{dense_layer_forward.1} parent=5 // pred_check_branch
        %212 = sbr.rel (%p209) target = $region12
      $region11: #{dense_layer_forward.1} parent=5 // pred_region
        %s213 = ssub.s32 %s21, 1
        // Predicated region
        $region13: #{dense_layer_forward.1} parent=11 // pred_check
          %p214 = pneg %p68
        $region14: #{dense_layer_forward.1} parent=11 // pred_check_branch
          %216 = sbr.rel (%p214) target = $region16
        $region15: #{dense_layer_forward.1} parent=11 // pred_region
          %s218 = ssub.s32 512, 512
          %219 = vsyncadd [#allocation8], %s218
          %s220 = sshll.u32 [#allocation7], 4
          %s221 = int_to_ptr.vmem [resolvable:$true] %s220
          %226 = dma.hbm_to_vmem [thread:$0]  %s1, 512, %s221, [#allocation8], 128, 128, 8
        $region16: #{dense_layer_forward.1} parent=11 // pred_fallthru
          _
        // Predicated region
        $region17: #{dense_layer_forward.1} parent=11 // pred_check
          %p227 = pneg %p89
        $region18: #{dense_layer_forward.1} parent=11 // pred_check_branch
          %229 = sbr.rel (%p227) target = $region20
        $region19: #{dense_layer_forward.1} parent=11 // pred_region
          _
        $region20: #{dense_layer_forward.1} parent=11 // pred_fallthru
          _
        // Predicated region
        $region21: #{dense_layer_forward.1} parent=11 // pred_check
          %p230 = pneg %p110
        $region22: #{dense_layer_forward.1} parent=11 // pred_check_branch
          %232 = sbr.rel (%p230) target = $region24
        $region23: #{dense_layer_forward.1} parent=11 // pred_region
          %s234 = ssub.s32 4608, 4608
          %235 = vsyncadd [#allocation8], %s234
          %s236 = sshll.u32 [#allocation9], 4
          %s237 = int_to_ptr.vmem [resolvable:$true] %s236
          %242 = dma.hbm_to_vmem [thread:$0]  %s3, 4608, %s237, [#allocation8], 128, 128, 8
        $region24: #{dense_layer_forward.1} parent=11 // pred_fallthru
          _
        // Predicated region
        $region25: #{dense_layer_forward.1} parent=11 // pred_check
          %p243 = pneg %p131
        $region26: #{dense_layer_forward.1} parent=11 // pred_check_branch
          %245 = sbr.rel (%p243) target = $region28
        $region27: #{dense_layer_forward.1} parent=11 // pred_region
          _
        $region28: #{dense_layer_forward.1} parent=11 // pred_fallthru
          _
        // Predicated region
        $region29: #{dense_layer_forward.1} parent=11 // pred_check
          %p246 = pneg %p152
        $region30: #{dense_layer_forward.1} parent=11 // pred_check_branch
          %248 = sbr.rel (%p246) target = $region32
        $region31: #{dense_layer_forward.1} parent=11 // pred_region
          %s250 = ssub.s32 1152, 1152
          %251 = vsyncadd [#allocation11], %s250
          %s252 = sshll.u32 [#allocation10], 4
          %s253 = int_to_ptr.vmem [resolvable:$true] %s252
          %258 = dma.hbm_to_vmem [thread:$0]  %s5, 1152, %s253, [#allocation11], 128, 128, 8
        $region32: #{dense_layer_forward.1} parent=11 // pred_fallthru
          _
        // Predicated region
        $region33: #{dense_layer_forward.1} parent=11 // pred_check
          %p259 = pneg %p173
        $region34: #{dense_layer_forward.1} parent=11 // pred_check_branch
          %261 = sbr.rel (%p259) target = $region36
        $region35: #{dense_layer_forward.1} parent=11 // pred_region
          _
        $region36: #{dense_layer_forward.1} parent=11 // pred_fallthru
          _
      $region12: #{dense_layer_forward.1} parent=5 // pred_fallthru
        _
      %p262 = scmp.lt.s32.totalorder %s21, 2
      // Predicated region
      $region37: #{dense_layer_forward.1} parent=5 // pred_check
        %p263 = pneg %p262
      $region38: #{dense_layer_forward.1} parent=5 // pred_check_branch
        %265 = sbr.rel (%p263) target = $region40
      $region39: #{dense_layer_forward.1} parent=5 // pred_region
        // Predicated region
        $region41: #{dense_layer_forward.1} parent=39 // pred_check
          %p266 = pneg %p41
        $region42: #{dense_layer_forward.1} parent=39 // pred_check_branch
          %268 = sbr.rel (%p266) target = $region44
        $region43: #{dense_layer_forward.1} parent=39 // pred_region
          %s269 = sand.u32 %s31, 1
          %s270 = scalar_lea.sflag [#allocation5], %s269
          %s271 = sand.u32 %s31, 1
          %s272 = smul.addr %s271, 256
          %s273 = scalar_lea.vmem [#allocation4], %s272
          %s275 = ssub.s32 4096, 4096
          %276 = vsyncadd %s270, %s275
          %s277 = smul.addr %s21, 32
          %s278 = smul.addr %s277, 128
          %s279 = scalar_lea.hbm %s0, %s278
          %s280 = sshll.u32 %s273, 4
          %s281 = int_to_ptr.vmem [resolvable:$true] %s280
          %286 = dma.hbm_to_vmem [thread:$0]  %s279, 4096, %s281, %s270, 128, 128, 8
        $region44: #{dense_layer_forward.1} parent=39 // pred_fallthru
          _
      $region40: #{dense_layer_forward.1} parent=5 // pred_fallthru
        _
      %p287 = scmp.le.s32.totalorder 1, %s21
      %p288 = scmp.lt.s32.totalorder %s21, 3
      %p289 = pnand %p287, %p288
      %p290 = pneg %p289
      // Predicated region
      $region45: #{dense_layer_forward.1} parent=5 // pred_check
        _
      $region46: #{dense_layer_forward.1} parent=5 // pred_check_branch
        %292 = sbr.rel (%p289) target = $region48
      $region47: #{dense_layer_forward.1} parent=5 // pred_region
        %s293 = ssub.s32 %s21, 1
        %s294 = sand.u32 %s34, 1
        %s295 = scalar_lea.sflag [#allocation5], %s294
        %s296 = sand.u32 %s34, 1
        %s297 = smul.addr %s296, 256
        %s298 = scalar_lea.vmem [#allocation4], %s297
        // Predicated region
        $region49: #{dense_layer_forward.1} parent=47 // pred_check
          %p299 = pneg %p47
        $region50: #{dense_layer_forward.1} parent=47 // pred_check_branch
          %301 = sbr.rel (%p299) target = $region52
        $region51: #{dense_layer_forward.1} parent=47 // pred_region
          %302 = dma.done %s295, 4096
        $region52: #{dense_layer_forward.1} parent=47 // pred_fallthru
          _
        // Predicated region
        $region53: #{dense_layer_forward.1} parent=47 // pred_check
          %p303 = pneg %p68
        $region54: #{dense_layer_forward.1} parent=47 // pred_check_branch
          %305 = sbr.rel (%p303) target = $region56
        $region55: #{dense_layer_forward.1} parent=47 // pred_region
          %306 = dma.done [#allocation8], 512
        $region56: #{dense_layer_forward.1} parent=47 // pred_fallthru
          _
        // Predicated region
        $region57: #{dense_layer_forward.1} parent=47 // pred_check
          %p307 = pneg %p110
        $region58: #{dense_layer_forward.1} parent=47 // pred_check_branch
          %309 = sbr.rel (%p307) target = $region60
        $region59: #{dense_layer_forward.1} parent=47 // pred_region
          %310 = dma.done [#allocation8], 4608
        $region60: #{dense_layer_forward.1} parent=47 // pred_fallthru
          _
        // Predicated region
        $region61: #{dense_layer_forward.1} parent=47 // pred_check
          %p311 = pneg %p152
        $region62: #{dense_layer_forward.1} parent=47 // pred_check_branch
          %313 = sbr.rel (%p311) target = $region64
        $region63: #{dense_layer_forward.1} parent=47 // pred_region
          %314 = dma.done [#allocation11], 1152
        $region64: #{dense_layer_forward.1} parent=47 // pred_fallthru
          _
        %s315 = sand.u32 %s34, 1
        %s316 = scalar_lea.sflag [#allocation5], %s315
        %s317 = sand.u32 %s34, 1
        %s318 = smul.addr %s317, 256
        %s319 = scalar_lea.vmem [#allocation4], %s318
        %p320 = pneg %p47
        %p321 = pneg %p44
        %p322 = pneg %p68
        %p323 = pneg %p65
        %p324 = pneg %p89
        %p325 = pneg %p86
        %p326 = pneg %p110
        %p327 = pneg %p107
        %p328 = pneg %p131
        %p329 = pneg %p128
        %p330 = pneg %p152
        %p331 = pneg %p149
        %p332 = pneg %p173
        %p333 = pneg %p170
        %p334 = pneg %p199
        %p335 = pneg %p196
        %s336 = sand.u32 %s186, 1
        %s337 = scalar_lea.sflag [#allocation6], %s336
        %s338 = sand.u32 %s186, 1
        %s339 = smul.addr %s338, 256
        %s340 = scalar_lea.vmem [#allocation12], %s339
        %v341 = vld [vmem:[%s298] sm:$0xff]
        %v342 = vld [vmem:[%s298 + $0x8] sm:$0xff]
        %v343 = vld [vmem:[%s298 + $0x10] sm:$0xff]
        %v344 = vld [vmem:[%s298 + $0x18] sm:$0xff]
        %v345 = vld [vmem:[%s298 + $0x20] sm:$0xff]
        %v346 = vld [vmem:[%s298 + $0x28] sm:$0xff]
        %v347 = vld [vmem:[%s298 + $0x30] sm:$0xff]
        %v348 = vld [vmem:[%s298 + $0x38] sm:$0xff]
        %v349 = vld [vmem:[%s298 + $0x40] sm:$0xff]
        %v350 = vld [vmem:[%s298 + $0x48] sm:$0xff]
        %v351 = vld [vmem:[%s298 + $0x50] sm:$0xff]
        %v352 = vld [vmem:[%s298 + $0x58] sm:$0xff]
        %v353 = vld [vmem:[%s298 + $0x60] sm:$0xff]
        %v354 = vld [vmem:[%s298 + $0x68] sm:$0xff]
        %v355 = vld [vmem:[%s298 + $0x70] sm:$0xff]
        %v356 = vld [vmem:[%s298 + $0x78] sm:$0xff]
        %v357 = vld [vmem:[%s298 + $0x80] sm:$0xff]
        %v358 = vld [vmem:[%s298 + $0x88] sm:$0xff]
        %v359 = vld [vmem:[%s298 + $0x90] sm:$0xff]
        %v360 = vld [vmem:[%s298 + $0x98] sm:$0xff]
        %v361 = vld [vmem:[%s298 + $0xa0] sm:$0xff]
        %v362 = vld [vmem:[%s298 + $0xa8] sm:$0xff]
        %v363 = vld [vmem:[%s298 + $0xb0] sm:$0xff]
        %v364 = vld [vmem:[%s298 + $0xb8] sm:$0xff]
        %v365 = vld [vmem:[%s298 + $0xc0] sm:$0xff]
        %v366 = vld [vmem:[%s298 + $0xc8] sm:$0xff]
        %v367 = vld [vmem:[%s298 + $0xd0] sm:$0xff]
        %v368 = vld [vmem:[%s298 + $0xd8] sm:$0xff]
        %v369 = vld [vmem:[%s298 + $0xe0] sm:$0xff]
        %v370 = vld [vmem:[%s298 + $0xe8] sm:$0xff]
        %v371 = vld [vmem:[%s298 + $0xf0] sm:$0xff]
        %v372 = vld [vmem:[%s298 + $0xf8] sm:$0xff]
        %v373 = vld [vmem:[#allocation7] sm:$0xff]
        %v374 = vld [vmem:[#allocation7 + $0x8] sm:$0xff]
        %v375 = vld [vmem:[#allocation7 + $0x10] sm:$0xff]
        %v376 = vld [vmem:[#allocation7 + $0x18] sm:$0xff]
        %v377 = vld [vmem:[%s2] sm:$0x1]
        %v379 = vlaneseq
        %v380 = vshrl.u32 %v379, 7
        %v381 = vsub.s32 0, %v380
        %v382 = vrot.slane %v377, %v381
        %vm384 = vcmask 261120
        %v386 = vsel %vm384, %v341, 0
        %v389 = vsel %vm384, %v342, 0
        %v392 = vsel %vm384, %v343, 0
        %v395 = vsel %vm384, %v344, 0
        %v398 = vsel %vm384, %v345, 0
        %v401 = vsel %vm384, %v346, 0
        %v404 = vsel %vm384, %v347, 0
        %v407 = vsel %vm384, %v348, 0
        %v410 = vsel %vm384, %v349, 0
        %v413 = vsel %vm384, %v350, 0
        %v416 = vsel %vm384, %v351, 0
        %v419 = vsel %vm384, %v352, 0
        %v422 = vsel %vm384, %v353, 0
        %v425 = vsel %vm384, %v354, 0
        %v428 = vsel %vm384, %v355, 0
        %v431 = vsel %vm384, %v356, 0
        %v434 = vsel %vm384, %v357, 0
        %v437 = vsel %vm384, %v358, 0
        %v440 = vsel %vm384, %v359, 0
        %v443 = vsel %vm384, %v360, 0
        %v446 = vsel %vm384, %v361, 0
        %v449 = vsel %vm384, %v362, 0
        %v452 = vsel %vm384, %v363, 0
        %v455 = vsel %vm384, %v364, 0
        %v458 = vsel %vm384, %v365, 0
        %v461 = vsel %vm384, %v366, 0
        %v464 = vsel %vm384, %v367, 0
        %v467 = vsel %vm384, %v368, 0
        %v470 = vsel %vm384, %v369, 0
        %v473 = vsel %vm384, %v370, 0
        %v476 = vsel %vm384, %v371, 0
        %v479 = vsel %vm384, %v372, 0
        %481 = vmatprep.subr.mxu0 0.0
        %482 = vmatpush1.msra.mxu0 %v373
        %483 = vmatprep.subr.mxu0 0.0
        %484 = vmatpush1.msra.mxu0 %v374
        %485 = vmatprep.subr.mxu0 0.0
        %486 = vmatpush1.msra.mxu0 %v375
        %487 = vmatprep.subr.mxu0 0.0
        %488 = vmatpush1.msra.mxu0 %v376
        %489 = vmatprep.subr.mxu0 0.0
        %490 = vmatpush1.msra.mxu0 0.0
        %491 = vmatprep.subr.mxu0 0.0
        %492 = vmatpush1.msra.mxu0 0.0
        %493 = vmatprep.subr.mxu0 0.0
        %494 = vmatpush1.msra.mxu0 0.0
        %495 = vmatprep.subr.mxu0 0.0
        %496 = vmatpush1.msra.mxu0 0.0
        %497 = vmatprep.subr.mxu0 0.0
        %498 = vmatpush1.msra.mxu0 0.0
        %499 = vmatprep.subr.mxu0 0.0
        %500 = vmatpush1.msra.mxu0 0.0
        %501 = vmatprep.subr.mxu0 0.0
        %502 = vmatpush1.msra.mxu0 0.0
        %503 = vmatprep.subr.mxu0 0.0
        %504 = vmatpush1.msra.mxu0 0.0
        %505 = vmatprep.subr.mxu0 0.0
        %506 = vmatpush1.msra.mxu0 0.0
        %507 = vmatprep.subr.mxu0 0.0
        %508 = vmatpush1.msra.mxu0 0.0
        %509 = vmatprep.subr.mxu0 0.0
        %510 = vmatpush1.msra.mxu0 0.0
        %511 = vmatprep.subr.mxu0 0.0
        %512 = vmatpush1.msra.mxu0 0.0
        %513 = vmatprep.subr.mxu0 0.0
        %514 = vmatpush1.msra.mxu0 0.0
        %515 = vmatprep.subr.mxu0 0.0
        %516 = vmatpush1.msra.mxu0 0.0
        %517 = vmatprep.subr.mxu0 0.0
        %518 = vmatpush1.msra.mxu0 0.0
        %519 = vmatprep.subr.mxu0 0.0
        %520 = vmatpush1.msra.mxu0 0.0
        %521 = vmatprep.subr.mxu0 0.0
        %522 = vmatpush1.msra.mxu0 0.0
        %523 = vmatprep.subr.mxu0 0.0
        %524 = vmatpush1.msra.mxu0 0.0
        %525 = vmatprep.subr.mxu0 0.0
        %526 = vmatpush1.msra.mxu0 0.0
        %527 = vmatprep.subr.mxu0 0.0
        %528 = vmatpush1.msra.mxu0 0.0
        %529 = vmatprep.subr.mxu0 0.0
        %530 = vmatpush1.msra.mxu0 0.0
        %531 = vmatprep.subr.mxu0 0.0
        %532 = vmatpush1.msra.mxu0 0.0
        %533 = vmatprep.subr.mxu0 0.0
        %534 = vmatpush1.msra.mxu0 0.0
        %535 = vmatprep.subr.mxu0 0.0
        %536 = vmatpush1.msra.mxu0 0.0
        %537 = vmatprep.subr.mxu0 0.0
        %538 = vmatpush1.msra.mxu0 0.0
        %539 = vmatprep.subr.mxu0 0.0
        %540 = vmatpush1.msra.mxu0 0.0
        %541 = vmatprep.subr.mxu0 0.0
        %542 = vmatpush1.msra.mxu0 0.0
        %543 = vmatprep.subr.mxu0 0.0
        %544 = vmatpush1.msra.mxu0 0.0
        %545 = vmatprep.mubr.f32.mxu0 0.0
        %546 = vmatmul.mubr.f32.gmra.mrb[0].mxu0 %v386
        %v547 = vpop.f32.mrb[0].mxu0
        %v548 = vadd.f32 %v382, %v547
        %v549 = vpop.f32.mrb[0].mxu0
        %550 = vmatprep.mubr.f32.mxu0 0.0
        %551 = vmatmul.mubr.f32.gmra.mrb[0].mxu0 %v389
        %v552 = vpop.f32.mrb[0].mxu0
        %v553 = vadd.f32 %v382, %v552
        %v554 = vpop.f32.mrb[0].mxu0
        %555 = vmatprep.mubr.f32.mxu0 0.0
        %556 = vmatmul.mubr.f32.gmra.mrb[0].mxu0 %v392
        %v557 = vpop.f32.mrb[0].mxu0
        %v558 = vadd.f32 %v382, %v557
        %v559 = vpop.f32.mrb[0].mxu0
        %560 = vmatprep.mubr.f32.mxu0 0.0
        %561 = vmatmul.mubr.f32.gmra.mrb[0].mxu0 %v395
        %v562 = vpop.f32.mrb[0].mxu0
        %v563 = vadd.f32 %v382, %v562
        %v564 = vpop.f32.mrb[0].mxu0
        %565 = vmatprep.mubr.f32.mxu0 0.0
        %566 = vmatmul.mubr.f32.gmra.mrb[0].mxu0 %v398
        %v567 = vpop.f32.mrb[0].mxu0
        %v568 = vadd.f32 %v382, %v567
        %v569 = vpop.f32.mrb[0].mxu0
        %570 = vmatprep.mubr.f32.mxu0 0.0
        %571 = vmatmul.mubr.f32.gmra.mrb[0].mxu0 %v401
        %v572 = vpop.f32.mrb[0].mxu0
        %v573 = vadd.f32 %v382, %v572
        %v574 = vpop.f32.mrb[0].mxu0
        %575 = vmatprep.mubr.f32.mxu0 0.0
        %576 = vmatmul.mubr.f32.gmra.mrb[0].mxu0 %v404
        %v577 = vpop.f32.mrb[0].mxu0
        %v578 = vadd.f32 %v382, %v577
        %v579 = vpop.f32.mrb[0].mxu0
        %580 = vmatprep.mubr.f32.mxu0 0.0
        %581 = vmatmul.mubr.f32.gmra.mrb[0].mxu0 %v407
        %v582 = vpop.f32.mrb[0].mxu0
        %v583 = vadd.f32 %v382, %v582
        %v584 = vpop.f32.mrb[0].mxu0
        %585 = vmatprep.mubr.f32.mxu0 0.0
        %586 = vmatmul.mubr.f32.gmra.mrb[0].mxu0 %v410
        %v587 = vpop.f32.mrb[0].mxu0
        %v588 = vadd.f32 %v382, %v587
        %v589 = vpop.f32.mrb[0].mxu0
        %590 = vmatprep.mubr.f32.mxu0 0.0
        %591 = vmatmul.mubr.f32.gmra.mrb[0].mxu0 %v413
        %v592 = vpop.f32.mrb[0].mxu0
        %v593 = vadd.f32 %v382, %v592
        %v594 = vpop.f32.mrb[0].mxu0
        %595 = vmatprep.mubr.f32.mxu0 0.0
        %596 = vmatmul.mubr.f32.gmra.mrb[0].mxu0 %v416
        %v597 = vpop.f32.mrb[0].mxu0
        %v598 = vadd.f32 %v382, %v597
        %v599 = vpop.f32.mrb[0].mxu0
        %600 = vmatprep.mubr.f32.mxu0 0.0
        %601 = vmatmul.mubr.f32.gmra.mrb[0].mxu0 %v419
        %v602 = vpop.f32.mrb[0].mxu0
        %v603 = vadd.f32 %v382, %v602
        %v604 = vpop.f32.mrb[0].mxu0
        %605 = vmatprep.mubr.f32.mxu0 0.0
        %606 = vmatmul.mubr.f32.gmra.mrb[0].mxu0 %v422
        %v607 = vpop.f32.mrb[0].mxu0
        %v608 = vadd.f32 %v382, %v607
        %v609 = vpop.f32.mrb[0].mxu0
        %610 = vmatprep.mubr.f32.mxu0 0.0
        %611 = vmatmul.mubr.f32.gmra.mrb[0].mxu0 %v425
        %v612 = vpop.f32.mrb[0].mxu0
        %v613 = vadd.f32 %v382, %v612
        %v614 = vpop.f32.mrb[0].mxu0
        %615 = vmatprep.mubr.f32.mxu0 0.0
        %616 = vmatmul.mubr.f32.gmra.mrb[0].mxu0 %v428
        %v617 = vpop.f32.mrb[0].mxu0
        %v618 = vadd.f32 %v382, %v617
        %v619 = vpop.f32.mrb[0].mxu0
        %620 = vmatprep.mubr.f32.mxu0 0.0
        %621 = vmatmul.mubr.f32.gmra.mrb[0].mxu0 %v431
        %v622 = vpop.f32.mrb[0].mxu0
        %v623 = vadd.f32 %v382, %v622
        %v624 = vpop.f32.mrb[0].mxu0
        %625 = vmatprep.mubr.f32.mxu0 0.0
        %626 = vmatmul.mubr.f32.gmra.mrb[0].mxu0 %v434
        %v627 = vpop.f32.mrb[0].mxu0
        %v628 = vadd.f32 %v382, %v627
        %v629 = vpop.f32.mrb[0].mxu0
        %630 = vmatprep.mubr.f32.mxu0 0.0
        %631 = vmatmul.mubr.f32.gmra.mrb[0].mxu0 %v437
        %v632 = vpop.f32.mrb[0].mxu0
        %v633 = vadd.f32 %v382, %v632
        %v634 = vpop.f32.mrb[0].mxu0
        %635 = vmatprep.mubr.f32.mxu0 0.0
        %636 = vmatmul.mubr.f32.gmra.mrb[0].mxu0 %v440
        %v637 = vpop.f32.mrb[0].mxu0
        %v638 = vadd.f32 %v382, %v637
        %v639 = vpop.f32.mrb[0].mxu0
        %640 = vmatprep.mubr.f32.mxu0 0.0
        %641 = vmatmul.mubr.f32.gmra.mrb[0].mxu0 %v443
        %v642 = vpop.f32.mrb[0].mxu0
        %v643 = vadd.f32 %v382, %v642
        %v644 = vpop.f32.mrb[0].mxu0
        %645 = vmatprep.mubr.f32.mxu0 0.0
        %646 = vmatmul.mubr.f32.gmra.mrb[0].mxu0 %v446
        %v647 = vpop.f32.mrb[0].mxu0
        %v648 = vadd.f32 %v382, %v647
        %v649 = vpop.f32.mrb[0].mxu0
        %650 = vmatprep.mubr.f32.mxu0 0.0
        %651 = vmatmul.mubr.f32.gmra.mrb[0].mxu0 %v449
        %v652 = vpop.f32.mrb[0].mxu0
        %v653 = vadd.f32 %v382, %v652
        %v654 = vpop.f32.mrb[0].mxu0
        %655 = vmatprep.mubr.f32.mxu0 0.0
        %656 = vmatmul.mubr.f32.gmra.mrb[0].mxu0 %v452
        %v657 = vpop.f32.mrb[0].mxu0
        %v658 = vadd.f32 %v382, %v657
        %v659 = vpop.f32.mrb[0].mxu0
        %660 = vmatprep.mubr.f32.mxu0 0.0
        %661 = vmatmul.mubr.f32.gmra.mrb[0].mxu0 %v455
        %v662 = vpop.f32.mrb[0].mxu0
        %v663 = vadd.f32 %v382, %v662
        %v664 = vpop.f32.mrb[0].mxu0
        %665 = vmatprep.mubr.f32.mxu0 0.0
        %666 = vmatmul.mubr.f32.gmra.mrb[0].mxu0 %v458
        %v667 = vpop.f32.mrb[0].mxu0
        %v668 = vadd.f32 %v382, %v667
        %v669 = vpop.f32.mrb[0].mxu0
        %670 = vmatprep.mubr.f32.mxu0 0.0
        %671 = vmatmul.mubr.f32.gmra.mrb[0].mxu0 %v461
        %v672 = vpop.f32.mrb[0].mxu0
        %v673 = vadd.f32 %v382, %v672
        %v674 = vpop.f32.mrb[0].mxu0
        %675 = vmatprep.mubr.f32.mxu0 0.0
        %676 = vmatmul.mubr.f32.gmra.mrb[0].mxu0 %v464
        %v677 = vpop.f32.mrb[0].mxu0
        %v678 = vadd.f32 %v382, %v677
        %v679 = vpop.f32.mrb[0].mxu0
        %680 = vmatprep.mubr.f32.mxu0 0.0
        %681 = vmatmul.mubr.f32.gmra.mrb[0].mxu0 %v467
        %v682 = vpop.f32.mrb[0].mxu0
        %v683 = vadd.f32 %v382, %v682
        %v684 = vpop.f32.mrb[0].mxu0
        %685 = vmatprep.mubr.f32.mxu0 0.0
        %686 = vmatmul.mubr.f32.gmra.mrb[0].mxu0 %v470
        %v687 = vpop.f32.mrb[0].mxu0
        %v688 = vadd.f32 %v382, %v687
        %v689 = vpop.f32.mrb[0].mxu0
        %690 = vmatprep.mubr.f32.mxu0 0.0
        %691 = vmatmul.mubr.f32.gmra.mrb[0].mxu0 %v473
        %v692 = vpop.f32.mrb[0].mxu0
        %v693 = vadd.f32 %v382, %v692
        %v694 = vpop.f32.mrb[0].mxu0
        %695 = vmatprep.mubr.f32.mxu0 0.0
        %696 = vmatmul.mubr.f32.gmra.mrb[0].mxu0 %v476
        %v697 = vpop.f32.mrb[0].mxu0
        %v698 = vadd.f32 %v382, %v697
        %v699 = vpop.f32.mrb[0].mxu0
        %700 = vmatprep.mubr.f32.mxu0 0.0
        %701 = vmatmul.mubr.f32.gmra.mrb[0].mxu0 %v479
        %v702 = vpop.f32.mrb[0].mxu0
        %v703 = vadd.f32 %v382, %v702
        %v704 = vpop.f32.mrb[0].mxu0
        %705 = vdwg.mxu0
        %v706 = vmax.f32 %v548, 0.0
        %v707 = vmax.f32 %v553, 0.0
        %v708 = vmax.f32 %v558, 0.0
        %v709 = vmax.f32 %v563, 0.0
        %v710 = vmax.f32 %v568, 0.0
        %v711 = vmax.f32 %v573, 0.0
        %v712 = vmax.f32 %v578, 0.0
        %v713 = vmax.f32 %v583, 0.0
        %v714 = vmax.f32 %v588, 0.0
        %v715 = vmax.f32 %v593, 0.0
        %v716 = vmax.f32 %v598, 0.0
        %v717 = vmax.f32 %v603, 0.0
        %v718 = vmax.f32 %v608, 0.0
        %v719 = vmax.f32 %v613, 0.0
        %v720 = vmax.f32 %v618, 0.0
        %v721 = vmax.f32 %v623, 0.0
        %v722 = vmax.f32 %v628, 0.0
        %v723 = vmax.f32 %v633, 0.0
        %v724 = vmax.f32 %v638, 0.0
        %v725 = vmax.f32 %v643, 0.0
        %v726 = vmax.f32 %v648, 0.0
        %v727 = vmax.f32 %v653, 0.0
        %v728 = vmax.f32 %v658, 0.0
        %v729 = vmax.f32 %v663, 0.0
        %v730 = vmax.f32 %v668, 0.0
        %v731 = vmax.f32 %v673, 0.0
        %v732 = vmax.f32 %v678, 0.0
        %v733 = vmax.f32 %v683, 0.0
        %v734 = vmax.f32 %v688, 0.0
        %v735 = vmax.f32 %v693, 0.0
        %v736 = vmax.f32 %v698, 0.0
        %v737 = vmax.f32 %v703, 0.0
        %738 = vst.msk [vmem:[#allocation2] sm:$0xff] %vm384, 0.0
        %739 = vst.msk [vmem:[#allocation2 + $0x8] sm:$0xff] %vm384, 0.0
        %vm740 = vcmask 254976
        %741 = vst.msk [vmem:[#allocation2 + $0x10] sm:$0x3] %vm740, 0.0
        %742 = vst.msk [vmem:[#allocation2 + $0x18] sm:$0xff] %vm384, 0.0
        %743 = vst.msk [vmem:[#allocation2 + $0x20] sm:$0xff] %vm384, 0.0
        %744 = vst.msk [vmem:[#allocation2 + $0x28] sm:$0x3] %vm740, 0.0
        %745 = vst.msk [vmem:[#allocation2 + $0x30] sm:$0xff] %vm384, 0.0
        %746 = vst.msk [vmem:[#allocation2 + $0x38] sm:$0xff] %vm384, 0.0
        %747 = vst.msk [vmem:[#allocation2 + $0x40] sm:$0x3] %vm740, 0.0
        %748 = vst.msk [vmem:[#allocation2 + $0x48] sm:$0xff] %vm384, 0.0
        %749 = vst.msk [vmem:[#allocation2 + $0x50] sm:$0xff] %vm384, 0.0
        %750 = vst.msk [vmem:[#allocation2 + $0x58] sm:$0x3] %vm740, 0.0
        %751 = vst.msk [vmem:[#allocation2 + $0x60] sm:$0xff] %vm384, 0.0
        %752 = vst.msk [vmem:[#allocation2 + $0x68] sm:$0xff] %vm384, 0.0
        %753 = vst.msk [vmem:[#allocation2 + $0x70] sm:$0x3] %vm740, 0.0
        %754 = vst.msk [vmem:[#allocation2 + $0x78] sm:$0xff] %vm384, 0.0
        %755 = vst.msk [vmem:[#allocation2 + $0x80] sm:$0xff] %vm384, 0.0
        %756 = vst.msk [vmem:[#allocation2 + $0x88] sm:$0x3] %vm740, 0.0
        %757 = vst.msk [vmem:[#allocation2 + $0x90] sm:$0xff] %vm384, 0.0
        %758 = vst.msk [vmem:[#allocation2 + $0x98] sm:$0xff] %vm384, 0.0
        %759 = vst.msk [vmem:[#allocation2 + $0xa0] sm:$0x3] %vm740, 0.0
        %760 = vst.msk [vmem:[#allocation2 + $0xa8] sm:$0xff] %vm384, 0.0
        %761 = vst.msk [vmem:[#allocation2 + $0xb0] sm:$0xff] %vm384, 0.0
        %762 = vst.msk [vmem:[#allocation2 + $0xb8] sm:$0x3] %vm740, 0.0
        %763 = vst.msk [vmem:[#allocation2 + $0xc0] sm:$0xff] %vm384, 0.0
        %764 = vst.msk [vmem:[#allocation2 + $0xc8] sm:$0xff] %vm384, 0.0
        %765 = vst.msk [vmem:[#allocation2 + $0xd0] sm:$0x3] %vm740, 0.0
        %766 = vst.msk [vmem:[#allocation2 + $0xd8] sm:$0xff] %vm384, 0.0
        %767 = vst.msk [vmem:[#allocation2 + $0xe0] sm:$0xff] %vm384, 0.0
        %768 = vst.msk [vmem:[#allocation2 + $0xe8] sm:$0x3] %vm740, 0.0
        %769 = vst.msk [vmem:[#allocation2 + $0xf0] sm:$0xff] %vm384, 0.0
        %770 = vst.msk [vmem:[#allocation2 + $0xf8] sm:$0xff] %vm384, 0.0
        %771 = vst.msk [vmem:[#allocation2 + $0x100] sm:$0x3] %vm740, 0.0
        %772 = vst.msk [vmem:[#allocation2 + $0x108] sm:$0xff] %vm384, 0.0
        %773 = vst.msk [vmem:[#allocation2 + $0x110] sm:$0xff] %vm384, 0.0
        %774 = vst.msk [vmem:[#allocation2 + $0x118] sm:$0x3] %vm740, 0.0
        %775 = vst.msk [vmem:[#allocation2 + $0x120] sm:$0xff] %vm384, 0.0
        %776 = vst.msk [vmem:[#allocation2 + $0x128] sm:$0xff] %vm384, 0.0
        %777 = vst.msk [vmem:[#allocation2 + $0x130] sm:$0x3] %vm740, 0.0
        %778 = vst.msk [vmem:[#allocation2 + $0x138] sm:$0xff] %vm384, 0.0
        %779 = vst.msk [vmem:[#allocation2 + $0x140] sm:$0xff] %vm384, 0.0
        %780 = vst.msk [vmem:[#allocation2 + $0x148] sm:$0x3] %vm740, 0.0
        %781 = vst.msk [vmem:[#allocation2 + $0x150] sm:$0xff] %vm384, 0.0
        %782 = vst.msk [vmem:[#allocation2 + $0x158] sm:$0xff] %vm384, 0.0
        %783 = vst.msk [vmem:[#allocation2 + $0x160] sm:$0x3] %vm740, 0.0
        %784 = vst.msk [vmem:[#allocation2 + $0x168] sm:$0xff] %vm384, 0.0
        %785 = vst.msk [vmem:[#allocation2 + $0x170] sm:$0xff] %vm384, 0.0
        %786 = vst.msk [vmem:[#allocation2 + $0x178] sm:$0x3] %vm740, 0.0
        %787 = vst.msk [vmem:[#allocation2 + $0x180] sm:$0xff] %vm384, 0.0
        %788 = vst.msk [vmem:[#allocation2 + $0x188] sm:$0xff] %vm384, 0.0
        %789 = vst.msk [vmem:[#allocation2 + $0x190] sm:$0x3] %vm740, 0.0
        %790 = vst.msk [vmem:[#allocation2 + $0x198] sm:$0xff] %vm384, 0.0
        %791 = vst.msk [vmem:[#allocation2 + $0x1a0] sm:$0xff] %vm384, 0.0
        %792 = vst.msk [vmem:[#allocation2 + $0x1a8] sm:$0x3] %vm740, 0.0
        %s793 = scalar_lea.vmem [#allocation2], 24
        %794 = vst.msk [vmem:[%s793 + $0x1] sm:$0xff] %vm384, %v706
        %795 = vst.msk [vmem:[%s793 + $0x9] sm:$0xff] %vm384, %v707
        %796 = vst.msk [vmem:[%s793 + $0x19] sm:$0xff] %vm384, %v708
        %797 = vst.msk [vmem:[%s793 + $0x21] sm:$0xff] %vm384, %v709
        %798 = vst.msk [vmem:[%s793 + $0x31] sm:$0xff] %vm384, %v710
        %799 = vst.msk [vmem:[%s793 + $0x39] sm:$0xff] %vm384, %v711
        %800 = vst.msk [vmem:[%s793 + $0x49] sm:$0xff] %vm384, %v712
        %801 = vst.msk [vmem:[%s793 + $0x51] sm:$0xff] %vm384, %v713
        %802 = vst.msk [vmem:[%s793 + $0x61] sm:$0xff] %vm384, %v714
        %803 = vst.msk [vmem:[%s793 + $0x69] sm:$0xff] %vm384, %v715
        %804 = vst.msk [vmem:[%s793 + $0x79] sm:$0xff] %vm384, %v716
        %805 = vst.msk [vmem:[%s793 + $0x81] sm:$0xff] %vm384, %v717
        %806 = vst.msk [vmem:[%s793 + $0x91] sm:$0xff] %vm384, %v718
        %807 = vst.msk [vmem:[%s793 + $0x99] sm:$0xff] %vm384, %v719
        %808 = vst.msk [vmem:[%s793 + $0xa9] sm:$0xff] %vm384, %v720
        %809 = vst.msk [vmem:[%s793 + $0xb1] sm:$0xff] %vm384, %v721
        %810 = vst.msk [vmem:[%s793 + $0xc1] sm:$0xff] %vm384, %v722
        %811 = vst.msk [vmem:[%s793 + $0xc9] sm:$0xff] %vm384, %v723
        %812 = vst.msk [vmem:[%s793 + $0xd9] sm:$0xff] %vm384, %v724
        %813 = vst.msk [vmem:[%s793 + $0xe1] sm:$0xff] %vm384, %v725
        %814 = vst.msk [vmem:[%s793 + $0xf1] sm:$0xff] %vm384, %v726
        %815 = vst.msk [vmem:[%s793 + $0xf9] sm:$0xff] %vm384, %v727
        %816 = vst.msk [vmem:[%s793 + $0x109] sm:$0xff] %vm384, %v728
        %817 = vst.msk [vmem:[%s793 + $0x111] sm:$0xff] %vm384, %v729
        %818 = vst.msk [vmem:[%s793 + $0x121] sm:$0xff] %vm384, %v730
        %819 = vst.msk [vmem:[%s793 + $0x129] sm:$0xff] %vm384, %v731
        %820 = vst.msk [vmem:[%s793 + $0x139] sm:$0xff] %vm384, %v732
        %821 = vst.msk [vmem:[%s793 + $0x141] sm:$0xff] %vm384, %v733
        %822 = vst.msk [vmem:[%s793 + $0x151] sm:$0xff] %vm384, %v734
        %823 = vst.msk [vmem:[%s793 + $0x159] sm:$0xff] %vm384, %v735
        %824 = vst.msk [vmem:[%s793 + $0x169] sm:$0xff] %vm384, %v736
        %825 = vst.msk [vmem:[%s793 + $0x171] sm:$0xff] %vm384, %v737
        %v826 = vld [vmem:[#allocation2] sm:$0xff]
        %v827 = vld [vmem:[#allocation2 + $0x8] sm:$0xff]
        %v828 = vld [vmem:[#allocation2 + $0x18] sm:$0xff]
        %v829 = vld [vmem:[#allocation2 + $0x20] sm:$0xff]
        %v830 = vld [vmem:[#allocation2 + $0x30] sm:$0xff]
        %v831 = vld [vmem:[#allocation2 + $0x38] sm:$0xff]
        %v832 = vld [vmem:[#allocation2 + $0x48] sm:$0xff]
        %v833 = vld [vmem:[#allocation2 + $0x50] sm:$0xff]
        %v834 = vld [vmem:[#allocation2 + $0x60] sm:$0xff]
        %v835 = vld [vmem:[#allocation2 + $0x68] sm:$0xff]
        %v836 = vld [vmem:[#allocation2 + $0x78] sm:$0xff]
        %v837 = vld [vmem:[#allocation2 + $0x80] sm:$0xff]
        %v838 = vld [vmem:[#allocation2 + $0x90] sm:$0xff]
        %v839 = vld [vmem:[#allocation2 + $0x98] sm:$0xff]
        %v840 = vld [vmem:[#allocation2 + $0xa8] sm:$0xff]
        %v841 = vld [vmem:[#allocation2 + $0xb0] sm:$0xff]
        %v842 = vld [vmem:[#allocation2 + $0xc0] sm:$0xff]
        %v843 = vld [vmem:[#allocation2 + $0xc8] sm:$0xff]
        %v844 = vld [vmem:[#allocation2 + $0xd8] sm:$0xff]
        %v845 = vld [vmem:[#allocation2 + $0xe0] sm:$0xff]
        %v846 = vld [vmem:[#allocation2 + $0xf0] sm:$0xff]
        %v847 = vld [vmem:[#allocation2 + $0xf8] sm:$0xff]
        %v848 = vld [vmem:[#allocation2 + $0x108] sm:$0xff]
        %v849 = vld [vmem:[#allocation2 + $0x110] sm:$0xff]
        %v850 = vld [vmem:[#allocation2 + $0x120] sm:$0xff]
        %v851 = vld [vmem:[#allocation2 + $0x128] sm:$0xff]
        %v852 = vld [vmem:[#allocation2 + $0x138] sm:$0xff]
        %v853 = vld [vmem:[#allocation2 + $0x140] sm:$0xff]
        %v854 = vld [vmem:[#allocation2 + $0x150] sm:$0xff]
        %v855 = vld [vmem:[#allocation2 + $0x158] sm:$0xff]
        %v856 = vld [vmem:[#allocation2 + $0x168] sm:$0xff]
        %v857 = vld [vmem:[#allocation2 + $0x170] sm:$0xff]
        %v858 = vld [vmem:[#allocation2 + $0x1] sm:$0xff]
        %v859 = vld [vmem:[#allocation2 + $0x9] sm:$0xff]
        %v860 = vld [vmem:[#allocation2 + $0x19] sm:$0xff]
        %v861 = vld [vmem:[#allocation2 + $0x21] sm:$0xff]
        %v862 = vld [vmem:[#allocation2 + $0x31] sm:$0xff]
        %v863 = vld [vmem:[#allocation2 + $0x39] sm:$0xff]
        %v864 = vld [vmem:[#allocation2 + $0x49] sm:$0xff]
        %v865 = vld [vmem:[#allocation2 + $0x51] sm:$0xff]
        %v866 = vld [vmem:[#allocation2 + $0x61] sm:$0xff]
        %v867 = vld [vmem:[#allocation2 + $0x69] sm:$0xff]
        %v868 = vld [vmem:[#allocation2 + $0x79] sm:$0xff]
        %v869 = vld [vmem:[#allocation2 + $0x81] sm:$0xff]
        %v870 = vld [vmem:[#allocation2 + $0x91] sm:$0xff]
        %v871 = vld [vmem:[#allocation2 + $0x99] sm:$0xff]
        %v872 = vld [vmem:[#allocation2 + $0xa9] sm:$0xff]
        %v873 = vld [vmem:[#allocation2 + $0xb1] sm:$0xff]
        %v874 = vld [vmem:[#allocation2 + $0xc1] sm:$0xff]
        %v875 = vld [vmem:[#allocation2 + $0xc9] sm:$0xff]
        %v876 = vld [vmem:[#allocation2 + $0xd9] sm:$0xff]
        %v877 = vld [vmem:[#allocation2 + $0xe1] sm:$0xff]
        %v878 = vld [vmem:[#allocation2 + $0xf1] sm:$0xff]
        %v879 = vld [vmem:[#allocation2 + $0xf9] sm:$0xff]
        %v880 = vld [vmem:[#allocation2 + $0x109] sm:$0xff]
        %v881 = vld [vmem:[#allocation2 + $0x111] sm:$0xff]
        %v882 = vld [vmem:[#allocation2 + $0x121] sm:$0xff]
        %v883 = vld [vmem:[#allocation2 + $0x129] sm:$0xff]
        %v884 = vld [vmem:[#allocation2 + $0x139] sm:$0xff]
        %v885 = vld [vmem:[#allocation2 + $0x141] sm:$0xff]
        %v886 = vld [vmem:[#allocation2 + $0x151] sm:$0xff]
        %v887 = vld [vmem:[#allocation2 + $0x159] sm:$0xff]
        %v888 = vld [vmem:[#allocation2 + $0x169] sm:$0xff]
        %v889 = vld [vmem:[#allocation2 + $0x171] sm:$0xff]
        %v890 = vld [vmem:[#allocation2 + $0x2] sm:$0xff]
        %v891 = vld [vmem:[#allocation2 + $0xa] sm:$0xff]
        %v892 = vld [vmem:[#allocation2 + $0x1a] sm:$0xff]
        %v893 = vld [vmem:[#allocation2 + $0x22] sm:$0xff]
        %v894 = vld [vmem:[#allocation2 + $0x32] sm:$0xff]
        %v895 = vld [vmem:[#allocation2 + $0x3a] sm:$0xff]
        %v896 = vld [vmem:[#allocation2 + $0x4a] sm:$0xff]
        %v897 = vld [vmem:[#allocation2 + $0x52] sm:$0xff]
        %v898 = vld [vmem:[#allocation2 + $0x62] sm:$0xff]
        %v899 = vld [vmem:[#allocation2 + $0x6a] sm:$0xff]
        %v900 = vld [vmem:[#allocation2 + $0x7a] sm:$0xff]
        %v901 = vld [vmem:[#allocation2 + $0x82] sm:$0xff]
        %v902 = vld [vmem:[#allocation2 + $0x92] sm:$0xff]
        %v903 = vld [vmem:[#allocation2 + $0x9a] sm:$0xff]
        %v904 = vld [vmem:[#allocation2 + $0xaa] sm:$0xff]
        %v905 = vld [vmem:[#allocation2 + $0xb2] sm:$0xff]
        %v906 = vld [vmem:[#allocation2 + $0xc2] sm:$0xff]
        %v907 = vld [vmem:[#allocation2 + $0xca] sm:$0xff]
        %v908 = vld [vmem:[#allocation2 + $0xda] sm:$0xff]
        %v909 = vld [vmem:[#allocation2 + $0xe2] sm:$0xff]
        %v910 = vld [vmem:[#allocation2 + $0xf2] sm:$0xff]
        %v911 = vld [vmem:[#allocation2 + $0xfa] sm:$0xff]
        %v912 = vld [vmem:[#allocation2 + $0x10a] sm:$0xff]
        %v913 = vld [vmem:[#allocation2 + $0x112] sm:$0xff]
        %v914 = vld [vmem:[#allocation2 + $0x122] sm:$0xff]
        %v915 = vld [vmem:[#allocation2 + $0x12a] sm:$0xff]
        %v916 = vld [vmem:[#allocation2 + $0x13a] sm:$0xff]
        %v917 = vld [vmem:[#allocation2 + $0x142] sm:$0xff]
        %v918 = vld [vmem:[#allocation2 + $0x152] sm:$0xff]
        %v919 = vld [vmem:[#allocation2 + $0x15a] sm:$0xff]
        %v920 = vld [vmem:[#allocation2 + $0x16a] sm:$0xff]
        %v921 = vld [vmem:[#allocation2 + $0x172] sm:$0xff]
        %v922 = vld [vmem:[%s793] sm:$0xff]
        %v923 = vld [vmem:[%s793 + $0x8] sm:$0xff]
        %v924 = vld [vmem:[%s793 + $0x18] sm:$0xff]
        %v925 = vld [vmem:[%s793 + $0x20] sm:$0xff]
        %v926 = vld [vmem:[%s793 + $0x30] sm:$0xff]
        %v927 = vld [vmem:[%s793 + $0x38] sm:$0xff]
        %v928 = vld [vmem:[%s793 + $0x48] sm:$0xff]
        %v929 = vld [vmem:[%s793 + $0x50] sm:$0xff]
        %v930 = vld [vmem:[%s793 + $0x60] sm:$0xff]
        %v931 = vld [vmem:[%s793 + $0x68] sm:$0xff]
        %v932 = vld [vmem:[%s793 + $0x78] sm:$0xff]
        %v933 = vld [vmem:[%s793 + $0x80] sm:$0xff]
        %v934 = vld [vmem:[%s793 + $0x90] sm:$0xff]
        %v935 = vld [vmem:[%s793 + $0x98] sm:$0xff]
        %v936 = vld [vmem:[%s793 + $0xa8] sm:$0xff]
        %v937 = vld [vmem:[%s793 + $0xb0] sm:$0xff]
        %v938 = vld [vmem:[%s793 + $0xc0] sm:$0xff]
        %v939 = vld [vmem:[%s793 + $0xc8] sm:$0xff]
        %v940 = vld [vmem:[%s793 + $0xd8] sm:$0xff]
        %v941 = vld [vmem:[%s793 + $0xe0] sm:$0xff]
        %v942 = vld [vmem:[%s793 + $0xf0] sm:$0xff]
        %v943 = vld [vmem:[%s793 + $0xf8] sm:$0xff]
        %v944 = vld [vmem:[%s793 + $0x108] sm:$0xff]
        %v945 = vld [vmem:[%s793 + $0x110] sm:$0xff]
        %v946 = vld [vmem:[%s793 + $0x120] sm:$0xff]
        %v947 = vld [vmem:[%s793 + $0x128] sm:$0xff]
        %v948 = vld [vmem:[%s793 + $0x138] sm:$0xff]
        %v949 = vld [vmem:[%s793 + $0x140] sm:$0xff]
        %v950 = vld [vmem:[%s793 + $0x150] sm:$0xff]
        %v951 = vld [vmem:[%s793 + $0x158] sm:$0xff]
        %v952 = vld [vmem:[%s793 + $0x168] sm:$0xff]
        %v953 = vld [vmem:[%s793 + $0x170] sm:$0xff]
        %v954 = vld [vmem:[%s793 + $0x1] sm:$0xff]
        %v955 = vld [vmem:[%s793 + $0x9] sm:$0xff]
        %v956 = vld [vmem:[%s793 + $0x19] sm:$0xff]
        %v957 = vld [vmem:[%s793 + $0x21] sm:$0xff]
        %v958 = vld [vmem:[%s793 + $0x31] sm:$0xff]
        %v959 = vld [vmem:[%s793 + $0x39] sm:$0xff]
        %v960 = vld [vmem:[%s793 + $0x49] sm:$0xff]
        %v961 = vld [vmem:[%s793 + $0x51] sm:$0xff]
        %v962 = vld [vmem:[%s793 + $0x61] sm:$0xff]
        %v963 = vld [vmem:[%s793 + $0x69] sm:$0xff]
        %v964 = vld [vmem:[%s793 + $0x79] sm:$0xff]
        %v965 = vld [vmem:[%s793 + $0x81] sm:$0xff]
        %v966 = vld [vmem:[%s793 + $0x91] sm:$0xff]
        %v967 = vld [vmem:[%s793 + $0x99] sm:$0xff]
        %v968 = vld [vmem:[%s793 + $0xa9] sm:$0xff]
        %v969 = vld [vmem:[%s793 + $0xb1] sm:$0xff]
        %v970 = vld [vmem:[%s793 + $0xc1] sm:$0xff]
        %v971 = vld [vmem:[%s793 + $0xc9] sm:$0xff]
        %v972 = vld [vmem:[%s793 + $0xd9] sm:$0xff]
        %v973 = vld [vmem:[%s793 + $0xe1] sm:$0xff]
        %v974 = vld [vmem:[%s793 + $0xf1] sm:$0xff]
        %v975 = vld [vmem:[%s793 + $0xf9] sm:$0xff]
        %v976 = vld [vmem:[%s793 + $0x109] sm:$0xff]
        %v977 = vld [vmem:[%s793 + $0x111] sm:$0xff]
        %v978 = vld [vmem:[%s793 + $0x121] sm:$0xff]
        %v979 = vld [vmem:[%s793 + $0x129] sm:$0xff]
        %v980 = vld [vmem:[%s793 + $0x139] sm:$0xff]
        %v981 = vld [vmem:[%s793 + $0x141] sm:$0xff]
        %v982 = vld [vmem:[%s793 + $0x151] sm:$0xff]
        %v983 = vld [vmem:[%s793 + $0x159] sm:$0xff]
        %v984 = vld [vmem:[%s793 + $0x169] sm:$0xff]
        %v985 = vld [vmem:[%s793 + $0x171] sm:$0xff]
        %v986 = vld [vmem:[%s793 + $0x2] sm:$0xff]
        %v987 = vld [vmem:[%s793 + $0xa] sm:$0xff]
        %v988 = vld [vmem:[%s793 + $0x1a] sm:$0xff]
        %v989 = vld [vmem:[%s793 + $0x22] sm:$0xff]
        %v990 = vld [vmem:[%s793 + $0x32] sm:$0xff]
        %v991 = vld [vmem:[%s793 + $0x3a] sm:$0xff]
        %v992 = vld [vmem:[%s793 + $0x4a] sm:$0xff]
        %v993 = vld [vmem:[%s793 + $0x52] sm:$0xff]
        %v994 = vld [vmem:[%s793 + $0x62] sm:$0xff]
        %v995 = vld [vmem:[%s793 + $0x6a] sm:$0xff]
        %v996 = vld [vmem:[%s793 + $0x7a] sm:$0xff]
        %v997 = vld [vmem:[%s793 + $0x82] sm:$0xff]
        %v998 = vld [vmem:[%s793 + $0x92] sm:$0xff]
        %v999 = vld [vmem:[%s793 + $0x9a] sm:$0xff]
        %v1000 = vld [vmem:[%s793 + $0xaa] sm:$0xff]
        %v1001 = vld [vmem:[%s793 + $0xb2] sm:$0xff]
        %v1002 = vld [vmem:[%s793 + $0xc2] sm:$0xff]
        %v1003 = vld [vmem:[%s793 + $0xca] sm:$0xff]
        %v1004 = vld [vmem:[%s793 + $0xda] sm:$0xff]
        %v1005 = vld [vmem:[%s793 + $0xe2] sm:$0xff]
        %v1006 = vld [vmem:[%s793 + $0xf2] sm:$0xff]
        %v1007 = vld [vmem:[%s793 + $0xfa] sm:$0xff]
        %v1008 = vld [vmem:[%s793 + $0x10a] sm:$0xff]
        %v1009 = vld [vmem:[%s793 + $0x112] sm:$0xff]
        %v1010 = vld [vmem:[%s793 + $0x122] sm:$0xff]
        %v1011 = vld [vmem:[%s793 + $0x12a] sm:$0xff]
        %v1012 = vld [vmem:[%s793 + $0x13a] sm:$0xff]
        %v1013 = vld [vmem:[%s793 + $0x142] sm:$0xff]
        %v1014 = vld [vmem:[%s793 + $0x152] sm:$0xff]
        %v1015 = vld [vmem:[%s793 + $0x15a] sm:$0xff]
        %v1016 = vld [vmem:[%s793 + $0x16a] sm:$0xff]
        %v1017 = vld [vmem:[%s793 + $0x172] sm:$0xff]
        %s1018 = scalar_lea.vmem [#allocation2], 48
        %v1019 = vld [vmem:[%s1018] sm:$0xff]
        %v1020 = vld [vmem:[%s1018 + $0x8] sm:$0xff]
        %v1021 = vld [vmem:[%s1018 + $0x18] sm:$0xff]
        %v1022 = vld [vmem:[%s1018 + $0x20] sm:$0xff]
        %v1023 = vld [vmem:[%s1018 + $0x30] sm:$0xff]
        %v1024 = vld [vmem:[%s1018 + $0x38] sm:$0xff]
        %v1025 = vld [vmem:[%s1018 + $0x48] sm:$0xff]
        %v1026 = vld [vmem:[%s1018 + $0x50] sm:$0xff]
        %v1027 = vld [vmem:[%s1018 + $0x60] sm:$0xff]
        %v1028 = vld [vmem:[%s1018 + $0x68] sm:$0xff]
        %v1029 = vld [vmem:[%s1018 + $0x78] sm:$0xff]
        %v1030 = vld [vmem:[%s1018 + $0x80] sm:$0xff]
        %v1031 = vld [vmem:[%s1018 + $0x90] sm:$0xff]
        %v1032 = vld [vmem:[%s1018 + $0x98] sm:$0xff]
        %v1033 = vld [vmem:[%s1018 + $0xa8] sm:$0xff]
        %v1034 = vld [vmem:[%s1018 + $0xb0] sm:$0xff]
        %v1035 = vld [vmem:[%s1018 + $0xc0] sm:$0xff]
        %v1036 = vld [vmem:[%s1018 + $0xc8] sm:$0xff]
        %v1037 = vld [vmem:[%s1018 + $0xd8] sm:$0xff]
        %v1038 = vld [vmem:[%s1018 + $0xe0] sm:$0xff]
        %v1039 = vld [vmem:[%s1018 + $0xf0] sm:$0xff]
        %v1040 = vld [vmem:[%s1018 + $0xf8] sm:$0xff]
        %v1041 = vld [vmem:[%s1018 + $0x108] sm:$0xff]
        %v1042 = vld [vmem:[%s1018 + $0x110] sm:$0xff]
        %v1043 = vld [vmem:[%s1018 + $0x120] sm:$0xff]
        %v1044 = vld [vmem:[%s1018 + $0x128] sm:$0xff]
        %v1045 = vld [vmem:[%s1018 + $0x138] sm:$0xff]
        %v1046 = vld [vmem:[%s1018 + $0x140] sm:$0xff]
        %v1047 = vld [vmem:[%s1018 + $0x150] sm:$0xff]
        %v1048 = vld [vmem:[%s1018 + $0x158] sm:$0xff]
        %v1049 = vld [vmem:[%s1018 + $0x168] sm:$0xff]
        %v1050 = vld [vmem:[%s1018 + $0x170] sm:$0xff]
        %v1051 = vld [vmem:[%s1018 + $0x1] sm:$0xff]
        %v1052 = vld [vmem:[%s1018 + $0x9] sm:$0xff]
        %v1053 = vld [vmem:[%s1018 + $0x19] sm:$0xff]
        %v1054 = vld [vmem:[%s1018 + $0x21] sm:$0xff]
        %v1055 = vld [vmem:[%s1018 + $0x31] sm:$0xff]
        %v1056 = vld [vmem:[%s1018 + $0x39] sm:$0xff]
        %v1057 = vld [vmem:[%s1018 + $0x49] sm:$0xff]
        %v1058 = vld [vmem:[%s1018 + $0x51] sm:$0xff]
        %v1059 = vld [vmem:[%s1018 + $0x61] sm:$0xff]
        %v1060 = vld [vmem:[%s1018 + $0x69] sm:$0xff]
        %v1061 = vld [vmem:[%s1018 + $0x79] sm:$0xff]
        %v1062 = vld [vmem:[%s1018 + $0x81] sm:$0xff]
        %v1063 = vld [vmem:[%s1018 + $0x91] sm:$0xff]
        %v1064 = vld [vmem:[%s1018 + $0x99] sm:$0xff]
        %v1065 = vld [vmem:[%s1018 + $0xa9] sm:$0xff]
        %v1066 = vld [vmem:[%s1018 + $0xb1] sm:$0xff]
        %v1067 = vld [vmem:[%s1018 + $0xc1] sm:$0xff]
        %v1068 = vld [vmem:[%s1018 + $0xc9] sm:$0xff]
        %v1069 = vld [vmem:[%s1018 + $0xd9] sm:$0xff]
        %v1070 = vld [vmem:[%s1018 + $0xe1] sm:$0xff]
        %v1071 = vld [vmem:[%s1018 + $0xf1] sm:$0xff]
        %v1072 = vld [vmem:[%s1018 + $0xf9] sm:$0xff]
        %v1073 = vld [vmem:[%s1018 + $0x109] sm:$0xff]
        %v1074 = vld [vmem:[%s1018 + $0x111] sm:$0xff]
        %v1075 = vld [vmem:[%s1018 + $0x121] sm:$0xff]
        %v1076 = vld [vmem:[%s1018 + $0x129] sm:$0xff]
        %v1077 = vld [vmem:[%s1018 + $0x139] sm:$0xff]
        %v1078 = vld [vmem:[%s1018 + $0x141] sm:$0xff]
        %v1079 = vld [vmem:[%s1018 + $0x151] sm:$0xff]
        %v1080 = vld [vmem:[%s1018 + $0x159] sm:$0xff]
        %v1081 = vld [vmem:[%s1018 + $0x169] sm:$0xff]
        %v1082 = vld [vmem:[%s1018 + $0x171] sm:$0xff]
        %v1083 = vld [vmem:[%s1018 + $0x2] sm:$0xff]
        %v1084 = vld [vmem:[%s1018 + $0xa] sm:$0xff]
        %v1085 = vld [vmem:[%s1018 + $0x1a] sm:$0xff]
        %v1086 = vld [vmem:[%s1018 + $0x22] sm:$0xff]
        %v1087 = vld [vmem:[%s1018 + $0x32] sm:$0xff]
        %v1088 = vld [vmem:[%s1018 + $0x3a] sm:$0xff]
        %v1089 = vld [vmem:[%s1018 + $0x4a] sm:$0xff]
        %v1090 = vld [vmem:[%s1018 + $0x52] sm:$0xff]
        %v1091 = vld [vmem:[%s1018 + $0x62] sm:$0xff]
        %v1092 = vld [vmem:[%s1018 + $0x6a] sm:$0xff]
        %v1093 = vld [vmem:[%s1018 + $0x7a] sm:$0xff]
        %v1094 = vld [vmem:[%s1018 + $0x82] sm:$0xff]
        %v1095 = vld [vmem:[%s1018 + $0x92] sm:$0xff]
        %v1096 = vld [vmem:[%s1018 + $0x9a] sm:$0xff]
        %v1097 = vld [vmem:[%s1018 + $0xaa] sm:$0xff]
        %v1098 = vld [vmem:[%s1018 + $0xb2] sm:$0xff]
        %v1099 = vld [vmem:[%s1018 + $0xc2] sm:$0xff]
        %v1100 = vld [vmem:[%s1018 + $0xca] sm:$0xff]
        %v1101 = vld [vmem:[%s1018 + $0xda] sm:$0xff]
        %v1102 = vld [vmem:[%s1018 + $0xe2] sm:$0xff]
        %v1103 = vld [vmem:[%s1018 + $0xf2] sm:$0xff]
        %v1104 = vld [vmem:[%s1018 + $0xfa] sm:$0xff]
        %v1105 = vld [vmem:[%s1018 + $0x10a] sm:$0xff]
        %v1106 = vld [vmem:[%s1018 + $0x112] sm:$0xff]
        %v1107 = vld [vmem:[%s1018 + $0x122] sm:$0xff]
        %v1108 = vld [vmem:[%s1018 + $0x12a] sm:$0xff]
        %v1109 = vld [vmem:[%s1018 + $0x13a] sm:$0xff]
        %v1110 = vld [vmem:[%s1018 + $0x142] sm:$0xff]
        %v1111 = vld [vmem:[%s1018 + $0x152] sm:$0xff]
        %v1112 = vld [vmem:[%s1018 + $0x15a] sm:$0xff]
        %v1113 = vld [vmem:[%s1018 + $0x16a] sm:$0xff]
        %v1114 = vld [vmem:[%s1018 + $0x172] sm:$0xff]
        %1147 = vrot.lane.b32.xlu0 %v858, 32
        %v1148 = vpop.permute.xlu0 %1147
        %1149 = vrot.lane.b32.xlu0 %v859, 32
        %v1150 = vpop.permute.xlu0 %1149
        %1151 = vrot.lane.b32.xlu0 %v860, 32
        %v1152 = vpop.permute.xlu0 %1151
        %1153 = vrot.lane.b32.xlu0 %v861, 32
        %v1154 = vpop.permute.xlu0 %1153
        %1155 = vrot.lane.b32.xlu0 %v862, 32
        %v1156 = vpop.permute.xlu0 %1155
        %1157 = vrot.lane.b32.xlu0 %v863, 32
        %v1158 = vpop.permute.xlu0 %1157
        %1159 = vrot.lane.b32.xlu0 %v864, 32
        %v1160 = vpop.permute.xlu0 %1159
        %1161 = vrot.lane.b32.xlu0 %v865, 32
        %v1162 = vpop.permute.xlu0 %1161
        %1163 = vrot.lane.b32.xlu0 %v866, 32
        %v1164 = vpop.permute.xlu0 %1163
        %1165 = vrot.lane.b32.xlu0 %v867, 32
        %v1166 = vpop.permute.xlu0 %1165
        %1167 = vrot.lane.b32.xlu0 %v868, 32
        %v1168 = vpop.permute.xlu0 %1167
        %1169 = vrot.lane.b32.xlu0 %v869, 32
        %v1170 = vpop.permute.xlu0 %1169
        %1171 = vrot.lane.b32.xlu0 %v870, 32
        %v1172 = vpop.permute.xlu0 %1171
        %1173 = vrot.lane.b32.xlu0 %v871, 32
        %v1174 = vpop.permute.xlu0 %1173
        %1175 = vrot.lane.b32.xlu0 %v872, 32
        %v1176 = vpop.permute.xlu0 %1175
        %1177 = vrot.lane.b32.xlu0 %v873, 32
        %v1178 = vpop.permute.xlu0 %1177
        %1179 = vrot.lane.b32.xlu0 %v874, 32
        %v1180 = vpop.permute.xlu0 %1179
        %1181 = vrot.lane.b32.xlu0 %v875, 32
        %v1182 = vpop.permute.xlu0 %1181
        %1183 = vrot.lane.b32.xlu0 %v876, 32
        %v1184 = vpop.permute.xlu0 %1183
        %1185 = vrot.lane.b32.xlu0 %v877, 32
        %v1186 = vpop.permute.xlu0 %1185
        %1187 = vrot.lane.b32.xlu0 %v878, 32
        %v1188 = vpop.permute.xlu0 %1187
        %1189 = vrot.lane.b32.xlu0 %v879, 32
        %v1190 = vpop.permute.xlu0 %1189
        %1191 = vrot.lane.b32.xlu0 %v880, 32
        %v1192 = vpop.permute.xlu0 %1191
        %1193 = vrot.lane.b32.xlu0 %v881, 32
        %v1194 = vpop.permute.xlu0 %1193
        %1195 = vrot.lane.b32.xlu0 %v882, 32
        %v1196 = vpop.permute.xlu0 %1195
        %1197 = vrot.lane.b32.xlu0 %v883, 32
        %v1198 = vpop.permute.xlu0 %1197
        %1199 = vrot.lane.b32.xlu0 %v884, 32
        %v1200 = vpop.permute.xlu0 %1199
        %1201 = vrot.lane.b32.xlu0 %v885, 32
        %v1202 = vpop.permute.xlu0 %1201
        %1203 = vrot.lane.b32.xlu0 %v886, 32
        %v1204 = vpop.permute.xlu0 %1203
        %1205 = vrot.lane.b32.xlu0 %v887, 32
        %v1206 = vpop.permute.xlu0 %1205
        %1207 = vrot.lane.b32.xlu0 %v888, 32
        %v1208 = vpop.permute.xlu0 %1207
        %1209 = vrot.lane.b32.xlu0 %v889, 32
        %v1210 = vpop.permute.xlu0 %1209
        %1275 = vrot.lane.b32.xlu0 %v890, 64
        %v1276 = vpop.permute.xlu0 %1275
        %1277 = vrot.lane.b32.xlu0 %v891, 64
        %v1278 = vpop.permute.xlu0 %1277
        %1279 = vrot.lane.b32.xlu0 %v892, 64
        %v1280 = vpop.permute.xlu0 %1279
        %1281 = vrot.lane.b32.xlu0 %v893, 64
        %v1282 = vpop.permute.xlu0 %1281
        %1283 = vrot.lane.b32.xlu0 %v894, 64
        %v1284 = vpop.permute.xlu0 %1283
        %1285 = vrot.lane.b32.xlu0 %v895, 64
        %v1286 = vpop.permute.xlu0 %1285
        %1287 = vrot.lane.b32.xlu0 %v896, 64
        %v1288 = vpop.permute.xlu0 %1287
        %1289 = vrot.lane.b32.xlu0 %v897, 64
        %v1290 = vpop.permute.xlu0 %1289
        %1291 = vrot.lane.b32.xlu0 %v898, 64
        %v1292 = vpop.permute.xlu0 %1291
        %1293 = vrot.lane.b32.xlu0 %v899, 64
        %v1294 = vpop.permute.xlu0 %1293
        %1295 = vrot.lane.b32.xlu0 %v900, 64
        %v1296 = vpop.permute.xlu0 %1295
        %1297 = vrot.lane.b32.xlu0 %v901, 64
        %v1298 = vpop.permute.xlu0 %1297
        %1299 = vrot.lane.b32.xlu0 %v902, 64
        %v1300 = vpop.permute.xlu0 %1299
        %1301 = vrot.lane.b32.xlu0 %v903, 64
        %v1302 = vpop.permute.xlu0 %1301
        %1303 = vrot.lane.b32.xlu0 %v904, 64
        %v1304 = vpop.permute.xlu0 %1303
        %1305 = vrot.lane.b32.xlu0 %v905, 64
        %v1306 = vpop.permute.xlu0 %1305
        %1307 = vrot.lane.b32.xlu0 %v906, 64
        %v1308 = vpop.permute.xlu0 %1307
        %1309 = vrot.lane.b32.xlu0 %v907, 64
        %v1310 = vpop.permute.xlu0 %1309
        %1311 = vrot.lane.b32.xlu0 %v908, 64
        %v1312 = vpop.permute.xlu0 %1311
        %1313 = vrot.lane.b32.xlu0 %v909, 64
        %v1314 = vpop.permute.xlu0 %1313
        %1315 = vrot.lane.b32.xlu0 %v910, 64
        %v1316 = vpop.permute.xlu0 %1315
        %1317 = vrot.lane.b32.xlu0 %v911, 64
        %v1318 = vpop.permute.xlu0 %1317
        %1319 = vrot.lane.b32.xlu0 %v912, 64
        %v1320 = vpop.permute.xlu0 %1319
        %1321 = vrot.lane.b32.xlu0 %v913, 64
        %v1322 = vpop.permute.xlu0 %1321
        %1323 = vrot.lane.b32.xlu0 %v914, 64
        %v1324 = vpop.permute.xlu0 %1323
        %1325 = vrot.lane.b32.xlu0 %v915, 64
        %v1326 = vpop.permute.xlu0 %1325
        %1327 = vrot.lane.b32.xlu0 %v916, 64
        %v1328 = vpop.permute.xlu0 %1327
        %1329 = vrot.lane.b32.xlu0 %v917, 64
        %v1330 = vpop.permute.xlu0 %1329
        %1331 = vrot.lane.b32.xlu0 %v918, 64
        %v1332 = vpop.permute.xlu0 %1331
        %1333 = vrot.lane.b32.xlu0 %v919, 64
        %v1334 = vpop.permute.xlu0 %1333
        %1335 = vrot.lane.b32.xlu0 %v920, 64
        %v1336 = vpop.permute.xlu0 %1335
        %1337 = vrot.lane.b32.xlu0 %v921, 64
        %v1338 = vpop.permute.xlu0 %1337
        %1403 = vrot.lane.b32.xlu0 %v922, 96
        %v1404 = vpop.permute.xlu0 %1403
        %1405 = vrot.lane.b32.xlu0 %v923, 96
        %v1406 = vpop.permute.xlu0 %1405
        %1407 = vrot.lane.b32.xlu0 %v924, 96
        %v1408 = vpop.permute.xlu0 %1407
        %1409 = vrot.lane.b32.xlu0 %v925, 96
        %v1410 = vpop.permute.xlu0 %1409
        %1411 = vrot.lane.b32.xlu0 %v926, 96
        %v1412 = vpop.permute.xlu0 %1411
        %1413 = vrot.lane.b32.xlu0 %v927, 96
        %v1414 = vpop.permute.xlu0 %1413
        %1415 = vrot.lane.b32.xlu0 %v928, 96
        %v1416 = vpop.permute.xlu0 %1415
        %1417 = vrot.lane.b32.xlu0 %v929, 96
        %v1418 = vpop.permute.xlu0 %1417
        %1419 = vrot.lane.b32.xlu0 %v930, 96
        %v1420 = vpop.permute.xlu0 %1419
        %1421 = vrot.lane.b32.xlu0 %v931, 96
        %v1422 = vpop.permute.xlu0 %1421
        %1423 = vrot.lane.b32.xlu0 %v932, 96
        %v1424 = vpop.permute.xlu0 %1423
        %1425 = vrot.lane.b32.xlu0 %v933, 96
        %v1426 = vpop.permute.xlu0 %1425
        %1427 = vrot.lane.b32.xlu0 %v934, 96
        %v1428 = vpop.permute.xlu0 %1427
        %1429 = vrot.lane.b32.xlu0 %v935, 96
        %v1430 = vpop.permute.xlu0 %1429
        %1431 = vrot.lane.b32.xlu0 %v936, 96
        %v1432 = vpop.permute.xlu0 %1431
        %1433 = vrot.lane.b32.xlu0 %v937, 96
        %v1434 = vpop.permute.xlu0 %1433
        %1435 = vrot.lane.b32.xlu0 %v938, 96
        %v1436 = vpop.permute.xlu0 %1435
        %1437 = vrot.lane.b32.xlu0 %v939, 96
        %v1438 = vpop.permute.xlu0 %1437
        %1439 = vrot.lane.b32.xlu0 %v940, 96
        %v1440 = vpop.permute.xlu0 %1439
        %1441 = vrot.lane.b32.xlu0 %v941, 96
        %v1442 = vpop.permute.xlu0 %1441
        %1443 = vrot.lane.b32.xlu0 %v942, 96
        %v1444 = vpop.permute.xlu0 %1443
        %1445 = vrot.lane.b32.xlu0 %v943, 96
        %v1446 = vpop.permute.xlu0 %1445
        %1447 = vrot.lane.b32.xlu0 %v944, 96
        %v1448 = vpop.permute.xlu0 %1447
        %1449 = vrot.lane.b32.xlu0 %v945, 96
        %v1450 = vpop.permute.xlu0 %1449
        %1451 = vrot.lane.b32.xlu0 %v946, 96
        %v1452 = vpop.permute.xlu0 %1451
        %1453 = vrot.lane.b32.xlu0 %v947, 96
        %v1454 = vpop.permute.xlu0 %1453
        %1455 = vrot.lane.b32.xlu0 %v948, 96
        %v1456 = vpop.permute.xlu0 %1455
        %1457 = vrot.lane.b32.xlu0 %v949, 96
        %v1458 = vpop.permute.xlu0 %1457
        %1459 = vrot.lane.b32.xlu0 %v950, 96
        %v1460 = vpop.permute.xlu0 %1459
        %1461 = vrot.lane.b32.xlu0 %v951, 96
        %v1462 = vpop.permute.xlu0 %1461
        %1463 = vrot.lane.b32.xlu0 %v952, 96
        %v1464 = vpop.permute.xlu0 %1463
        %1465 = vrot.lane.b32.xlu0 %v953, 96
        %v1466 = vpop.permute.xlu0 %1465
        %1531 = vrot.lane.b32.xlu0 %v986, 32
        %v1532 = vpop.permute.xlu0 %1531
        %1533 = vrot.lane.b32.xlu0 %v987, 32
        %v1534 = vpop.permute.xlu0 %1533
        %1535 = vrot.lane.b32.xlu0 %v988, 32
        %v1536 = vpop.permute.xlu0 %1535
        %1537 = vrot.lane.b32.xlu0 %v989, 32
        %v1538 = vpop.permute.xlu0 %1537
        %1539 = vrot.lane.b32.xlu0 %v990, 32
        %v1540 = vpop.permute.xlu0 %1539
        %1541 = vrot.lane.b32.xlu0 %v991, 32
        %v1542 = vpop.permute.xlu0 %1541
        %1543 = vrot.lane.b32.xlu0 %v992, 32
        %v1544 = vpop.permute.xlu0 %1543
        %1545 = vrot.lane.b32.xlu0 %v993, 32
        %v1546 = vpop.permute.xlu0 %1545
        %1547 = vrot.lane.b32.xlu0 %v994, 32
        %v1548 = vpop.permute.xlu0 %1547
        %1549 = vrot.lane.b32.xlu0 %v995, 32
        %v1550 = vpop.permute.xlu0 %1549
        %1551 = vrot.lane.b32.xlu0 %v996, 32
        %v1552 = vpop.permute.xlu0 %1551
        %1553 = vrot.lane.b32.xlu0 %v997, 32
        %v1554 = vpop.permute.xlu0 %1553
        %1555 = vrot.lane.b32.xlu0 %v998, 32
        %v1556 = vpop.permute.xlu0 %1555
        %1557 = vrot.lane.b32.xlu0 %v999, 32
        %v1558 = vpop.permute.xlu0 %1557
        %1559 = vrot.lane.b32.xlu0 %v1000, 32
        %v1560 = vpop.permute.xlu0 %1559
        %1561 = vrot.lane.b32.xlu0 %v1001, 32
        %v1562 = vpop.permute.xlu0 %1561
        %1563 = vrot.lane.b32.xlu0 %v1002, 32
        %v1564 = vpop.permute.xlu0 %1563
        %1565 = vrot.lane.b32.xlu0 %v1003, 32
        %v1566 = vpop.permute.xlu0 %1565
        %1567 = vrot.lane.b32.xlu0 %v1004, 32
        %v1568 = vpop.permute.xlu0 %1567
        %1569 = vrot.lane.b32.xlu0 %v1005, 32
        %v1570 = vpop.permute.xlu0 %1569
        %1571 = vrot.lane.b32.xlu0 %v1006, 32
        %v1572 = vpop.permute.xlu0 %1571
        %1573 = vrot.lane.b32.xlu0 %v1007, 32
        %v1574 = vpop.permute.xlu0 %1573
        %1575 = vrot.lane.b32.xlu0 %v1008, 32
        %v1576 = vpop.permute.xlu0 %1575
        %1577 = vrot.lane.b32.xlu0 %v1009, 32
        %v1578 = vpop.permute.xlu0 %1577
        %1579 = vrot.lane.b32.xlu0 %v1010, 32
        %v1580 = vpop.permute.xlu0 %1579
        %1581 = vrot.lane.b32.xlu0 %v1011, 32
        %v1582 = vpop.permute.xlu0 %1581
        %1583 = vrot.lane.b32.xlu0 %v1012, 32
        %v1584 = vpop.permute.xlu0 %1583
        %1585 = vrot.lane.b32.xlu0 %v1013, 32
        %v1586 = vpop.permute.xlu0 %1585
        %1587 = vrot.lane.b32.xlu0 %v1014, 32
        %v1588 = vpop.permute.xlu0 %1587
        %1589 = vrot.lane.b32.xlu0 %v1015, 32
        %v1590 = vpop.permute.xlu0 %1589
        %1591 = vrot.lane.b32.xlu0 %v1016, 32
        %v1592 = vpop.permute.xlu0 %1591
        %1593 = vrot.lane.b32.xlu0 %v1017, 32
        %v1594 = vpop.permute.xlu0 %1593
        %1659 = vrot.lane.b32.xlu0 %v1019, 64
        %v1660 = vpop.permute.xlu0 %1659
        %1661 = vrot.lane.b32.xlu0 %v1020, 64
        %v1662 = vpop.permute.xlu0 %1661
        %1663 = vrot.lane.b32.xlu0 %v1021, 64
        %v1664 = vpop.permute.xlu0 %1663
        %1665 = vrot.lane.b32.xlu0 %v1022, 64
        %v1666 = vpop.permute.xlu0 %1665
        %1667 = vrot.lane.b32.xlu0 %v1023, 64
        %v1668 = vpop.permute.xlu0 %1667
        %1669 = vrot.lane.b32.xlu0 %v1024, 64
        %v1670 = vpop.permute.xlu0 %1669
        %1671 = vrot.lane.b32.xlu0 %v1025, 64
        %v1672 = vpop.permute.xlu0 %1671
        %1673 = vrot.lane.b32.xlu0 %v1026, 64
        %v1674 = vpop.permute.xlu0 %1673
        %1675 = vrot.lane.b32.xlu0 %v1027, 64
        %v1676 = vpop.permute.xlu0 %1675
        %1677 = vrot.lane.b32.xlu0 %v1028, 64
        %v1678 = vpop.permute.xlu0 %1677
        %1679 = vrot.lane.b32.xlu0 %v1029, 64
        %v1680 = vpop.permute.xlu0 %1679
        %1681 = vrot.lane.b32.xlu0 %v1030, 64
        %v1682 = vpop.permute.xlu0 %1681
        %1683 = vrot.lane.b32.xlu0 %v1031, 64
        %v1684 = vpop.permute.xlu0 %1683
        %1685 = vrot.lane.b32.xlu0 %v1032, 64
        %v1686 = vpop.permute.xlu0 %1685
        %1687 = vrot.lane.b32.xlu0 %v1033, 64
        %v1688 = vpop.permute.xlu0 %1687
        %1689 = vrot.lane.b32.xlu0 %v1034, 64
        %v1690 = vpop.permute.xlu0 %1689
        %1691 = vrot.lane.b32.xlu0 %v1035, 64
        %v1692 = vpop.permute.xlu0 %1691
        %1693 = vrot.lane.b32.xlu0 %v1036, 64
        %v1694 = vpop.permute.xlu0 %1693
        %1695 = vrot.lane.b32.xlu0 %v1037, 64
        %v1696 = vpop.permute.xlu0 %1695
        %1697 = vrot.lane.b32.xlu0 %v1038, 64
        %v1698 = vpop.permute.xlu0 %1697
        %1699 = vrot.lane.b32.xlu0 %v1039, 64
        %v1700 = vpop.permute.xlu0 %1699
        %1701 = vrot.lane.b32.xlu0 %v1040, 64
        %v1702 = vpop.permute.xlu0 %1701
        %1703 = vrot.lane.b32.xlu0 %v1041, 64
        %v1704 = vpop.permute.xlu0 %1703
        %1705 = vrot.lane.b32.xlu0 %v1042, 64
        %v1706 = vpop.permute.xlu0 %1705
        %1707 = vrot.lane.b32.xlu0 %v1043, 64
        %v1708 = vpop.permute.xlu0 %1707
        %1709 = vrot.lane.b32.xlu0 %v1044, 64
        %v1710 = vpop.permute.xlu0 %1709
        %1711 = vrot.lane.b32.xlu0 %v1045, 64
        %v1712 = vpop.permute.xlu0 %1711
        %1713 = vrot.lane.b32.xlu0 %v1046, 64
        %v1714 = vpop.permute.xlu0 %1713
        %1715 = vrot.lane.b32.xlu0 %v1047, 64
        %v1716 = vpop.permute.xlu0 %1715
        %1717 = vrot.lane.b32.xlu0 %v1048, 64
        %v1718 = vpop.permute.xlu0 %1717
        %1719 = vrot.lane.b32.xlu0 %v1049, 64
        %v1720 = vpop.permute.xlu0 %1719
        %1721 = vrot.lane.b32.xlu0 %v1050, 64
        %v1722 = vpop.permute.xlu0 %1721
        %1787 = vrot.lane.b32.xlu0 %v1051, 96
        %v1788 = vpop.permute.xlu0 %1787
        %1789 = vrot.lane.b32.xlu0 %v1052, 96
        %v1790 = vpop.permute.xlu0 %1789
        %1791 = vrot.lane.b32.xlu0 %v1053, 96
        %v1792 = vpop.permute.xlu0 %1791
        %1793 = vrot.lane.b32.xlu0 %v1054, 96
        %v1794 = vpop.permute.xlu0 %1793
        %1795 = vrot.lane.b32.xlu0 %v1055, 96
        %v1796 = vpop.permute.xlu0 %1795
        %1797 = vrot.lane.b32.xlu0 %v1056, 96
        %v1798 = vpop.permute.xlu0 %1797
        %1799 = vrot.lane.b32.xlu0 %v1057, 96
        %v1800 = vpop.permute.xlu0 %1799
        %1801 = vrot.lane.b32.xlu0 %v1058, 96
        %v1802 = vpop.permute.xlu0 %1801
        %1803 = vrot.lane.b32.xlu0 %v1059, 96
        %v1804 = vpop.permute.xlu0 %1803
        %1805 = vrot.lane.b32.xlu0 %v1060, 96
        %v1806 = vpop.permute.xlu0 %1805
        %1807 = vrot.lane.b32.xlu0 %v1061, 96
        %v1808 = vpop.permute.xlu0 %1807
        %1809 = vrot.lane.b32.xlu0 %v1062, 96
        %v1810 = vpop.permute.xlu0 %1809
        %1811 = vrot.lane.b32.xlu0 %v1063, 96
        %v1812 = vpop.permute.xlu0 %1811
        %1813 = vrot.lane.b32.xlu0 %v1064, 96
        %v1814 = vpop.permute.xlu0 %1813
        %1815 = vrot.lane.b32.xlu0 %v1065, 96
        %v1816 = vpop.permute.xlu0 %1815
        %1817 = vrot.lane.b32.xlu0 %v1066, 96
        %v1818 = vpop.permute.xlu0 %1817
        %1819 = vrot.lane.b32.xlu0 %v1067, 96
        %v1820 = vpop.permute.xlu0 %1819
        %1821 = vrot.lane.b32.xlu0 %v1068, 96
        %v1822 = vpop.permute.xlu0 %1821
        %1823 = vrot.lane.b32.xlu0 %v1069, 96
        %v1824 = vpop.permute.xlu0 %1823
        %1825 = vrot.lane.b32.xlu0 %v1070, 96
        %v1826 = vpop.permute.xlu0 %1825
        %1827 = vrot.lane.b32.xlu0 %v1071, 96
        %v1828 = vpop.permute.xlu0 %1827
        %1829 = vrot.lane.b32.xlu0 %v1072, 96
        %v1830 = vpop.permute.xlu0 %1829
        %1831 = vrot.lane.b32.xlu0 %v1073, 96
        %v1832 = vpop.permute.xlu0 %1831
        %1833 = vrot.lane.b32.xlu0 %v1074, 96
        %v1834 = vpop.permute.xlu0 %1833
        %1835 = vrot.lane.b32.xlu0 %v1075, 96
        %v1836 = vpop.permute.xlu0 %1835
        %1837 = vrot.lane.b32.xlu0 %v1076, 96
        %v1838 = vpop.permute.xlu0 %1837
        %1839 = vrot.lane.b32.xlu0 %v1077, 96
        %v1840 = vpop.permute.xlu0 %1839
        %1841 = vrot.lane.b32.xlu0 %v1078, 96
        %v1842 = vpop.permute.xlu0 %1841
        %1843 = vrot.lane.b32.xlu0 %v1079, 96
        %v1844 = vpop.permute.xlu0 %1843
        %1845 = vrot.lane.b32.xlu0 %v1080, 96
        %v1846 = vpop.permute.xlu0 %1845
        %1847 = vrot.lane.b32.xlu0 %v1081, 96
        %v1848 = vpop.permute.xlu0 %1847
        %1849 = vrot.lane.b32.xlu0 %v1082, 96
        %v1850 = vpop.permute.xlu0 %1849
        %v1883 = vsel %vm384, %v826, %v1148
        %v1884 = vsel %vm384, %v827, %v1150
        %v1885 = vsel %vm384, %v828, %v1152
        %v1886 = vsel %vm384, %v829, %v1154
        %v1887 = vsel %vm384, %v830, %v1156
        %v1888 = vsel %vm384, %v831, %v1158
        %v1889 = vsel %vm384, %v832, %v1160
        %v1890 = vsel %vm384, %v833, %v1162
        %v1891 = vsel %vm384, %v834, %v1164
        %v1892 = vsel %vm384, %v835, %v1166
        %v1893 = vsel %vm384, %v836, %v1168
        %v1894 = vsel %vm384, %v837, %v1170
        %v1895 = vsel %vm384, %v838, %v1172
        %v1896 = vsel %vm384, %v839, %v1174
        %v1897 = vsel %vm384, %v840, %v1176
        %v1898 = vsel %vm384, %v841, %v1178
        %v1899 = vsel %vm384, %v842, %v1180
        %v1900 = vsel %vm384, %v843, %v1182
        %v1901 = vsel %vm384, %v844, %v1184
        %v1902 = vsel %vm384, %v845, %v1186
        %v1903 = vsel %vm384, %v846, %v1188
        %v1904 = vsel %vm384, %v847, %v1190
        %v1905 = vsel %vm384, %v848, %v1192
        %v1906 = vsel %vm384, %v849, %v1194
        %v1907 = vsel %vm384, %v850, %v1196
        %v1908 = vsel %vm384, %v851, %v1198
        %v1909 = vsel %vm384, %v852, %v1200
        %v1910 = vsel %vm384, %v853, %v1202
        %v1911 = vsel %vm384, %v854, %v1204
        %v1912 = vsel %vm384, %v855, %v1206
        %v1913 = vsel %vm384, %v856, %v1208
        %v1914 = vsel %vm384, %v857, %v1210
        %vm1915 = vcmask 523264
        %v1916 = vsel %vm1915, %v1883, %v1276
        %v1917 = vsel %vm1915, %v1884, %v1278
        %v1918 = vsel %vm1915, %v1885, %v1280
        %v1919 = vsel %vm1915, %v1886, %v1282
        %v1920 = vsel %vm1915, %v1887, %v1284
        %v1921 = vsel %vm1915, %v1888, %v1286
        %v1922 = vsel %vm1915, %v1889, %v1288
        %v1923 = vsel %vm1915, %v1890, %v1290
        %v1924 = vsel %vm1915, %v1891, %v1292
        %v1925 = vsel %vm1915, %v1892, %v1294
        %v1926 = vsel %vm1915, %v1893, %v1296
        %v1927 = vsel %vm1915, %v1894, %v1298
        %v1928 = vsel %vm1915, %v1895, %v1300
        %v1929 = vsel %vm1915, %v1896, %v1302
        %v1930 = vsel %vm1915, %v1897, %v1304
        %v1931 = vsel %vm1915, %v1898, %v1306
        %v1932 = vsel %vm1915, %v1899, %v1308
        %v1933 = vsel %vm1915, %v1900, %v1310
        %v1934 = vsel %vm1915, %v1901, %v1312
        %v1935 = vsel %vm1915, %v1902, %v1314
        %v1936 = vsel %vm1915, %v1903, %v1316
        %v1937 = vsel %vm1915, %v1904, %v1318
        %v1938 = vsel %vm1915, %v1905, %v1320
        %v1939 = vsel %vm1915, %v1906, %v1322
        %v1940 = vsel %vm1915, %v1907, %v1324
        %v1941 = vsel %vm1915, %v1908, %v1326
        %v1942 = vsel %vm1915, %v1909, %v1328
        %v1943 = vsel %vm1915, %v1910, %v1330
        %v1944 = vsel %vm1915, %v1911, %v1332
        %v1945 = vsel %vm1915, %v1912, %v1334
        %v1946 = vsel %vm1915, %v1913, %v1336
        %v1947 = vsel %vm1915, %v1914, %v1338
        %vm1948 = vcmask 785408
        %v1949 = vsel %vm1948, %v1916, %v1404
        %v1950 = vsel %vm1948, %v1917, %v1406
        %v1951 = vsel %vm1948, %v1918, %v1408
        %v1952 = vsel %vm1948, %v1919, %v1410
        %v1953 = vsel %vm1948, %v1920, %v1412
        %v1954 = vsel %vm1948, %v1921, %v1414
        %v1955 = vsel %vm1948, %v1922, %v1416
        %v1956 = vsel %vm1948, %v1923, %v1418
        %v1957 = vsel %vm1948, %v1924, %v1420
        %v1958 = vsel %vm1948, %v1925, %v1422
        %v1959 = vsel %vm1948, %v1926, %v1424
        %v1960 = vsel %vm1948, %v1927, %v1426
        %v1961 = vsel %vm1948, %v1928, %v1428
        %v1962 = vsel %vm1948, %v1929, %v1430
        %v1963 = vsel %vm1948, %v1930, %v1432
        %v1964 = vsel %vm1948, %v1931, %v1434
        %v1965 = vsel %vm1948, %v1932, %v1436
        %v1966 = vsel %vm1948, %v1933, %v1438
        %v1967 = vsel %vm1948, %v1934, %v1440
        %v1968 = vsel %vm1948, %v1935, %v1442
        %v1969 = vsel %vm1948, %v1936, %v1444
        %v1970 = vsel %vm1948, %v1937, %v1446
        %v1971 = vsel %vm1948, %v1938, %v1448
        %v1972 = vsel %vm1948, %v1939, %v1450
        %v1973 = vsel %vm1948, %v1940, %v1452
        %v1974 = vsel %vm1948, %v1941, %v1454
        %v1975 = vsel %vm1948, %v1942, %v1456
        %v1976 = vsel %vm1948, %v1943, %v1458
        %v1977 = vsel %vm1948, %v1944, %v1460
        %v1978 = vsel %vm1948, %v1945, %v1462
        %v1979 = vsel %vm1948, %v1946, %v1464
        %v1980 = vsel %vm1948, %v1947, %v1466
        %v1981 = vsel %vm384, %v954, %v1532
        %v1982 = vsel %vm384, %v955, %v1534
        %v1983 = vsel %vm384, %v956, %v1536
        %v1984 = vsel %vm384, %v957, %v1538
        %v1985 = vsel %vm384, %v958, %v1540
        %v1986 = vsel %vm384, %v959, %v1542
        %v1987 = vsel %vm384, %v960, %v1544
        %v1988 = vsel %vm384, %v961, %v1546
        %v1989 = vsel %vm384, %v962, %v1548
        %v1990 = vsel %vm384, %v963, %v1550
        %v1991 = vsel %vm384, %v964, %v1552
        %v1992 = vsel %vm384, %v965, %v1554
        %v1993 = vsel %vm384, %v966, %v1556
        %v1994 = vsel %vm384, %v967, %v1558
        %v1995 = vsel %vm384, %v968, %v1560
        %v1996 = vsel %vm384, %v969, %v1562
        %v1997 = vsel %vm384, %v970, %v1564
        %v1998 = vsel %vm384, %v971, %v1566
        %v1999 = vsel %vm384, %v972, %v1568
        %v2000 = vsel %vm384, %v973, %v1570
        %v2001 = vsel %vm384, %v974, %v1572
        %v2002 = vsel %vm384, %v975, %v1574
        %v2003 = vsel %vm384, %v976, %v1576
        %v2004 = vsel %vm384, %v977, %v1578
        %v2005 = vsel %vm384, %v978, %v1580
        %v2006 = vsel %vm384, %v979, %v1582
        %v2007 = vsel %vm384, %v980, %v1584
        %v2008 = vsel %vm384, %v981, %v1586
        %v2009 = vsel %vm384, %v982, %v1588
        %v2010 = vsel %vm384, %v983, %v1590
        %v2011 = vsel %vm384, %v984, %v1592
        %v2012 = vsel %vm384, %v985, %v1594
        %v2013 = vsel %vm1915, %v1981, %v1660
        %v2014 = vsel %vm1915, %v1982, %v1662
        %v2015 = vsel %vm1915, %v1983, %v1664
        %v2016 = vsel %vm1915, %v1984, %v1666
        %v2017 = vsel %vm1915, %v1985, %v1668
        %v2018 = vsel %vm1915, %v1986, %v1670
        %v2019 = vsel %vm1915, %v1987, %v1672
        %v2020 = vsel %vm1915, %v1988, %v1674
        %v2021 = vsel %vm1915, %v1989, %v1676
        %v2022 = vsel %vm1915, %v1990, %v1678
        %v2023 = vsel %vm1915, %v1991, %v1680
        %v2024 = vsel %vm1915, %v1992, %v1682
        %v2025 = vsel %vm1915, %v1993, %v1684
        %v2026 = vsel %vm1915, %v1994, %v1686
        %v2027 = vsel %vm1915, %v1995, %v1688
        %v2028 = vsel %vm1915, %v1996, %v1690
        %v2029 = vsel %vm1915, %v1997, %v1692
        %v2030 = vsel %vm1915, %v1998, %v1694
        %v2031 = vsel %vm1915, %v1999, %v1696
        %v2032 = vsel %vm1915, %v2000, %v1698
        %v2033 = vsel %vm1915, %v2001, %v1700
        %v2034 = vsel %vm1915, %v2002, %v1702
        %v2035 = vsel %vm1915, %v2003, %v1704
        %v2036 = vsel %vm1915, %v2004, %v1706
        %v2037 = vsel %vm1915, %v2005, %v1708
        %v2038 = vsel %vm1915, %v2006, %v1710
        %v2039 = vsel %vm1915, %v2007, %v1712
        %v2040 = vsel %vm1915, %v2008, %v1714
        %v2041 = vsel %vm1915, %v2009, %v1716
        %v2042 = vsel %vm1915, %v2010, %v1718
        %v2043 = vsel %vm1915, %v2011, %v1720
        %v2044 = vsel %vm1915, %v2012, %v1722
        %v2045 = vsel %vm1948, %v2013, %v1788
        %v2046 = vsel %vm1948, %v2014, %v1790
        %v2047 = vsel %vm1948, %v2015, %v1792
        %v2048 = vsel %vm1948, %v2016, %v1794
        %v2049 = vsel %vm1948, %v2017, %v1796
        %v2050 = vsel %vm1948, %v2018, %v1798
        %v2051 = vsel %vm1948, %v2019, %v1800
        %v2052 = vsel %vm1948, %v2020, %v1802
        %v2053 = vsel %vm1948, %v2021, %v1804
        %v2054 = vsel %vm1948, %v2022, %v1806
        %v2055 = vsel %vm1948, %v2023, %v1808
        %v2056 = vsel %vm1948, %v2024, %v1810
        %v2057 = vsel %vm1948, %v2025, %v1812
        %v2058 = vsel %vm1948, %v2026, %v1814
        %v2059 = vsel %vm1948, %v2027, %v1816
        %v2060 = vsel %vm1948, %v2028, %v1818
        %v2061 = vsel %vm1948, %v2029, %v1820
        %v2062 = vsel %vm1948, %v2030, %v1822
        %v2063 = vsel %vm1948, %v2031, %v1824
        %v2064 = vsel %vm1948, %v2032, %v1826
        %v2065 = vsel %vm1948, %v2033, %v1828
        %v2066 = vsel %vm1948, %v2034, %v1830
        %v2067 = vsel %vm1948, %v2035, %v1832
        %v2068 = vsel %vm1948, %v2036, %v1834
        %v2069 = vsel %vm1948, %v2037, %v1836
        %v2070 = vsel %vm1948, %v2038, %v1838
        %v2071 = vsel %vm1948, %v2039, %v1840
        %v2072 = vsel %vm1948, %v2040, %v1842
        %v2073 = vsel %vm1948, %v2041, %v1844
        %v2074 = vsel %vm1948, %v2042, %v1846
        %v2075 = vsel %vm1948, %v2043, %v1848
        %v2076 = vsel %vm1948, %v2044, %v1850
        %v2077 = vld [vmem:[#allocation9] sm:$0xff]
        %v2078 = vld [vmem:[#allocation9 + $0x8] sm:$0xff]
        %v2079 = vld [vmem:[#allocation9 + $0x10] sm:$0xff]
        %v2080 = vld [vmem:[#allocation9 + $0x18] sm:$0xff]
        %v2081 = vld [vmem:[#allocation9 + $0x20] sm:$0xff]
        %v2082 = vld [vmem:[#allocation9 + $0x28] sm:$0xff]
        %v2083 = vld [vmem:[#allocation9 + $0x30] sm:$0xff]
        %v2084 = vld [vmem:[#allocation9 + $0x38] sm:$0xff]
        %v2085 = vld [vmem:[#allocation9 + $0x40] sm:$0xff]
        %v2086 = vld [vmem:[#allocation9 + $0x48] sm:$0xff]
        %v2087 = vld [vmem:[#allocation9 + $0x50] sm:$0xff]
        %v2088 = vld [vmem:[#allocation9 + $0x58] sm:$0xff]
        %v2089 = vld [vmem:[#allocation9 + $0x60] sm:$0xff]
        %v2090 = vld [vmem:[#allocation9 + $0x68] sm:$0xff]
        %v2091 = vld [vmem:[#allocation9 + $0x70] sm:$0xff]
        %v2092 = vld [vmem:[#allocation9 + $0x78] sm:$0xff]
        %v2093 = vld [vmem:[#allocation9 + $0x80] sm:$0xff]
        %v2094 = vld [vmem:[#allocation9 + $0x88] sm:$0xff]
        %v2095 = vld [vmem:[#allocation9 + $0x90] sm:$0xff]
        %v2096 = vld [vmem:[#allocation9 + $0x98] sm:$0xff]
        %v2097 = vld [vmem:[#allocation9 + $0xa0] sm:$0xff]
        %v2098 = vld [vmem:[#allocation9 + $0xa8] sm:$0xff]
        %v2099 = vld [vmem:[#allocation9 + $0xb0] sm:$0xff]
        %v2100 = vld [vmem:[#allocation9 + $0xb8] sm:$0xff]
        %v2101 = vld [vmem:[#allocation9 + $0xc0] sm:$0xff]
        %v2102 = vld [vmem:[#allocation9 + $0xc8] sm:$0xff]
        %v2103 = vld [vmem:[#allocation9 + $0xd0] sm:$0xff]
        %v2104 = vld [vmem:[#allocation9 + $0xd8] sm:$0xff]
        %v2105 = vld [vmem:[#allocation9 + $0xe0] sm:$0xff]
        %v2106 = vld [vmem:[#allocation9 + $0xe8] sm:$0xff]
        %v2107 = vld [vmem:[#allocation9 + $0xf0] sm:$0xff]
        %v2108 = vld [vmem:[#allocation9 + $0xf8] sm:$0xff]
        %v2109 = vld [vmem:[#allocation9 + $0x100] sm:$0xff]
        %v2110 = vld [vmem:[#allocation9 + $0x108] sm:$0xff]
        %v2111 = vld [vmem:[#allocation9 + $0x110] sm:$0xff]
        %v2112 = vld [vmem:[#allocation9 + $0x118] sm:$0xff]
        %v2113 = vld [vmem:[%s4] sm:$0x1]
        %v2115 = vlaneseq
        %v2116 = vshrl.u32 %v2115, 7
        %v2117 = vsub.s32 0, %v2116
        %v2118 = vrot.slane %v2113, %v2117
        %v2121 = vsel %vm384, %v1083, 0
        %v2124 = vsel %vm384, %v1084, 0
        %v2127 = vsel %vm384, %v1085, 0
        %v2130 = vsel %vm384, %v1086, 0
        %v2133 = vsel %vm384, %v1087, 0
        %v2136 = vsel %vm384, %v1088, 0
        %v2139 = vsel %vm384, %v1089, 0
        %v2142 = vsel %vm384, %v1090, 0
        %v2145 = vsel %vm384, %v1091, 0
        %v2148 = vsel %vm384, %v1092, 0
        %v2151 = vsel %vm384, %v1093, 0
        %v2154 = vsel %vm384, %v1094, 0
        %v2157 = vsel %vm384, %v1095, 0
        %v2160 = vsel %vm384, %v1096, 0
        %v2163 = vsel %vm384, %v1097, 0
        %v2166 = vsel %vm384, %v1098, 0
        %v2169 = vsel %vm384, %v1099, 0
        %v2172 = vsel %vm384, %v1100, 0
        %v2175 = vsel %vm384, %v1101, 0
        %v2178 = vsel %vm384, %v1102, 0
        %v2181 = vsel %vm384, %v1103, 0
        %v2184 = vsel %vm384, %v1104, 0
        %v2187 = vsel %vm384, %v1105, 0
        %v2190 = vsel %vm384, %v1106, 0
        %v2193 = vsel %vm384, %v1107, 0
        %v2196 = vsel %vm384, %v1108, 0
        %v2199 = vsel %vm384, %v1109, 0
        %v2202 = vsel %vm384, %v1110, 0
        %v2205 = vsel %vm384, %v1111, 0
        %v2208 = vsel %vm384, %v1112, 0
        %v2211 = vsel %vm384, %v1113, 0
        %v2214 = vsel %vm384, %v1114, 0
        %2216 = vmatprep.subr.mxu0 0.0
        %2217 = vmatpush1.msra.mxu0 %v2077
        %2218 = vmatprep.subr.mxu0 0.0
        %2219 = vmatpush1.msra.mxu0 %v2078
        %2220 = vmatprep.subr.mxu0 0.0
        %2221 = vmatpush1.msra.mxu0 %v2079
        %2222 = vmatprep.subr.mxu0 0.0
        %2223 = vmatpush1.msra.mxu0 %v2080
        %2224 = vmatprep.subr.mxu0 0.0
        %2225 = vmatpush1.msra.mxu0 %v2081
        %2226 = vmatprep.subr.mxu0 0.0
        %2227 = vmatpush1.msra.mxu0 %v2082
        %2228 = vmatprep.subr.mxu0 0.0
        %2229 = vmatpush1.msra.mxu0 %v2083
        %2230 = vmatprep.subr.mxu0 0.0
        %2231 = vmatpush1.msra.mxu0 %v2084
        %2232 = vmatprep.subr.mxu0 0.0
        %2233 = vmatpush1.msra.mxu0 %v2085
        %2234 = vmatprep.subr.mxu0 0.0
        %2235 = vmatpush1.msra.mxu0 %v2086
        %2236 = vmatprep.subr.mxu0 0.0
        %2237 = vmatpush1.msra.mxu0 %v2087
        %2238 = vmatprep.subr.mxu0 0.0
        %2239 = vmatpush1.msra.mxu0 %v2088
        %2240 = vmatprep.subr.mxu0 0.0
        %2241 = vmatpush1.msra.mxu0 %v2089
        %2242 = vmatprep.subr.mxu0 0.0
        %2243 = vmatpush1.msra.mxu0 %v2090
        %2244 = vmatprep.subr.mxu0 0.0
        %2245 = vmatpush1.msra.mxu0 %v2091
        %2246 = vmatprep.subr.mxu0 0.0
        %2247 = vmatpush1.msra.mxu0 %v2092
        %2248 = vmatprep.subr.mxu0 0.0
        %2249 = vmatpush1.msra.mxu0 %v2093
        %2250 = vmatprep.subr.mxu0 0.0
        %2251 = vmatpush1.msra.mxu0 %v2094
        %2252 = vmatprep.subr.mxu0 0.0
        %2253 = vmatpush1.msra.mxu0 %v2095
        %2254 = vmatprep.subr.mxu0 0.0
        %2255 = vmatpush1.msra.mxu0 %v2096
        %2256 = vmatprep.subr.mxu0 0.0
        %2257 = vmatpush1.msra.mxu0 %v2097
        %2258 = vmatprep.subr.mxu0 0.0
        %2259 = vmatpush1.msra.mxu0 %v2098
        %2260 = vmatprep.subr.mxu0 0.0
        %2261 = vmatpush1.msra.mxu0 %v2099
        %2262 = vmatprep.subr.mxu0 0.0
        %2263 = vmatpush1.msra.mxu0 %v2100
        %2264 = vmatprep.subr.mxu0 0.0
        %2265 = vmatpush1.msra.mxu0 %v2101
        %2266 = vmatprep.subr.mxu0 0.0
        %2267 = vmatpush1.msra.mxu0 %v2102
        %2268 = vmatprep.subr.mxu0 0.0
        %2269 = vmatpush1.msra.mxu0 %v2103
        %2270 = vmatprep.subr.mxu0 0.0
        %2271 = vmatpush1.msra.mxu0 %v2104
        %2272 = vmatprep.subr.mxu0 0.0
        %2273 = vmatpush1.msra.mxu0 %v2105
        %2274 = vmatprep.subr.mxu0 0.0
        %2275 = vmatpush1.msra.mxu0 %v2106
        %2276 = vmatprep.subr.mxu0 0.0
        %2277 = vmatpush1.msra.mxu0 %v2107
        %2278 = vmatprep.subr.mxu0 0.0
        %2279 = vmatpush1.msra.mxu0 %v2108
        %2280 = vmatprep.mubr.f32.mxu0 %v2045
        %2281 = vmatmul.mubr.f32.gmra.mrb[0].mxu0 %v1949
        %v2282 = vpop.f32.mrb[0].mxu0
        %v2283 = vadd.f32 %v2118, %v2282
        %v2284 = vpop.f32.mrb[0].mxu0
        %2285 = vmatprep.mubr.f32.mxu0 %v2046
        %2286 = vmatmul.mubr.f32.gmra.mrb[0].mxu0 %v1950
        %v2287 = vpop.f32.mrb[0].mxu0
        %v2288 = vadd.f32 %v2118, %v2287
        %v2289 = vpop.f32.mrb[0].mxu0
        %2290 = vmatprep.mubr.f32.mxu0 %v2047
        %2291 = vmatmul.mubr.f32.gmra.mrb[0].mxu0 %v1951
        %v2292 = vpop.f32.mrb[0].mxu0
        %v2293 = vadd.f32 %v2118, %v2292
        %v2294 = vpop.f32.mrb[0].mxu0
        %2295 = vmatprep.mubr.f32.mxu0 %v2048
        %2296 = vmatmul.mubr.f32.gmra.mrb[0].mxu0 %v1952
        %v2297 = vpop.f32.mrb[0].mxu0
        %v2298 = vadd.f32 %v2118, %v2297
        %v2299 = vpop.f32.mrb[0].mxu0
        %2300 = vmatprep.mubr.f32.mxu0 %v2049
        %2301 = vmatmul.mubr.f32.gmra.mrb[0].mxu0 %v1953
        %v2302 = vpop.f32.mrb[0].mxu0
        %v2303 = vadd.f32 %v2118, %v2302
        %v2304 = vpop.f32.mrb[0].mxu0
        %2305 = vmatprep.mubr.f32.mxu0 %v2050
        %2306 = vmatmul.mubr.f32.gmra.mrb[0].mxu0 %v1954
        %v2307 = vpop.f32.mrb[0].mxu0
        %v2308 = vadd.f32 %v2118, %v2307
        %v2309 = vpop.f32.mrb[0].mxu0
        %2310 = vmatprep.mubr.f32.mxu0 %v2051
        %2311 = vmatmul.mubr.f32.gmra.mrb[0].mxu0 %v1955
        %v2312 = vpop.f32.mrb[0].mxu0
        %v2313 = vadd.f32 %v2118, %v2312
        %v2314 = vpop.f32.mrb[0].mxu0
        %2315 = vmatprep.mubr.f32.mxu0 %v2052
        %2316 = vmatmul.mubr.f32.gmra.mrb[0].mxu0 %v1956
        %v2317 = vpop.f32.mrb[0].mxu0
        %v2318 = vadd.f32 %v2118, %v2317
        %v2319 = vpop.f32.mrb[0].mxu0
        %2320 = vmatprep.mubr.f32.mxu0 %v2053
        %2321 = vmatmul.mubr.f32.gmra.mrb[0].mxu0 %v1957
        %v2322 = vpop.f32.mrb[0].mxu0
        %v2323 = vadd.f32 %v2118, %v2322
        %v2324 = vpop.f32.mrb[0].mxu0
        %2325 = vmatprep.mubr.f32.mxu0 %v2054
        %2326 = vmatmul.mubr.f32.gmra.mrb[0].mxu0 %v1958
        %v2327 = vpop.f32.mrb[0].mxu0
        %v2328 = vadd.f32 %v2118, %v2327
        %v2329 = vpop.f32.mrb[0].mxu0
        %2330 = vmatprep.mubr.f32.mxu0 %v2055
        %2331 = vmatmul.mubr.f32.gmra.mrb[0].mxu0 %v1959
        %v2332 = vpop.f32.mrb[0].mxu0
        %v2333 = vadd.f32 %v2118, %v2332
        %v2334 = vpop.f32.mrb[0].mxu0
        %2335 = vmatprep.mubr.f32.mxu0 %v2056
        %2336 = vmatmul.mubr.f32.gmra.mrb[0].mxu0 %v1960
        %v2337 = vpop.f32.mrb[0].mxu0
        %v2338 = vadd.f32 %v2118, %v2337
        %v2339 = vpop.f32.mrb[0].mxu0
        %2340 = vmatprep.mubr.f32.mxu0 %v2057
        %2341 = vmatmul.mubr.f32.gmra.mrb[0].mxu0 %v1961
        %v2342 = vpop.f32.mrb[0].mxu0
        %v2343 = vadd.f32 %v2118, %v2342
        %v2344 = vpop.f32.mrb[0].mxu0
        %2345 = vmatprep.mubr.f32.mxu0 %v2058
        %2346 = vmatmul.mubr.f32.gmra.mrb[0].mxu0 %v1962
        %v2347 = vpop.f32.mrb[0].mxu0
        %v2348 = vadd.f32 %v2118, %v2347
        %v2349 = vpop.f32.mrb[0].mxu0
        %2350 = vmatprep.mubr.f32.mxu0 %v2059
        %2351 = vmatmul.mubr.f32.gmra.mrb[0].mxu0 %v1963
        %v2352 = vpop.f32.mrb[0].mxu0
        %v2353 = vadd.f32 %v2118, %v2352
        %v2354 = vpop.f32.mrb[0].mxu0
        %2355 = vmatprep.mubr.f32.mxu0 %v2060
        %2356 = vmatmul.mubr.f32.gmra.mrb[0].mxu0 %v1964
        %v2357 = vpop.f32.mrb[0].mxu0
        %v2358 = vadd.f32 %v2118, %v2357
        %v2359 = vpop.f32.mrb[0].mxu0
        %2360 = vmatprep.mubr.f32.mxu0 %v2061
        %2361 = vmatmul.mubr.f32.gmra.mrb[0].mxu0 %v1965
        %v2362 = vpop.f32.mrb[0].mxu0
        %v2363 = vadd.f32 %v2118, %v2362
        %v2364 = vpop.f32.mrb[0].mxu0
        %2365 = vmatprep.mubr.f32.mxu0 %v2062
        %2366 = vmatmul.mubr.f32.gmra.mrb[0].mxu0 %v1966
        %v2367 = vpop.f32.mrb[0].mxu0
        %v2368 = vadd.f32 %v2118, %v2367
        %v2369 = vpop.f32.mrb[0].mxu0
        %2370 = vmatprep.mubr.f32.mxu0 %v2063
        %2371 = vmatmul.mubr.f32.gmra.mrb[0].mxu0 %v1967
        %v2372 = vpop.f32.mrb[0].mxu0
        %v2373 = vadd.f32 %v2118, %v2372
        %v2374 = vpop.f32.mrb[0].mxu0
        %2375 = vmatprep.mubr.f32.mxu0 %v2064
        %2376 = vmatmul.mubr.f32.gmra.mrb[0].mxu0 %v1968
        %v2377 = vpop.f32.mrb[0].mxu0
        %v2378 = vadd.f32 %v2118, %v2377
        %v2379 = vpop.f32.mrb[0].mxu0
        %2380 = vmatprep.mubr.f32.mxu0 %v2065
        %2381 = vmatmul.mubr.f32.gmra.mrb[0].mxu0 %v1969
        %v2382 = vpop.f32.mrb[0].mxu0
        %v2383 = vadd.f32 %v2118, %v2382
        %v2384 = vpop.f32.mrb[0].mxu0
        %2385 = vmatprep.mubr.f32.mxu0 %v2066
        %2386 = vmatmul.mubr.f32.gmra.mrb[0].mxu0 %v1970
        %v2387 = vpop.f32.mrb[0].mxu0
        %v2388 = vadd.f32 %v2118, %v2387
        %v2389 = vpop.f32.mrb[0].mxu0
        %2390 = vmatprep.mubr.f32.mxu0 %v2067
        %2391 = vmatmul.mubr.f32.gmra.mrb[0].mxu0 %v1971
        %v2392 = vpop.f32.mrb[0].mxu0
        %v2393 = vadd.f32 %v2118, %v2392
        %v2394 = vpop.f32.mrb[0].mxu0
        %2395 = vmatprep.mubr.f32.mxu0 %v2068
        %2396 = vmatmul.mubr.f32.gmra.mrb[0].mxu0 %v1972
        %v2397 = vpop.f32.mrb[0].mxu0
        %v2398 = vadd.f32 %v2118, %v2397
        %v2399 = vpop.f32.mrb[0].mxu0
        %2400 = vmatprep.mubr.f32.mxu0 %v2069
        %2401 = vmatmul.mubr.f32.gmra.mrb[0].mxu0 %v1973
        %v2402 = vpop.f32.mrb[0].mxu0
        %v2403 = vadd.f32 %v2118, %v2402
        %v2404 = vpop.f32.mrb[0].mxu0
        %2405 = vmatprep.mubr.f32.mxu0 %v2070
        %2406 = vmatmul.mubr.f32.gmra.mrb[0].mxu0 %v1974
        %v2407 = vpop.f32.mrb[0].mxu0
        %v2408 = vadd.f32 %v2118, %v2407
        %v2409 = vpop.f32.mrb[0].mxu0
        %2410 = vmatprep.mubr.f32.mxu0 %v2071
        %2411 = vmatmul.mubr.f32.gmra.mrb[0].mxu0 %v1975
        %v2412 = vpop.f32.mrb[0].mxu0
        %v2413 = vadd.f32 %v2118, %v2412
        %v2414 = vpop.f32.mrb[0].mxu0
        %2415 = vmatprep.mubr.f32.mxu0 %v2072
        %2416 = vmatmul.mubr.f32.gmra.mrb[0].mxu0 %v1976
        %v2417 = vpop.f32.mrb[0].mxu0
        %v2418 = vadd.f32 %v2118, %v2417
        %v2419 = vpop.f32.mrb[0].mxu0
        %2420 = vmatprep.mubr.f32.mxu0 %v2073
        %2421 = vmatmul.mubr.f32.gmra.mrb[0].mxu0 %v1977
        %v2422 = vpop.f32.mrb[0].mxu0
        %v2423 = vadd.f32 %v2118, %v2422
        %v2424 = vpop.f32.mrb[0].mxu0
        %2425 = vmatprep.mubr.f32.mxu0 %v2074
        %2426 = vmatmul.mubr.f32.gmra.mrb[0].mxu0 %v1978
        %v2427 = vpop.f32.mrb[0].mxu0
        %v2428 = vadd.f32 %v2118, %v2427
        %v2429 = vpop.f32.mrb[0].mxu0
        %2430 = vmatprep.mubr.f32.mxu0 %v2075
        %2431 = vmatmul.mubr.f32.gmra.mrb[0].mxu0 %v1979
        %v2432 = vpop.f32.mrb[0].mxu0
        %v2433 = vadd.f32 %v2118, %v2432
        %v2434 = vpop.f32.mrb[0].mxu0
        %2435 = vmatprep.mubr.f32.mxu0 %v2076
        %2436 = vmatmul.mubr.f32.gmra.mrb[0].mxu0 %v1980
        %v2437 = vpop.f32.mrb[0].mxu0
        %v2438 = vadd.f32 %v2118, %v2437
        %v2439 = vpop.f32.mrb[0].mxu0
        %2440 = vdwg.mxu0
        %2441 = vmatprep.subr.mxu0 0.0
        %2442 = vmatpush1.msra.mxu0 %v2109
        %2443 = vmatprep.subr.mxu0 0.0
        %2444 = vmatpush1.msra.mxu0 %v2110
        %2445 = vmatprep.subr.mxu0 0.0
        %2446 = vmatpush1.msra.mxu0 %v2111
        %2447 = vmatprep.subr.mxu0 0.0
        %2448 = vmatpush1.msra.mxu0 %v2112
        %2449 = vmatprep.subr.mxu0 0.0
        %2450 = vmatpush1.msra.mxu0 0.0
        %2451 = vmatprep.subr.mxu0 0.0
        %2452 = vmatpush1.msra.mxu0 0.0
        %2453 = vmatprep.subr.mxu0 0.0
        %2454 = vmatpush1.msra.mxu0 0.0
        %2455 = vmatprep.subr.mxu0 0.0
        %2456 = vmatpush1.msra.mxu0 0.0
        %2457 = vmatprep.subr.mxu0 0.0
        %2458 = vmatpush1.msra.mxu0 0.0
        %2459 = vmatprep.subr.mxu0 0.0
        %2460 = vmatpush1.msra.mxu0 0.0
        %2461 = vmatprep.subr.mxu0 0.0
        %2462 = vmatpush1.msra.mxu0 0.0
        %2463 = vmatprep.subr.mxu0 0.0
        %2464 = vmatpush1.msra.mxu0 0.0
        %2465 = vmatprep.subr.mxu0 0.0
        %2466 = vmatpush1.msra.mxu0 0.0
        %2467 = vmatprep.subr.mxu0 0.0
        %2468 = vmatpush1.msra.mxu0 0.0
        %2469 = vmatprep.subr.mxu0 0.0
        %2470 = vmatpush1.msra.mxu0 0.0
        %2471 = vmatprep.subr.mxu0 0.0
        %2472 = vmatpush1.msra.mxu0 0.0
        %2473 = vmatprep.subr.mxu0 0.0
        %2474 = vmatpush1.msra.mxu0 0.0
        %2475 = vmatprep.subr.mxu0 0.0
        %2476 = vmatpush1.msra.mxu0 0.0
        %2477 = vmatprep.subr.mxu0 0.0
        %2478 = vmatpush1.msra.mxu0 0.0
        %2479 = vmatprep.subr.mxu0 0.0
        %2480 = vmatpush1.msra.mxu0 0.0
        %2481 = vmatprep.subr.mxu0 0.0
        %2482 = vmatpush1.msra.mxu0 0.0
        %2483 = vmatprep.subr.mxu0 0.0
        %2484 = vmatpush1.msra.mxu0 0.0
        %2485 = vmatprep.subr.mxu0 0.0
        %2486 = vmatpush1.msra.mxu0 0.0
        %2487 = vmatprep.subr.mxu0 0.0
        %2488 = vmatpush1.msra.mxu0 0.0
        %2489 = vmatprep.subr.mxu0 0.0
        %2490 = vmatpush1.msra.mxu0 0.0
        %2491 = vmatprep.subr.mxu0 0.0
        %2492 = vmatpush1.msra.mxu0 0.0
        %2493 = vmatprep.subr.mxu0 0.0
        %2494 = vmatpush1.msra.mxu0 0.0
        %2495 = vmatprep.subr.mxu0 0.0
        %2496 = vmatpush1.msra.mxu0 0.0
        %2497 = vmatprep.subr.mxu0 0.0
        %2498 = vmatpush1.msra.mxu0 0.0
        %2499 = vmatprep.subr.mxu0 0.0
        %2500 = vmatpush1.msra.mxu0 0.0
        %2501 = vmatprep.subr.mxu0 0.0
        %2502 = vmatpush1.msra.mxu0 0.0
        %2503 = vmatprep.subr.mxu0 0.0
        %2504 = vmatpush1.msra.mxu0 0.0
        %2505 = vmatprep.mubr.f32.mxu0 0.0
        %2506 = vmatmul.mubr.f32.gmra.mrb[0].mxu0 %v2121
        %v2507 = vpop.f32.mrb[0].mxu0
        %v2508 = vadd.f32 %v2283, %v2507
        %v2509 = vpop.f32.mrb[0].mxu0
        %2510 = vmatprep.mubr.f32.mxu0 0.0
        %2511 = vmatmul.mubr.f32.gmra.mrb[0].mxu0 %v2124
        %v2512 = vpop.f32.mrb[0].mxu0
        %v2513 = vadd.f32 %v2288, %v2512
        %v2514 = vpop.f32.mrb[0].mxu0
        %2515 = vmatprep.mubr.f32.mxu0 0.0
        %2516 = vmatmul.mubr.f32.gmra.mrb[0].mxu0 %v2127
        %v2517 = vpop.f32.mrb[0].mxu0
        %v2518 = vadd.f32 %v2293, %v2517
        %v2519 = vpop.f32.mrb[0].mxu0
        %2520 = vmatprep.mubr.f32.mxu0 0.0
        %2521 = vmatmul.mubr.f32.gmra.mrb[0].mxu0 %v2130
        %v2522 = vpop.f32.mrb[0].mxu0
        %v2523 = vadd.f32 %v2298, %v2522
        %v2524 = vpop.f32.mrb[0].mxu0
        %2525 = vmatprep.mubr.f32.mxu0 0.0
        %2526 = vmatmul.mubr.f32.gmra.mrb[0].mxu0 %v2133
        %v2527 = vpop.f32.mrb[0].mxu0
        %v2528 = vadd.f32 %v2303, %v2527
        %v2529 = vpop.f32.mrb[0].mxu0
        %2530 = vmatprep.mubr.f32.mxu0 0.0
        %2531 = vmatmul.mubr.f32.gmra.mrb[0].mxu0 %v2136
        %v2532 = vpop.f32.mrb[0].mxu0
        %v2533 = vadd.f32 %v2308, %v2532
        %v2534 = vpop.f32.mrb[0].mxu0
        %2535 = vmatprep.mubr.f32.mxu0 0.0
        %2536 = vmatmul.mubr.f32.gmra.mrb[0].mxu0 %v2139
        %v2537 = vpop.f32.mrb[0].mxu0
        %v2538 = vadd.f32 %v2313, %v2537
        %v2539 = vpop.f32.mrb[0].mxu0
        %2540 = vmatprep.mubr.f32.mxu0 0.0
        %2541 = vmatmul.mubr.f32.gmra.mrb[0].mxu0 %v2142
        %v2542 = vpop.f32.mrb[0].mxu0
        %v2543 = vadd.f32 %v2318, %v2542
        %v2544 = vpop.f32.mrb[0].mxu0
        %2545 = vmatprep.mubr.f32.mxu0 0.0
        %2546 = vmatmul.mubr.f32.gmra.mrb[0].mxu0 %v2145
        %v2547 = vpop.f32.mrb[0].mxu0
        %v2548 = vadd.f32 %v2323, %v2547
        %v2549 = vpop.f32.mrb[0].mxu0
        %2550 = vmatprep.mubr.f32.mxu0 0.0
        %2551 = vmatmul.mubr.f32.gmra.mrb[0].mxu0 %v2148
        %v2552 = vpop.f32.mrb[0].mxu0
        %v2553 = vadd.f32 %v2328, %v2552
        %v2554 = vpop.f32.mrb[0].mxu0
        %2555 = vmatprep.mubr.f32.mxu0 0.0
        %2556 = vmatmul.mubr.f32.gmra.mrb[0].mxu0 %v2151
        %v2557 = vpop.f32.mrb[0].mxu0
        %v2558 = vadd.f32 %v2333, %v2557
        %v2559 = vpop.f32.mrb[0].mxu0
        %2560 = vmatprep.mubr.f32.mxu0 0.0
        %2561 = vmatmul.mubr.f32.gmra.mrb[0].mxu0 %v2154
        %v2562 = vpop.f32.mrb[0].mxu0
        %v2563 = vadd.f32 %v2338, %v2562
        %v2564 = vpop.f32.mrb[0].mxu0
        %2565 = vmatprep.mubr.f32.mxu0 0.0
        %2566 = vmatmul.mubr.f32.gmra.mrb[0].mxu0 %v2157
        %v2567 = vpop.f32.mrb[0].mxu0
        %v2568 = vadd.f32 %v2343, %v2567
        %v2569 = vpop.f32.mrb[0].mxu0
        %2570 = vmatprep.mubr.f32.mxu0 0.0
        %2571 = vmatmul.mubr.f32.gmra.mrb[0].mxu0 %v2160
        %v2572 = vpop.f32.mrb[0].mxu0
        %v2573 = vadd.f32 %v2348, %v2572
        %v2574 = vpop.f32.mrb[0].mxu0
        %2575 = vmatprep.mubr.f32.mxu0 0.0
        %2576 = vmatmul.mubr.f32.gmra.mrb[0].mxu0 %v2163
        %v2577 = vpop.f32.mrb[0].mxu0
        %v2578 = vadd.f32 %v2353, %v2577
        %v2579 = vpop.f32.mrb[0].mxu0
        %2580 = vmatprep.mubr.f32.mxu0 0.0
        %2581 = vmatmul.mubr.f32.gmra.mrb[0].mxu0 %v2166
        %v2582 = vpop.f32.mrb[0].mxu0
        %v2583 = vadd.f32 %v2358, %v2582
        %v2584 = vpop.f32.mrb[0].mxu0
        %2585 = vmatprep.mubr.f32.mxu0 0.0
        %2586 = vmatmul.mubr.f32.gmra.mrb[0].mxu0 %v2169
        %v2587 = vpop.f32.mrb[0].mxu0
        %v2588 = vadd.f32 %v2363, %v2587
        %v2589 = vpop.f32.mrb[0].mxu0
        %2590 = vmatprep.mubr.f32.mxu0 0.0
        %2591 = vmatmul.mubr.f32.gmra.mrb[0].mxu0 %v2172
        %v2592 = vpop.f32.mrb[0].mxu0
        %v2593 = vadd.f32 %v2368, %v2592
        %v2594 = vpop.f32.mrb[0].mxu0
        %2595 = vmatprep.mubr.f32.mxu0 0.0
        %2596 = vmatmul.mubr.f32.gmra.mrb[0].mxu0 %v2175
        %v2597 = vpop.f32.mrb[0].mxu0
        %v2598 = vadd.f32 %v2373, %v2597
        %v2599 = vpop.f32.mrb[0].mxu0
        %2600 = vmatprep.mubr.f32.mxu0 0.0
        %2601 = vmatmul.mubr.f32.gmra.mrb[0].mxu0 %v2178
        %v2602 = vpop.f32.mrb[0].mxu0
        %v2603 = vadd.f32 %v2378, %v2602
        %v2604 = vpop.f32.mrb[0].mxu0
        %2605 = vmatprep.mubr.f32.mxu0 0.0
        %2606 = vmatmul.mubr.f32.gmra.mrb[0].mxu0 %v2181
        %v2607 = vpop.f32.mrb[0].mxu0
        %v2608 = vadd.f32 %v2383, %v2607
        %v2609 = vpop.f32.mrb[0].mxu0
        %2610 = vmatprep.mubr.f32.mxu0 0.0
        %2611 = vmatmul.mubr.f32.gmra.mrb[0].mxu0 %v2184
        %v2612 = vpop.f32.mrb[0].mxu0
        %v2613 = vadd.f32 %v2388, %v2612
        %v2614 = vpop.f32.mrb[0].mxu0
        %2615 = vmatprep.mubr.f32.mxu0 0.0
        %2616 = vmatmul.mubr.f32.gmra.mrb[0].mxu0 %v2187
        %v2617 = vpop.f32.mrb[0].mxu0
        %v2618 = vadd.f32 %v2393, %v2617
        %v2619 = vpop.f32.mrb[0].mxu0
        %2620 = vmatprep.mubr.f32.mxu0 0.0
        %2621 = vmatmul.mubr.f32.gmra.mrb[0].mxu0 %v2190
        %v2622 = vpop.f32.mrb[0].mxu0
        %v2623 = vadd.f32 %v2398, %v2622
        %v2624 = vpop.f32.mrb[0].mxu0
        %2625 = vmatprep.mubr.f32.mxu0 0.0
        %2626 = vmatmul.mubr.f32.gmra.mrb[0].mxu0 %v2193
        %v2627 = vpop.f32.mrb[0].mxu0
        %v2628 = vadd.f32 %v2403, %v2627
        %v2629 = vpop.f32.mrb[0].mxu0
        %2630 = vmatprep.mubr.f32.mxu0 0.0
        %2631 = vmatmul.mubr.f32.gmra.mrb[0].mxu0 %v2196
        %v2632 = vpop.f32.mrb[0].mxu0
        %v2633 = vadd.f32 %v2408, %v2632
        %v2634 = vpop.f32.mrb[0].mxu0
        %2635 = vmatprep.mubr.f32.mxu0 0.0
        %2636 = vmatmul.mubr.f32.gmra.mrb[0].mxu0 %v2199
        %v2637 = vpop.f32.mrb[0].mxu0
        %v2638 = vadd.f32 %v2413, %v2637
        %v2639 = vpop.f32.mrb[0].mxu0
        %2640 = vmatprep.mubr.f32.mxu0 0.0
        %2641 = vmatmul.mubr.f32.gmra.mrb[0].mxu0 %v2202
        %v2642 = vpop.f32.mrb[0].mxu0
        %v2643 = vadd.f32 %v2418, %v2642
        %v2644 = vpop.f32.mrb[0].mxu0
        %2645 = vmatprep.mubr.f32.mxu0 0.0
        %2646 = vmatmul.mubr.f32.gmra.mrb[0].mxu0 %v2205
        %v2647 = vpop.f32.mrb[0].mxu0
        %v2648 = vadd.f32 %v2423, %v2647
        %v2649 = vpop.f32.mrb[0].mxu0
        %2650 = vmatprep.mubr.f32.mxu0 0.0
        %2651 = vmatmul.mubr.f32.gmra.mrb[0].mxu0 %v2208
        %v2652 = vpop.f32.mrb[0].mxu0
        %v2653 = vadd.f32 %v2428, %v2652
        %v2654 = vpop.f32.mrb[0].mxu0
        %2655 = vmatprep.mubr.f32.mxu0 0.0
        %2656 = vmatmul.mubr.f32.gmra.mrb[0].mxu0 %v2211
        %v2657 = vpop.f32.mrb[0].mxu0
        %v2658 = vadd.f32 %v2433, %v2657
        %v2659 = vpop.f32.mrb[0].mxu0
        %2660 = vmatprep.mubr.f32.mxu0 0.0
        %2661 = vmatmul.mubr.f32.gmra.mrb[0].mxu0 %v2214
        %v2662 = vpop.f32.mrb[0].mxu0
        %v2663 = vadd.f32 %v2438, %v2662
        %v2664 = vpop.f32.mrb[0].mxu0
        %2665 = vdwg.mxu0
        %v2666 = vmax.f32 %v2508, 0.0
        %v2667 = vmax.f32 %v2513, 0.0
        %v2668 = vmax.f32 %v2518, 0.0
        %v2669 = vmax.f32 %v2523, 0.0
        %v2670 = vmax.f32 %v2528, 0.0
        %v2671 = vmax.f32 %v2533, 0.0
        %v2672 = vmax.f32 %v2538, 0.0
        %v2673 = vmax.f32 %v2543, 0.0
        %v2674 = vmax.f32 %v2548, 0.0
        %v2675 = vmax.f32 %v2553, 0.0
        %v2676 = vmax.f32 %v2558, 0.0
        %v2677 = vmax.f32 %v2563, 0.0
        %v2678 = vmax.f32 %v2568, 0.0
        %v2679 = vmax.f32 %v2573, 0.0
        %v2680 = vmax.f32 %v2578, 0.0
        %v2681 = vmax.f32 %v2583, 0.0
        %v2682 = vmax.f32 %v2588, 0.0
        %v2683 = vmax.f32 %v2593, 0.0
        %v2684 = vmax.f32 %v2598, 0.0
        %v2685 = vmax.f32 %v2603, 0.0
        %v2686 = vmax.f32 %v2608, 0.0
        %v2687 = vmax.f32 %v2613, 0.0
        %v2688 = vmax.f32 %v2618, 0.0
        %v2689 = vmax.f32 %v2623, 0.0
        %v2690 = vmax.f32 %v2628, 0.0
        %v2691 = vmax.f32 %v2633, 0.0
        %v2692 = vmax.f32 %v2638, 0.0
        %v2693 = vmax.f32 %v2643, 0.0
        %v2694 = vmax.f32 %v2648, 0.0
        %v2695 = vmax.f32 %v2653, 0.0
        %v2696 = vmax.f32 %v2658, 0.0
        %v2697 = vmax.f32 %v2663, 0.0
        %vm2698 = vcmask 64512
        %2699 = vst.msk [vmem:[#allocation3] sm:$0xff] %vm2698, 0.0
        %2700 = vst.msk [vmem:[#allocation3 + $0x8] sm:$0xff] %vm2698, 0.0
        %vm2701 = vcmask 58368
        %2702 = vst.msk [vmem:[#allocation3 + $0x10] sm:$0x3] %vm2701, 0.0
        %2703 = vst.msk [vmem:[#allocation3 + $0x18] sm:$0xff] %vm2698, 0.0
        %2704 = vst.msk [vmem:[#allocation3 + $0x20] sm:$0xff] %vm2698, 0.0
        %2705 = vst.msk [vmem:[#allocation3 + $0x28] sm:$0x3] %vm2701, 0.0
        %2706 = vst.msk [vmem:[#allocation3 + $0x30] sm:$0xff] %vm2698, 0.0
        %2707 = vst.msk [vmem:[#allocation3 + $0x38] sm:$0xff] %vm2698, 0.0
        %2708 = vst.msk [vmem:[#allocation3 + $0x40] sm:$0x3] %vm2701, 0.0
        %2709 = vst.msk [vmem:[#allocation3 + $0x48] sm:$0xff] %vm2698, 0.0
        %2710 = vst.msk [vmem:[#allocation3 + $0x50] sm:$0xff] %vm2698, 0.0
        %2711 = vst.msk [vmem:[#allocation3 + $0x58] sm:$0x3] %vm2701, 0.0
        %2712 = vst.msk [vmem:[#allocation3 + $0x60] sm:$0xff] %vm2698, 0.0
        %2713 = vst.msk [vmem:[#allocation3 + $0x68] sm:$0xff] %vm2698, 0.0
        %2714 = vst.msk [vmem:[#allocation3 + $0x70] sm:$0x3] %vm2701, 0.0
        %2715 = vst.msk [vmem:[#allocation3 + $0x78] sm:$0xff] %vm2698, 0.0
        %2716 = vst.msk [vmem:[#allocation3 + $0x80] sm:$0xff] %vm2698, 0.0
        %2717 = vst.msk [vmem:[#allocation3 + $0x88] sm:$0x3] %vm2701, 0.0
        %2718 = vst.msk [vmem:[#allocation3 + $0x90] sm:$0xff] %vm2698, 0.0
        %2719 = vst.msk [vmem:[#allocation3 + $0x98] sm:$0xff] %vm2698, 0.0
        %2720 = vst.msk [vmem:[#allocation3 + $0xa0] sm:$0x3] %vm2701, 0.0
        %2721 = vst.msk [vmem:[#allocation3 + $0xa8] sm:$0xff] %vm2698, 0.0
        %2722 = vst.msk [vmem:[#allocation3 + $0xb0] sm:$0xff] %vm2698, 0.0
        %2723 = vst.msk [vmem:[#allocation3 + $0xb8] sm:$0x3] %vm2701, 0.0
        %2724 = vst.msk [vmem:[#allocation3 + $0xc0] sm:$0xff] %vm2698, 0.0
        %2725 = vst.msk [vmem:[#allocation3 + $0xc8] sm:$0xff] %vm2698, 0.0
        %2726 = vst.msk [vmem:[#allocation3 + $0xd0] sm:$0x3] %vm2701, 0.0
        %2727 = vst.msk [vmem:[#allocation3 + $0xd8] sm:$0xff] %vm2698, 0.0
        %2728 = vst.msk [vmem:[#allocation3 + $0xe0] sm:$0xff] %vm2698, 0.0
        %2729 = vst.msk [vmem:[#allocation3 + $0xe8] sm:$0x3] %vm2701, 0.0
        %2730 = vst.msk [vmem:[#allocation3 + $0xf0] sm:$0xff] %vm2698, 0.0
        %2731 = vst.msk [vmem:[#allocation3 + $0xf8] sm:$0xff] %vm2698, 0.0
        %2732 = vst.msk [vmem:[#allocation3 + $0x100] sm:$0x3] %vm2701, 0.0
        %2733 = vst.msk [vmem:[#allocation3 + $0x108] sm:$0xff] %vm2698, 0.0
        %2734 = vst.msk [vmem:[#allocation3 + $0x110] sm:$0xff] %vm2698, 0.0
        %2735 = vst.msk [vmem:[#allocation3 + $0x118] sm:$0x3] %vm2701, 0.0
        %2736 = vst.msk [vmem:[#allocation3 + $0x120] sm:$0xff] %vm2698, 0.0
        %2737 = vst.msk [vmem:[#allocation3 + $0x128] sm:$0xff] %vm2698, 0.0
        %2738 = vst.msk [vmem:[#allocation3 + $0x130] sm:$0x3] %vm2701, 0.0
        %2739 = vst.msk [vmem:[#allocation3 + $0x138] sm:$0xff] %vm2698, 0.0
        %2740 = vst.msk [vmem:[#allocation3 + $0x140] sm:$0xff] %vm2698, 0.0
        %2741 = vst.msk [vmem:[#allocation3 + $0x148] sm:$0x3] %vm2701, 0.0
        %2742 = vst.msk [vmem:[#allocation3 + $0x150] sm:$0xff] %vm2698, 0.0
        %2743 = vst.msk [vmem:[#allocation3 + $0x158] sm:$0xff] %vm2698, 0.0
        %2744 = vst.msk [vmem:[#allocation3 + $0x160] sm:$0x3] %vm2701, 0.0
        %2745 = vst.msk [vmem:[#allocation3 + $0x168] sm:$0xff] %vm2698, 0.0
        %2746 = vst.msk [vmem:[#allocation3 + $0x170] sm:$0xff] %vm2698, 0.0
        %2747 = vst.msk [vmem:[#allocation3 + $0x178] sm:$0x3] %vm2701, 0.0
        %2748 = vst.msk [vmem:[#allocation3 + $0x180] sm:$0xff] %vm2698, 0.0
        %2749 = vst.msk [vmem:[#allocation3 + $0x188] sm:$0xff] %vm2698, 0.0
        %2750 = vst.msk [vmem:[#allocation3 + $0x190] sm:$0x3] %vm2701, 0.0
        %2751 = vst.msk [vmem:[#allocation3 + $0x198] sm:$0xff] %vm2698, 0.0
        %2752 = vst.msk [vmem:[#allocation3 + $0x1a0] sm:$0xff] %vm2698, 0.0
        %2753 = vst.msk [vmem:[#allocation3 + $0x1a8] sm:$0x3] %vm2701, 0.0
        %2786 = vrot.lane.b32.xlu0 %v2666, 120
        %v2787 = vpop.permute.xlu0 %2786
        %2788 = vrot.lane.b32.xlu0 %v2667, 120
        %v2789 = vpop.permute.xlu0 %2788
        %2790 = vrot.lane.b32.xlu0 %v2668, 120
        %v2791 = vpop.permute.xlu0 %2790
        %2792 = vrot.lane.b32.xlu0 %v2669, 120
        %v2793 = vpop.permute.xlu0 %2792
        %2794 = vrot.lane.b32.xlu0 %v2670, 120
        %v2795 = vpop.permute.xlu0 %2794
        %2796 = vrot.lane.b32.xlu0 %v2671, 120
        %v2797 = vpop.permute.xlu0 %2796
        %2798 = vrot.lane.b32.xlu0 %v2672, 120
        %v2799 = vpop.permute.xlu0 %2798
        %2800 = vrot.lane.b32.xlu0 %v2673, 120
        %v2801 = vpop.permute.xlu0 %2800
        %2802 = vrot.lane.b32.xlu0 %v2674, 120
        %v2803 = vpop.permute.xlu0 %2802
        %2804 = vrot.lane.b32.xlu0 %v2675, 120
        %v2805 = vpop.permute.xlu0 %2804
        %2806 = vrot.lane.b32.xlu0 %v2676, 120
        %v2807 = vpop.permute.xlu0 %2806
        %2808 = vrot.lane.b32.xlu0 %v2677, 120
        %v2809 = vpop.permute.xlu0 %2808
        %2810 = vrot.lane.b32.xlu0 %v2678, 120
        %v2811 = vpop.permute.xlu0 %2810
        %2812 = vrot.lane.b32.xlu0 %v2679, 120
        %v2813 = vpop.permute.xlu0 %2812
        %2814 = vrot.lane.b32.xlu0 %v2680, 120
        %v2815 = vpop.permute.xlu0 %2814
        %2816 = vrot.lane.b32.xlu0 %v2681, 120
        %v2817 = vpop.permute.xlu0 %2816
        %2818 = vrot.lane.b32.xlu0 %v2682, 120
        %v2819 = vpop.permute.xlu0 %2818
        %2820 = vrot.lane.b32.xlu0 %v2683, 120
        %v2821 = vpop.permute.xlu0 %2820
        %2822 = vrot.lane.b32.xlu0 %v2684, 120
        %v2823 = vpop.permute.xlu0 %2822
        %2824 = vrot.lane.b32.xlu0 %v2685, 120
        %v2825 = vpop.permute.xlu0 %2824
        %2826 = vrot.lane.b32.xlu0 %v2686, 120
        %v2827 = vpop.permute.xlu0 %2826
        %2828 = vrot.lane.b32.xlu0 %v2687, 120
        %v2829 = vpop.permute.xlu0 %2828
        %2830 = vrot.lane.b32.xlu0 %v2688, 120
        %v2831 = vpop.permute.xlu0 %2830
        %2832 = vrot.lane.b32.xlu0 %v2689, 120
        %v2833 = vpop.permute.xlu0 %2832
        %2834 = vrot.lane.b32.xlu0 %v2690, 120
        %v2835 = vpop.permute.xlu0 %2834
        %2836 = vrot.lane.b32.xlu0 %v2691, 120
        %v2837 = vpop.permute.xlu0 %2836
        %2838 = vrot.lane.b32.xlu0 %v2692, 120
        %v2839 = vpop.permute.xlu0 %2838
        %2840 = vrot.lane.b32.xlu0 %v2693, 120
        %v2841 = vpop.permute.xlu0 %2840
        %2842 = vrot.lane.b32.xlu0 %v2694, 120
        %v2843 = vpop.permute.xlu0 %2842
        %2844 = vrot.lane.b32.xlu0 %v2695, 120
        %v2845 = vpop.permute.xlu0 %2844
        %2846 = vrot.lane.b32.xlu0 %v2696, 120
        %v2847 = vpop.permute.xlu0 %2846
        %2848 = vrot.lane.b32.xlu0 %v2697, 120
        %v2849 = vpop.permute.xlu0 %2848
        %s2882 = scalar_lea.vmem [#allocation3], 24
        %2883 = vst.msk [vmem:[%s2882 + $0x1] sm:$0xff] %vm2698, %v2787
        %2884 = vst.msk [vmem:[%s2882 + $0x9] sm:$0xff] %vm2698, %v2789
        %2885 = vst.msk [vmem:[%s2882 + $0x19] sm:$0xff] %vm2698, %v2791
        %2886 = vst.msk [vmem:[%s2882 + $0x21] sm:$0xff] %vm2698, %v2793
        %2887 = vst.msk [vmem:[%s2882 + $0x31] sm:$0xff] %vm2698, %v2795
        %2888 = vst.msk [vmem:[%s2882 + $0x39] sm:$0xff] %vm2698, %v2797
        %2889 = vst.msk [vmem:[%s2882 + $0x49] sm:$0xff] %vm2698, %v2799
        %2890 = vst.msk [vmem:[%s2882 + $0x51] sm:$0xff] %vm2698, %v2801
        %2891 = vst.msk [vmem:[%s2882 + $0x61] sm:$0xff] %vm2698, %v2803
        %2892 = vst.msk [vmem:[%s2882 + $0x69] sm:$0xff] %vm2698, %v2805
        %2893 = vst.msk [vmem:[%s2882 + $0x79] sm:$0xff] %vm2698, %v2807
        %2894 = vst.msk [vmem:[%s2882 + $0x81] sm:$0xff] %vm2698, %v2809
        %2895 = vst.msk [vmem:[%s2882 + $0x91] sm:$0xff] %vm2698, %v2811
        %2896 = vst.msk [vmem:[%s2882 + $0x99] sm:$0xff] %vm2698, %v2813
        %2897 = vst.msk [vmem:[%s2882 + $0xa9] sm:$0xff] %vm2698, %v2815
        %2898 = vst.msk [vmem:[%s2882 + $0xb1] sm:$0xff] %vm2698, %v2817
        %2899 = vst.msk [vmem:[%s2882 + $0xc1] sm:$0xff] %vm2698, %v2819
        %2900 = vst.msk [vmem:[%s2882 + $0xc9] sm:$0xff] %vm2698, %v2821
        %2901 = vst.msk [vmem:[%s2882 + $0xd9] sm:$0xff] %vm2698, %v2823
        %2902 = vst.msk [vmem:[%s2882 + $0xe1] sm:$0xff] %vm2698, %v2825
        %2903 = vst.msk [vmem:[%s2882 + $0xf1] sm:$0xff] %vm2698, %v2827
        %2904 = vst.msk [vmem:[%s2882 + $0xf9] sm:$0xff] %vm2698, %v2829
        %2905 = vst.msk [vmem:[%s2882 + $0x109] sm:$0xff] %vm2698, %v2831
        %2906 = vst.msk [vmem:[%s2882 + $0x111] sm:$0xff] %vm2698, %v2833
        %2907 = vst.msk [vmem:[%s2882 + $0x121] sm:$0xff] %vm2698, %v2835
        %2908 = vst.msk [vmem:[%s2882 + $0x129] sm:$0xff] %vm2698, %v2837
        %2909 = vst.msk [vmem:[%s2882 + $0x139] sm:$0xff] %vm2698, %v2839
        %2910 = vst.msk [vmem:[%s2882 + $0x141] sm:$0xff] %vm2698, %v2841
        %2911 = vst.msk [vmem:[%s2882 + $0x151] sm:$0xff] %vm2698, %v2843
        %2912 = vst.msk [vmem:[%s2882 + $0x159] sm:$0xff] %vm2698, %v2845
        %2913 = vst.msk [vmem:[%s2882 + $0x169] sm:$0xff] %vm2698, %v2847
        %2914 = vst.msk [vmem:[%s2882 + $0x171] sm:$0xff] %vm2698, %v2849
        %v2915 = vld [vmem:[#allocation3] sm:$0xff]
        %v2916 = vld [vmem:[#allocation3 + $0x8] sm:$0xff]
        %v2917 = vld [vmem:[#allocation3 + $0x18] sm:$0xff]
        %v2918 = vld [vmem:[#allocation3 + $0x20] sm:$0xff]
        %v2919 = vld [vmem:[#allocation3 + $0x30] sm:$0xff]
        %v2920 = vld [vmem:[#allocation3 + $0x38] sm:$0xff]
        %v2921 = vld [vmem:[#allocation3 + $0x48] sm:$0xff]
        %v2922 = vld [vmem:[#allocation3 + $0x50] sm:$0xff]
        %v2923 = vld [vmem:[#allocation3 + $0x60] sm:$0xff]
        %v2924 = vld [vmem:[#allocation3 + $0x68] sm:$0xff]
        %v2925 = vld [vmem:[#allocation3 + $0x78] sm:$0xff]
        %v2926 = vld [vmem:[#allocation3 + $0x80] sm:$0xff]
        %v2927 = vld [vmem:[#allocation3 + $0x90] sm:$0xff]
        %v2928 = vld [vmem:[#allocation3 + $0x98] sm:$0xff]
        %v2929 = vld [vmem:[#allocation3 + $0xa8] sm:$0xff]
        %v2930 = vld [vmem:[#allocation3 + $0xb0] sm:$0xff]
        %v2931 = vld [vmem:[#allocation3 + $0xc0] sm:$0xff]
        %v2932 = vld [vmem:[#allocation3 + $0xc8] sm:$0xff]
        %v2933 = vld [vmem:[#allocation3 + $0xd8] sm:$0xff]
        %v2934 = vld [vmem:[#allocation3 + $0xe0] sm:$0xff]
        %v2935 = vld [vmem:[#allocation3 + $0xf0] sm:$0xff]
        %v2936 = vld [vmem:[#allocation3 + $0xf8] sm:$0xff]
        %v2937 = vld [vmem:[#allocation3 + $0x108] sm:$0xff]
        %v2938 = vld [vmem:[#allocation3 + $0x110] sm:$0xff]
        %v2939 = vld [vmem:[#allocation3 + $0x120] sm:$0xff]
        %v2940 = vld [vmem:[#allocation3 + $0x128] sm:$0xff]
        %v2941 = vld [vmem:[#allocation3 + $0x138] sm:$0xff]
        %v2942 = vld [vmem:[#allocation3 + $0x140] sm:$0xff]
        %v2943 = vld [vmem:[#allocation3 + $0x150] sm:$0xff]
        %v2944 = vld [vmem:[#allocation3 + $0x158] sm:$0xff]
        %v2945 = vld [vmem:[#allocation3 + $0x168] sm:$0xff]
        %v2946 = vld [vmem:[#allocation3 + $0x170] sm:$0xff]
        %v2947 = vld [vmem:[#allocation3 + $0x1] sm:$0xff]
        %v2948 = vld [vmem:[#allocation3 + $0x9] sm:$0xff]
        %v2949 = vld [vmem:[#allocation3 + $0x19] sm:$0xff]
        %v2950 = vld [vmem:[#allocation3 + $0x21] sm:$0xff]
        %v2951 = vld [vmem:[#allocation3 + $0x31] sm:$0xff]
        %v2952 = vld [vmem:[#allocation3 + $0x39] sm:$0xff]
        %v2953 = vld [vmem:[#allocation3 + $0x49] sm:$0xff]
        %v2954 = vld [vmem:[#allocation3 + $0x51] sm:$0xff]
        %v2955 = vld [vmem:[#allocation3 + $0x61] sm:$0xff]
        %v2956 = vld [vmem:[#allocation3 + $0x69] sm:$0xff]
        %v2957 = vld [vmem:[#allocation3 + $0x79] sm:$0xff]
        %v2958 = vld [vmem:[#allocation3 + $0x81] sm:$0xff]
        %v2959 = vld [vmem:[#allocation3 + $0x91] sm:$0xff]
        %v2960 = vld [vmem:[#allocation3 + $0x99] sm:$0xff]
        %v2961 = vld [vmem:[#allocation3 + $0xa9] sm:$0xff]
        %v2962 = vld [vmem:[#allocation3 + $0xb1] sm:$0xff]
        %v2963 = vld [vmem:[#allocation3 + $0xc1] sm:$0xff]
        %v2964 = vld [vmem:[#allocation3 + $0xc9] sm:$0xff]
        %v2965 = vld [vmem:[#allocation3 + $0xd9] sm:$0xff]
        %v2966 = vld [vmem:[#allocation3 + $0xe1] sm:$0xff]
        %v2967 = vld [vmem:[#allocation3 + $0xf1] sm:$0xff]
        %v2968 = vld [vmem:[#allocation3 + $0xf9] sm:$0xff]
        %v2969 = vld [vmem:[#allocation3 + $0x109] sm:$0xff]
        %v2970 = vld [vmem:[#allocation3 + $0x111] sm:$0xff]
        %v2971 = vld [vmem:[#allocation3 + $0x121] sm:$0xff]
        %v2972 = vld [vmem:[#allocation3 + $0x129] sm:$0xff]
        %v2973 = vld [vmem:[#allocation3 + $0x139] sm:$0xff]
        %v2974 = vld [vmem:[#allocation3 + $0x141] sm:$0xff]
        %v2975 = vld [vmem:[#allocation3 + $0x151] sm:$0xff]
        %v2976 = vld [vmem:[#allocation3 + $0x159] sm:$0xff]
        %v2977 = vld [vmem:[#allocation3 + $0x169] sm:$0xff]
        %v2978 = vld [vmem:[#allocation3 + $0x171] sm:$0xff]
        %v2979 = vld [vmem:[#allocation3 + $0x2] sm:$0xff]
        %v2980 = vld [vmem:[#allocation3 + $0xa] sm:$0xff]
        %v2981 = vld [vmem:[#allocation3 + $0x1a] sm:$0xff]
        %v2982 = vld [vmem:[#allocation3 + $0x22] sm:$0xff]
        %v2983 = vld [vmem:[#allocation3 + $0x32] sm:$0xff]
        %v2984 = vld [vmem:[#allocation3 + $0x3a] sm:$0xff]
        %v2985 = vld [vmem:[#allocation3 + $0x4a] sm:$0xff]
        %v2986 = vld [vmem:[#allocation3 + $0x52] sm:$0xff]
        %v2987 = vld [vmem:[#allocation3 + $0x62] sm:$0xff]
        %v2988 = vld [vmem:[#allocation3 + $0x6a] sm:$0xff]
        %v2989 = vld [vmem:[#allocation3 + $0x7a] sm:$0xff]
        %v2990 = vld [vmem:[#allocation3 + $0x82] sm:$0xff]
        %v2991 = vld [vmem:[#allocation3 + $0x92] sm:$0xff]
        %v2992 = vld [vmem:[#allocation3 + $0x9a] sm:$0xff]
        %v2993 = vld [vmem:[#allocation3 + $0xaa] sm:$0xff]
        %v2994 = vld [vmem:[#allocation3 + $0xb2] sm:$0xff]
        %v2995 = vld [vmem:[#allocation3 + $0xc2] sm:$0xff]
        %v2996 = vld [vmem:[#allocation3 + $0xca] sm:$0xff]
        %v2997 = vld [vmem:[#allocation3 + $0xda] sm:$0xff]
        %v2998 = vld [vmem:[#allocation3 + $0xe2] sm:$0xff]
        %v2999 = vld [vmem:[#allocation3 + $0xf2] sm:$0xff]
        %v3000 = vld [vmem:[#allocation3 + $0xfa] sm:$0xff]
        %v3001 = vld [vmem:[#allocation3 + $0x10a] sm:$0xff]
        %v3002 = vld [vmem:[#allocation3 + $0x112] sm:$0xff]
        %v3003 = vld [vmem:[#allocation3 + $0x122] sm:$0xff]
        %v3004 = vld [vmem:[#allocation3 + $0x12a] sm:$0xff]
        %v3005 = vld [vmem:[#allocation3 + $0x13a] sm:$0xff]
        %v3006 = vld [vmem:[#allocation3 + $0x142] sm:$0xff]
        %v3007 = vld [vmem:[#allocation3 + $0x152] sm:$0xff]
        %v3008 = vld [vmem:[#allocation3 + $0x15a] sm:$0xff]
        %v3009 = vld [vmem:[#allocation3 + $0x16a] sm:$0xff]
        %v3010 = vld [vmem:[#allocation3 + $0x172] sm:$0xff]
        %v3011 = vld [vmem:[%s2882] sm:$0xff]
        %v3012 = vld [vmem:[%s2882 + $0x8] sm:$0xff]
        %v3013 = vld [vmem:[%s2882 + $0x18] sm:$0xff]
        %v3014 = vld [vmem:[%s2882 + $0x20] sm:$0xff]
        %v3015 = vld [vmem:[%s2882 + $0x30] sm:$0xff]
        %v3016 = vld [vmem:[%s2882 + $0x38] sm:$0xff]
        %v3017 = vld [vmem:[%s2882 + $0x48] sm:$0xff]
        %v3018 = vld [vmem:[%s2882 + $0x50] sm:$0xff]
        %v3019 = vld [vmem:[%s2882 + $0x60] sm:$0xff]
        %v3020 = vld [vmem:[%s2882 + $0x68] sm:$0xff]
        %v3021 = vld [vmem:[%s2882 + $0x78] sm:$0xff]
        %v3022 = vld [vmem:[%s2882 + $0x80] sm:$0xff]
        %v3023 = vld [vmem:[%s2882 + $0x90] sm:$0xff]
        %v3024 = vld [vmem:[%s2882 + $0x98] sm:$0xff]
        %v3025 = vld [vmem:[%s2882 + $0xa8] sm:$0xff]
        %v3026 = vld [vmem:[%s2882 + $0xb0] sm:$0xff]
        %v3027 = vld [vmem:[%s2882 + $0xc0] sm:$0xff]
        %v3028 = vld [vmem:[%s2882 + $0xc8] sm:$0xff]
        %v3029 = vld [vmem:[%s2882 + $0xd8] sm:$0xff]
        %v3030 = vld [vmem:[%s2882 + $0xe0] sm:$0xff]
        %v3031 = vld [vmem:[%s2882 + $0xf0] sm:$0xff]
        %v3032 = vld [vmem:[%s2882 + $0xf8] sm:$0xff]
        %v3033 = vld [vmem:[%s2882 + $0x108] sm:$0xff]
        %v3034 = vld [vmem:[%s2882 + $0x110] sm:$0xff]
        %v3035 = vld [vmem:[%s2882 + $0x120] sm:$0xff]
        %v3036 = vld [vmem:[%s2882 + $0x128] sm:$0xff]
        %v3037 = vld [vmem:[%s2882 + $0x138] sm:$0xff]
        %v3038 = vld [vmem:[%s2882 + $0x140] sm:$0xff]
        %v3039 = vld [vmem:[%s2882 + $0x150] sm:$0xff]
        %v3040 = vld [vmem:[%s2882 + $0x158] sm:$0xff]
        %v3041 = vld [vmem:[%s2882 + $0x168] sm:$0xff]
        %v3042 = vld [vmem:[%s2882 + $0x170] sm:$0xff]
        %v3043 = vld [vmem:[%s2882 + $0x1] sm:$0xff]
        %v3044 = vld [vmem:[%s2882 + $0x9] sm:$0xff]
        %v3045 = vld [vmem:[%s2882 + $0x19] sm:$0xff]
        %v3046 = vld [vmem:[%s2882 + $0x21] sm:$0xff]
        %v3047 = vld [vmem:[%s2882 + $0x31] sm:$0xff]
        %v3048 = vld [vmem:[%s2882 + $0x39] sm:$0xff]
        %v3049 = vld [vmem:[%s2882 + $0x49] sm:$0xff]
        %v3050 = vld [vmem:[%s2882 + $0x51] sm:$0xff]
        %v3051 = vld [vmem:[%s2882 + $0x61] sm:$0xff]
        %v3052 = vld [vmem:[%s2882 + $0x69] sm:$0xff]
        %v3053 = vld [vmem:[%s2882 + $0x79] sm:$0xff]
        %v3054 = vld [vmem:[%s2882 + $0x81] sm:$0xff]
        %v3055 = vld [vmem:[%s2882 + $0x91] sm:$0xff]
        %v3056 = vld [vmem:[%s2882 + $0x99] sm:$0xff]
        %v3057 = vld [vmem:[%s2882 + $0xa9] sm:$0xff]
        %v3058 = vld [vmem:[%s2882 + $0xb1] sm:$0xff]
        %v3059 = vld [vmem:[%s2882 + $0xc1] sm:$0xff]
        %v3060 = vld [vmem:[%s2882 + $0xc9] sm:$0xff]
        %v3061 = vld [vmem:[%s2882 + $0xd9] sm:$0xff]
        %v3062 = vld [vmem:[%s2882 + $0xe1] sm:$0xff]
        %v3063 = vld [vmem:[%s2882 + $0xf1] sm:$0xff]
        %v3064 = vld [vmem:[%s2882 + $0xf9] sm:$0xff]
        %v3065 = vld [vmem:[%s2882 + $0x109] sm:$0xff]
        %v3066 = vld [vmem:[%s2882 + $0x111] sm:$0xff]
        %v3067 = vld [vmem:[%s2882 + $0x121] sm:$0xff]
        %v3068 = vld [vmem:[%s2882 + $0x129] sm:$0xff]
        %v3069 = vld [vmem:[%s2882 + $0x139] sm:$0xff]
        %v3070 = vld [vmem:[%s2882 + $0x141] sm:$0xff]
        %v3071 = vld [vmem:[%s2882 + $0x151] sm:$0xff]
        %v3072 = vld [vmem:[%s2882 + $0x159] sm:$0xff]
        %v3073 = vld [vmem:[%s2882 + $0x169] sm:$0xff]
        %v3074 = vld [vmem:[%s2882 + $0x171] sm:$0xff]
        %v3075 = vld [vmem:[%s2882 + $0x2] sm:$0xff]
        %v3076 = vld [vmem:[%s2882 + $0xa] sm:$0xff]
        %v3077 = vld [vmem:[%s2882 + $0x1a] sm:$0xff]
        %v3078 = vld [vmem:[%s2882 + $0x22] sm:$0xff]
        %v3079 = vld [vmem:[%s2882 + $0x32] sm:$0xff]
        %v3080 = vld [vmem:[%s2882 + $0x3a] sm:$0xff]
        %v3081 = vld [vmem:[%s2882 + $0x4a] sm:$0xff]
        %v3082 = vld [vmem:[%s2882 + $0x52] sm:$0xff]
        %v3083 = vld [vmem:[%s2882 + $0x62] sm:$0xff]
        %v3084 = vld [vmem:[%s2882 + $0x6a] sm:$0xff]
        %v3085 = vld [vmem:[%s2882 + $0x7a] sm:$0xff]
        %v3086 = vld [vmem:[%s2882 + $0x82] sm:$0xff]
        %v3087 = vld [vmem:[%s2882 + $0x92] sm:$0xff]
        %v3088 = vld [vmem:[%s2882 + $0x9a] sm:$0xff]
        %v3089 = vld [vmem:[%s2882 + $0xaa] sm:$0xff]
        %v3090 = vld [vmem:[%s2882 + $0xb2] sm:$0xff]
        %v3091 = vld [vmem:[%s2882 + $0xc2] sm:$0xff]
        %v3092 = vld [vmem:[%s2882 + $0xca] sm:$0xff]
        %v3093 = vld [vmem:[%s2882 + $0xda] sm:$0xff]
        %v3094 = vld [vmem:[%s2882 + $0xe2] sm:$0xff]
        %v3095 = vld [vmem:[%s2882 + $0xf2] sm:$0xff]
        %v3096 = vld [vmem:[%s2882 + $0xfa] sm:$0xff]
        %v3097 = vld [vmem:[%s2882 + $0x10a] sm:$0xff]
        %v3098 = vld [vmem:[%s2882 + $0x112] sm:$0xff]
        %v3099 = vld [vmem:[%s2882 + $0x122] sm:$0xff]
        %v3100 = vld [vmem:[%s2882 + $0x12a] sm:$0xff]
        %v3101 = vld [vmem:[%s2882 + $0x13a] sm:$0xff]
        %v3102 = vld [vmem:[%s2882 + $0x142] sm:$0xff]
        %v3103 = vld [vmem:[%s2882 + $0x152] sm:$0xff]
        %v3104 = vld [vmem:[%s2882 + $0x15a] sm:$0xff]
        %v3105 = vld [vmem:[%s2882 + $0x16a] sm:$0xff]
        %v3106 = vld [vmem:[%s2882 + $0x172] sm:$0xff]
        %s3107 = scalar_lea.vmem [#allocation3], 48
        %v3108 = vld [vmem:[%s3107] sm:$0xff]
        %v3109 = vld [vmem:[%s3107 + $0x8] sm:$0xff]
        %v3110 = vld [vmem:[%s3107 + $0x18] sm:$0xff]
        %v3111 = vld [vmem:[%s3107 + $0x20] sm:$0xff]
        %v3112 = vld [vmem:[%s3107 + $0x30] sm:$0xff]
        %v3113 = vld [vmem:[%s3107 + $0x38] sm:$0xff]
        %v3114 = vld [vmem:[%s3107 + $0x48] sm:$0xff]
        %v3115 = vld [vmem:[%s3107 + $0x50] sm:$0xff]
        %v3116 = vld [vmem:[%s3107 + $0x60] sm:$0xff]
        %v3117 = vld [vmem:[%s3107 + $0x68] sm:$0xff]
        %v3118 = vld [vmem:[%s3107 + $0x78] sm:$0xff]
        %v3119 = vld [vmem:[%s3107 + $0x80] sm:$0xff]
        %v3120 = vld [vmem:[%s3107 + $0x90] sm:$0xff]
        %v3121 = vld [vmem:[%s3107 + $0x98] sm:$0xff]
        %v3122 = vld [vmem:[%s3107 + $0xa8] sm:$0xff]
        %v3123 = vld [vmem:[%s3107 + $0xb0] sm:$0xff]
        %v3124 = vld [vmem:[%s3107 + $0xc0] sm:$0xff]
        %v3125 = vld [vmem:[%s3107 + $0xc8] sm:$0xff]
        %v3126 = vld [vmem:[%s3107 + $0xd8] sm:$0xff]
        %v3127 = vld [vmem:[%s3107 + $0xe0] sm:$0xff]
        %v3128 = vld [vmem:[%s3107 + $0xf0] sm:$0xff]
        %v3129 = vld [vmem:[%s3107 + $0xf8] sm:$0xff]
        %v3130 = vld [vmem:[%s3107 + $0x108] sm:$0xff]
        %v3131 = vld [vmem:[%s3107 + $0x110] sm:$0xff]
        %v3132 = vld [vmem:[%s3107 + $0x120] sm:$0xff]
        %v3133 = vld [vmem:[%s3107 + $0x128] sm:$0xff]
        %v3134 = vld [vmem:[%s3107 + $0x138] sm:$0xff]
        %v3135 = vld [vmem:[%s3107 + $0x140] sm:$0xff]
        %v3136 = vld [vmem:[%s3107 + $0x150] sm:$0xff]
        %v3137 = vld [vmem:[%s3107 + $0x158] sm:$0xff]
        %v3138 = vld [vmem:[%s3107 + $0x168] sm:$0xff]
        %v3139 = vld [vmem:[%s3107 + $0x170] sm:$0xff]
        %v3140 = vld [vmem:[%s3107 + $0x1] sm:$0xff]
        %v3141 = vld [vmem:[%s3107 + $0x9] sm:$0xff]
        %v3142 = vld [vmem:[%s3107 + $0x19] sm:$0xff]
        %v3143 = vld [vmem:[%s3107 + $0x21] sm:$0xff]
        %v3144 = vld [vmem:[%s3107 + $0x31] sm:$0xff]
        %v3145 = vld [vmem:[%s3107 + $0x39] sm:$0xff]
        %v3146 = vld [vmem:[%s3107 + $0x49] sm:$0xff]
        %v3147 = vld [vmem:[%s3107 + $0x51] sm:$0xff]
        %v3148 = vld [vmem:[%s3107 + $0x61] sm:$0xff]
        %v3149 = vld [vmem:[%s3107 + $0x69] sm:$0xff]
        %v3150 = vld [vmem:[%s3107 + $0x79] sm:$0xff]
        %v3151 = vld [vmem:[%s3107 + $0x81] sm:$0xff]
        %v3152 = vld [vmem:[%s3107 + $0x91] sm:$0xff]
        %v3153 = vld [vmem:[%s3107 + $0x99] sm:$0xff]
        %v3154 = vld [vmem:[%s3107 + $0xa9] sm:$0xff]
        %v3155 = vld [vmem:[%s3107 + $0xb1] sm:$0xff]
        %v3156 = vld [vmem:[%s3107 + $0xc1] sm:$0xff]
        %v3157 = vld [vmem:[%s3107 + $0xc9] sm:$0xff]
        %v3158 = vld [vmem:[%s3107 + $0xd9] sm:$0xff]
        %v3159 = vld [vmem:[%s3107 + $0xe1] sm:$0xff]
        %v3160 = vld [vmem:[%s3107 + $0xf1] sm:$0xff]
        %v3161 = vld [vmem:[%s3107 + $0xf9] sm:$0xff]
        %v3162 = vld [vmem:[%s3107 + $0x109] sm:$0xff]
        %v3163 = vld [vmem:[%s3107 + $0x111] sm:$0xff]
        %v3164 = vld [vmem:[%s3107 + $0x121] sm:$0xff]
        %v3165 = vld [vmem:[%s3107 + $0x129] sm:$0xff]
        %v3166 = vld [vmem:[%s3107 + $0x139] sm:$0xff]
        %v3167 = vld [vmem:[%s3107 + $0x141] sm:$0xff]
        %v3168 = vld [vmem:[%s3107 + $0x151] sm:$0xff]
        %v3169 = vld [vmem:[%s3107 + $0x159] sm:$0xff]
        %v3170 = vld [vmem:[%s3107 + $0x169] sm:$0xff]
        %v3171 = vld [vmem:[%s3107 + $0x171] sm:$0xff]
        %v3172 = vld [vmem:[%s3107 + $0x2] sm:$0xff]
        %v3173 = vld [vmem:[%s3107 + $0xa] sm:$0xff]
        %v3174 = vld [vmem:[%s3107 + $0x1a] sm:$0xff]
        %v3175 = vld [vmem:[%s3107 + $0x22] sm:$0xff]
        %v3176 = vld [vmem:[%s3107 + $0x32] sm:$0xff]
        %v3177 = vld [vmem:[%s3107 + $0x3a] sm:$0xff]
        %v3178 = vld [vmem:[%s3107 + $0x4a] sm:$0xff]
        %v3179 = vld [vmem:[%s3107 + $0x52] sm:$0xff]
        %v3180 = vld [vmem:[%s3107 + $0x62] sm:$0xff]
        %v3181 = vld [vmem:[%s3107 + $0x6a] sm:$0xff]
        %v3182 = vld [vmem:[%s3107 + $0x7a] sm:$0xff]
        %v3183 = vld [vmem:[%s3107 + $0x82] sm:$0xff]
        %v3184 = vld [vmem:[%s3107 + $0x92] sm:$0xff]
        %v3185 = vld [vmem:[%s3107 + $0x9a] sm:$0xff]
        %v3186 = vld [vmem:[%s3107 + $0xaa] sm:$0xff]
        %v3187 = vld [vmem:[%s3107 + $0xb2] sm:$0xff]
        %v3188 = vld [vmem:[%s3107 + $0xc2] sm:$0xff]
        %v3189 = vld [vmem:[%s3107 + $0xca] sm:$0xff]
        %v3190 = vld [vmem:[%s3107 + $0xda] sm:$0xff]
        %v3191 = vld [vmem:[%s3107 + $0xe2] sm:$0xff]
        %v3192 = vld [vmem:[%s3107 + $0xf2] sm:$0xff]
        %v3193 = vld [vmem:[%s3107 + $0xfa] sm:$0xff]
        %v3194 = vld [vmem:[%s3107 + $0x10a] sm:$0xff]
        %v3195 = vld [vmem:[%s3107 + $0x112] sm:$0xff]
        %v3196 = vld [vmem:[%s3107 + $0x122] sm:$0xff]
        %v3197 = vld [vmem:[%s3107 + $0x12a] sm:$0xff]
        %v3198 = vld [vmem:[%s3107 + $0x13a] sm:$0xff]
        %v3199 = vld [vmem:[%s3107 + $0x142] sm:$0xff]
        %v3200 = vld [vmem:[%s3107 + $0x152] sm:$0xff]
        %v3201 = vld [vmem:[%s3107 + $0x15a] sm:$0xff]
        %v3202 = vld [vmem:[%s3107 + $0x16a] sm:$0xff]
        %v3203 = vld [vmem:[%s3107 + $0x172] sm:$0xff]
        %3236 = vrot.lane.b32.xlu0 %v2947, 8
        %v3237 = vpop.permute.xlu0 %3236
        %3238 = vrot.lane.b32.xlu0 %v2948, 8
        %v3239 = vpop.permute.xlu0 %3238
        %3240 = vrot.lane.b32.xlu0 %v2949, 8
        %v3241 = vpop.permute.xlu0 %3240
        %3242 = vrot.lane.b32.xlu0 %v2950, 8
        %v3243 = vpop.permute.xlu0 %3242
        %3244 = vrot.lane.b32.xlu0 %v2951, 8
        %v3245 = vpop.permute.xlu0 %3244
        %3246 = vrot.lane.b32.xlu0 %v2952, 8
        %v3247 = vpop.permute.xlu0 %3246
        %3248 = vrot.lane.b32.xlu0 %v2953, 8
        %v3249 = vpop.permute.xlu0 %3248
        %3250 = vrot.lane.b32.xlu0 %v2954, 8
        %v3251 = vpop.permute.xlu0 %3250
        %3252 = vrot.lane.b32.xlu0 %v2955, 8
        %v3253 = vpop.permute.xlu0 %3252
        %3254 = vrot.lane.b32.xlu0 %v2956, 8
        %v3255 = vpop.permute.xlu0 %3254
        %3256 = vrot.lane.b32.xlu0 %v2957, 8
        %v3257 = vpop.permute.xlu0 %3256
        %3258 = vrot.lane.b32.xlu0 %v2958, 8
        %v3259 = vpop.permute.xlu0 %3258
        %3260 = vrot.lane.b32.xlu0 %v2959, 8
        %v3261 = vpop.permute.xlu0 %3260
        %3262 = vrot.lane.b32.xlu0 %v2960, 8
        %v3263 = vpop.permute.xlu0 %3262
        %3264 = vrot.lane.b32.xlu0 %v2961, 8
        %v3265 = vpop.permute.xlu0 %3264
        %3266 = vrot.lane.b32.xlu0 %v2962, 8
        %v3267 = vpop.permute.xlu0 %3266
        %3268 = vrot.lane.b32.xlu0 %v2963, 8
        %v3269 = vpop.permute.xlu0 %3268
        %3270 = vrot.lane.b32.xlu0 %v2964, 8
        %v3271 = vpop.permute.xlu0 %3270
        %3272 = vrot.lane.b32.xlu0 %v2965, 8
        %v3273 = vpop.permute.xlu0 %3272
        %3274 = vrot.lane.b32.xlu0 %v2966, 8
        %v3275 = vpop.permute.xlu0 %3274
        %3276 = vrot.lane.b32.xlu0 %v2967, 8
        %v3277 = vpop.permute.xlu0 %3276
        %3278 = vrot.lane.b32.xlu0 %v2968, 8
        %v3279 = vpop.permute.xlu0 %3278
        %3280 = vrot.lane.b32.xlu0 %v2969, 8
        %v3281 = vpop.permute.xlu0 %3280
        %3282 = vrot.lane.b32.xlu0 %v2970, 8
        %v3283 = vpop.permute.xlu0 %3282
        %3284 = vrot.lane.b32.xlu0 %v2971, 8
        %v3285 = vpop.permute.xlu0 %3284
        %3286 = vrot.lane.b32.xlu0 %v2972, 8
        %v3287 = vpop.permute.xlu0 %3286
        %3288 = vrot.lane.b32.xlu0 %v2973, 8
        %v3289 = vpop.permute.xlu0 %3288
        %3290 = vrot.lane.b32.xlu0 %v2974, 8
        %v3291 = vpop.permute.xlu0 %3290
        %3292 = vrot.lane.b32.xlu0 %v2975, 8
        %v3293 = vpop.permute.xlu0 %3292
        %3294 = vrot.lane.b32.xlu0 %v2976, 8
        %v3295 = vpop.permute.xlu0 %3294
        %3296 = vrot.lane.b32.xlu0 %v2977, 8
        %v3297 = vpop.permute.xlu0 %3296
        %3298 = vrot.lane.b32.xlu0 %v2978, 8
        %v3299 = vpop.permute.xlu0 %3298
        %3364 = vrot.lane.b32.xlu0 %v2979, 16
        %v3365 = vpop.permute.xlu0 %3364
        %3366 = vrot.lane.b32.xlu0 %v2980, 16
        %v3367 = vpop.permute.xlu0 %3366
        %3368 = vrot.lane.b32.xlu0 %v2981, 16
        %v3369 = vpop.permute.xlu0 %3368
        %3370 = vrot.lane.b32.xlu0 %v2982, 16
        %v3371 = vpop.permute.xlu0 %3370
        %3372 = vrot.lane.b32.xlu0 %v2983, 16
        %v3373 = vpop.permute.xlu0 %3372
        %3374 = vrot.lane.b32.xlu0 %v2984, 16
        %v3375 = vpop.permute.xlu0 %3374
        %3376 = vrot.lane.b32.xlu0 %v2985, 16
        %v3377 = vpop.permute.xlu0 %3376
        %3378 = vrot.lane.b32.xlu0 %v2986, 16
        %v3379 = vpop.permute.xlu0 %3378
        %3380 = vrot.lane.b32.xlu0 %v2987, 16
        %v3381 = vpop.permute.xlu0 %3380
        %3382 = vrot.lane.b32.xlu0 %v2988, 16
        %v3383 = vpop.permute.xlu0 %3382
        %3384 = vrot.lane.b32.xlu0 %v2989, 16
        %v3385 = vpop.permute.xlu0 %3384
        %3386 = vrot.lane.b32.xlu0 %v2990, 16
        %v3387 = vpop.permute.xlu0 %3386
        %3388 = vrot.lane.b32.xlu0 %v2991, 16
        %v3389 = vpop.permute.xlu0 %3388
        %3390 = vrot.lane.b32.xlu0 %v2992, 16
        %v3391 = vpop.permute.xlu0 %3390
        %3392 = vrot.lane.b32.xlu0 %v2993, 16
        %v3393 = vpop.permute.xlu0 %3392
        %3394 = vrot.lane.b32.xlu0 %v2994, 16
        %v3395 = vpop.permute.xlu0 %3394
        %3396 = vrot.lane.b32.xlu0 %v2995, 16
        %v3397 = vpop.permute.xlu0 %3396
        %3398 = vrot.lane.b32.xlu0 %v2996, 16
        %v3399 = vpop.permute.xlu0 %3398
        %3400 = vrot.lane.b32.xlu0 %v2997, 16
        %v3401 = vpop.permute.xlu0 %3400
        %3402 = vrot.lane.b32.xlu0 %v2998, 16
        %v3403 = vpop.permute.xlu0 %3402
        %3404 = vrot.lane.b32.xlu0 %v2999, 16
        %v3405 = vpop.permute.xlu0 %3404
        %3406 = vrot.lane.b32.xlu0 %v3000, 16
        %v3407 = vpop.permute.xlu0 %3406
        %3408 = vrot.lane.b32.xlu0 %v3001, 16
        %v3409 = vpop.permute.xlu0 %3408
        %3410 = vrot.lane.b32.xlu0 %v3002, 16
        %v3411 = vpop.permute.xlu0 %3410
        %3412 = vrot.lane.b32.xlu0 %v3003, 16
        %v3413 = vpop.permute.xlu0 %3412
        %3414 = vrot.lane.b32.xlu0 %v3004, 16
        %v3415 = vpop.permute.xlu0 %3414
        %3416 = vrot.lane.b32.xlu0 %v3005, 16
        %v3417 = vpop.permute.xlu0 %3416
        %3418 = vrot.lane.b32.xlu0 %v3006, 16
        %v3419 = vpop.permute.xlu0 %3418
        %3420 = vrot.lane.b32.xlu0 %v3007, 16
        %v3421 = vpop.permute.xlu0 %3420
        %3422 = vrot.lane.b32.xlu0 %v3008, 16
        %v3423 = vpop.permute.xlu0 %3422
        %3424 = vrot.lane.b32.xlu0 %v3009, 16
        %v3425 = vpop.permute.xlu0 %3424
        %3426 = vrot.lane.b32.xlu0 %v3010, 16
        %v3427 = vpop.permute.xlu0 %3426
        %3492 = vrot.lane.b32.xlu0 %v3011, 24
        %v3493 = vpop.permute.xlu0 %3492
        %3494 = vrot.lane.b32.xlu0 %v3012, 24
        %v3495 = vpop.permute.xlu0 %3494
        %3496 = vrot.lane.b32.xlu0 %v3013, 24
        %v3497 = vpop.permute.xlu0 %3496
        %3498 = vrot.lane.b32.xlu0 %v3014, 24
        %v3499 = vpop.permute.xlu0 %3498
        %3500 = vrot.lane.b32.xlu0 %v3015, 24
        %v3501 = vpop.permute.xlu0 %3500
        %3502 = vrot.lane.b32.xlu0 %v3016, 24
        %v3503 = vpop.permute.xlu0 %3502
        %3504 = vrot.lane.b32.xlu0 %v3017, 24
        %v3505 = vpop.permute.xlu0 %3504
        %3506 = vrot.lane.b32.xlu0 %v3018, 24
        %v3507 = vpop.permute.xlu0 %3506
        %3508 = vrot.lane.b32.xlu0 %v3019, 24
        %v3509 = vpop.permute.xlu0 %3508
        %3510 = vrot.lane.b32.xlu0 %v3020, 24
        %v3511 = vpop.permute.xlu0 %3510
        %3512 = vrot.lane.b32.xlu0 %v3021, 24
        %v3513 = vpop.permute.xlu0 %3512
        %3514 = vrot.lane.b32.xlu0 %v3022, 24
        %v3515 = vpop.permute.xlu0 %3514
        %3516 = vrot.lane.b32.xlu0 %v3023, 24
        %v3517 = vpop.permute.xlu0 %3516
        %3518 = vrot.lane.b32.xlu0 %v3024, 24
        %v3519 = vpop.permute.xlu0 %3518
        %3520 = vrot.lane.b32.xlu0 %v3025, 24
        %v3521 = vpop.permute.xlu0 %3520
        %3522 = vrot.lane.b32.xlu0 %v3026, 24
        %v3523 = vpop.permute.xlu0 %3522
        %3524 = vrot.lane.b32.xlu0 %v3027, 24
        %v3525 = vpop.permute.xlu0 %3524
        %3526 = vrot.lane.b32.xlu0 %v3028, 24
        %v3527 = vpop.permute.xlu0 %3526
        %3528 = vrot.lane.b32.xlu0 %v3029, 24
        %v3529 = vpop.permute.xlu0 %3528
        %3530 = vrot.lane.b32.xlu0 %v3030, 24
        %v3531 = vpop.permute.xlu0 %3530
        %3532 = vrot.lane.b32.xlu0 %v3031, 24
        %v3533 = vpop.permute.xlu0 %3532
        %3534 = vrot.lane.b32.xlu0 %v3032, 24
        %v3535 = vpop.permute.xlu0 %3534
        %3536 = vrot.lane.b32.xlu0 %v3033, 24
        %v3537 = vpop.permute.xlu0 %3536
        %3538 = vrot.lane.b32.xlu0 %v3034, 24
        %v3539 = vpop.permute.xlu0 %3538
        %3540 = vrot.lane.b32.xlu0 %v3035, 24
        %v3541 = vpop.permute.xlu0 %3540
        %3542 = vrot.lane.b32.xlu0 %v3036, 24
        %v3543 = vpop.permute.xlu0 %3542
        %3544 = vrot.lane.b32.xlu0 %v3037, 24
        %v3545 = vpop.permute.xlu0 %3544
        %3546 = vrot.lane.b32.xlu0 %v3038, 24
        %v3547 = vpop.permute.xlu0 %3546
        %3548 = vrot.lane.b32.xlu0 %v3039, 24
        %v3549 = vpop.permute.xlu0 %3548
        %3550 = vrot.lane.b32.xlu0 %v3040, 24
        %v3551 = vpop.permute.xlu0 %3550
        %3552 = vrot.lane.b32.xlu0 %v3041, 24
        %v3553 = vpop.permute.xlu0 %3552
        %3554 = vrot.lane.b32.xlu0 %v3042, 24
        %v3555 = vpop.permute.xlu0 %3554
        %3620 = vrot.lane.b32.xlu0 %v3043, 32
        %v3621 = vpop.permute.xlu0 %3620
        %3622 = vrot.lane.b32.xlu0 %v3044, 32
        %v3623 = vpop.permute.xlu0 %3622
        %3624 = vrot.lane.b32.xlu0 %v3045, 32
        %v3625 = vpop.permute.xlu0 %3624
        %3626 = vrot.lane.b32.xlu0 %v3046, 32
        %v3627 = vpop.permute.xlu0 %3626
        %3628 = vrot.lane.b32.xlu0 %v3047, 32
        %v3629 = vpop.permute.xlu0 %3628
        %3630 = vrot.lane.b32.xlu0 %v3048, 32
        %v3631 = vpop.permute.xlu0 %3630
        %3632 = vrot.lane.b32.xlu0 %v3049, 32
        %v3633 = vpop.permute.xlu0 %3632
        %3634 = vrot.lane.b32.xlu0 %v3050, 32
        %v3635 = vpop.permute.xlu0 %3634
        %3636 = vrot.lane.b32.xlu0 %v3051, 32
        %v3637 = vpop.permute.xlu0 %3636
        %3638 = vrot.lane.b32.xlu0 %v3052, 32
        %v3639 = vpop.permute.xlu0 %3638
        %3640 = vrot.lane.b32.xlu0 %v3053, 32
        %v3641 = vpop.permute.xlu0 %3640
        %3642 = vrot.lane.b32.xlu0 %v3054, 32
        %v3643 = vpop.permute.xlu0 %3642
        %3644 = vrot.lane.b32.xlu0 %v3055, 32
        %v3645 = vpop.permute.xlu0 %3644
        %3646 = vrot.lane.b32.xlu0 %v3056, 32
        %v3647 = vpop.permute.xlu0 %3646
        %3648 = vrot.lane.b32.xlu0 %v3057, 32
        %v3649 = vpop.permute.xlu0 %3648
        %3650 = vrot.lane.b32.xlu0 %v3058, 32
        %v3651 = vpop.permute.xlu0 %3650
        %3652 = vrot.lane.b32.xlu0 %v3059, 32
        %v3653 = vpop.permute.xlu0 %3652
        %3654 = vrot.lane.b32.xlu0 %v3060, 32
        %v3655 = vpop.permute.xlu0 %3654
        %3656 = vrot.lane.b32.xlu0 %v3061, 32
        %v3657 = vpop.permute.xlu0 %3656
        %3658 = vrot.lane.b32.xlu0 %v3062, 32
        %v3659 = vpop.permute.xlu0 %3658
        %3660 = vrot.lane.b32.xlu0 %v3063, 32
        %v3661 = vpop.permute.xlu0 %3660
        %3662 = vrot.lane.b32.xlu0 %v3064, 32
        %v3663 = vpop.permute.xlu0 %3662
        %3664 = vrot.lane.b32.xlu0 %v3065, 32
        %v3665 = vpop.permute.xlu0 %3664
        %3666 = vrot.lane.b32.xlu0 %v3066, 32
        %v3667 = vpop.permute.xlu0 %3666
        %3668 = vrot.lane.b32.xlu0 %v3067, 32
        %v3669 = vpop.permute.xlu0 %3668
        %3670 = vrot.lane.b32.xlu0 %v3068, 32
        %v3671 = vpop.permute.xlu0 %3670
        %3672 = vrot.lane.b32.xlu0 %v3069, 32
        %v3673 = vpop.permute.xlu0 %3672
        %3674 = vrot.lane.b32.xlu0 %v3070, 32
        %v3675 = vpop.permute.xlu0 %3674
        %3676 = vrot.lane.b32.xlu0 %v3071, 32
        %v3677 = vpop.permute.xlu0 %3676
        %3678 = vrot.lane.b32.xlu0 %v3072, 32
        %v3679 = vpop.permute.xlu0 %3678
        %3680 = vrot.lane.b32.xlu0 %v3073, 32
        %v3681 = vpop.permute.xlu0 %3680
        %3682 = vrot.lane.b32.xlu0 %v3074, 32
        %v3683 = vpop.permute.xlu0 %3682
        %3748 = vrot.lane.b32.xlu0 %v3075, 40
        %v3749 = vpop.permute.xlu0 %3748
        %3750 = vrot.lane.b32.xlu0 %v3076, 40
        %v3751 = vpop.permute.xlu0 %3750
        %3752 = vrot.lane.b32.xlu0 %v3077, 40
        %v3753 = vpop.permute.xlu0 %3752
        %3754 = vrot.lane.b32.xlu0 %v3078, 40
        %v3755 = vpop.permute.xlu0 %3754
        %3756 = vrot.lane.b32.xlu0 %v3079, 40
        %v3757 = vpop.permute.xlu0 %3756
        %3758 = vrot.lane.b32.xlu0 %v3080, 40
        %v3759 = vpop.permute.xlu0 %3758
        %3760 = vrot.lane.b32.xlu0 %v3081, 40
        %v3761 = vpop.permute.xlu0 %3760
        %3762 = vrot.lane.b32.xlu0 %v3082, 40
        %v3763 = vpop.permute.xlu0 %3762
        %3764 = vrot.lane.b32.xlu0 %v3083, 40
        %v3765 = vpop.permute.xlu0 %3764
        %3766 = vrot.lane.b32.xlu0 %v3084, 40
        %v3767 = vpop.permute.xlu0 %3766
        %3768 = vrot.lane.b32.xlu0 %v3085, 40
        %v3769 = vpop.permute.xlu0 %3768
        %3770 = vrot.lane.b32.xlu0 %v3086, 40
        %v3771 = vpop.permute.xlu0 %3770
        %3772 = vrot.lane.b32.xlu0 %v3087, 40
        %v3773 = vpop.permute.xlu0 %3772
        %3774 = vrot.lane.b32.xlu0 %v3088, 40
        %v3775 = vpop.permute.xlu0 %3774
        %3776 = vrot.lane.b32.xlu0 %v3089, 40
        %v3777 = vpop.permute.xlu0 %3776
        %3778 = vrot.lane.b32.xlu0 %v3090, 40
        %v3779 = vpop.permute.xlu0 %3778
        %3780 = vrot.lane.b32.xlu0 %v3091, 40
        %v3781 = vpop.permute.xlu0 %3780
        %3782 = vrot.lane.b32.xlu0 %v3092, 40
        %v3783 = vpop.permute.xlu0 %3782
        %3784 = vrot.lane.b32.xlu0 %v3093, 40
        %v3785 = vpop.permute.xlu0 %3784
        %3786 = vrot.lane.b32.xlu0 %v3094, 40
        %v3787 = vpop.permute.xlu0 %3786
        %3788 = vrot.lane.b32.xlu0 %v3095, 40
        %v3789 = vpop.permute.xlu0 %3788
        %3790 = vrot.lane.b32.xlu0 %v3096, 40
        %v3791 = vpop.permute.xlu0 %3790
        %3792 = vrot.lane.b32.xlu0 %v3097, 40
        %v3793 = vpop.permute.xlu0 %3792
        %3794 = vrot.lane.b32.xlu0 %v3098, 40
        %v3795 = vpop.permute.xlu0 %3794
        %3796 = vrot.lane.b32.xlu0 %v3099, 40
        %v3797 = vpop.permute.xlu0 %3796
        %3798 = vrot.lane.b32.xlu0 %v3100, 40
        %v3799 = vpop.permute.xlu0 %3798
        %3800 = vrot.lane.b32.xlu0 %v3101, 40
        %v3801 = vpop.permute.xlu0 %3800
        %3802 = vrot.lane.b32.xlu0 %v3102, 40
        %v3803 = vpop.permute.xlu0 %3802
        %3804 = vrot.lane.b32.xlu0 %v3103, 40
        %v3805 = vpop.permute.xlu0 %3804
        %3806 = vrot.lane.b32.xlu0 %v3104, 40
        %v3807 = vpop.permute.xlu0 %3806
        %3808 = vrot.lane.b32.xlu0 %v3105, 40
        %v3809 = vpop.permute.xlu0 %3808
        %3810 = vrot.lane.b32.xlu0 %v3106, 40
        %v3811 = vpop.permute.xlu0 %3810
        %3876 = vrot.lane.b32.xlu0 %v3108, 48
        %v3877 = vpop.permute.xlu0 %3876
        %3878 = vrot.lane.b32.xlu0 %v3109, 48
        %v3879 = vpop.permute.xlu0 %3878
        %3880 = vrot.lane.b32.xlu0 %v3110, 48
        %v3881 = vpop.permute.xlu0 %3880
        %3882 = vrot.lane.b32.xlu0 %v3111, 48
        %v3883 = vpop.permute.xlu0 %3882
        %3884 = vrot.lane.b32.xlu0 %v3112, 48
        %v3885 = vpop.permute.xlu0 %3884
        %3886 = vrot.lane.b32.xlu0 %v3113, 48
        %v3887 = vpop.permute.xlu0 %3886
        %3888 = vrot.lane.b32.xlu0 %v3114, 48
        %v3889 = vpop.permute.xlu0 %3888
        %3890 = vrot.lane.b32.xlu0 %v3115, 48
        %v3891 = vpop.permute.xlu0 %3890
        %3892 = vrot.lane.b32.xlu0 %v3116, 48
        %v3893 = vpop.permute.xlu0 %3892
        %3894 = vrot.lane.b32.xlu0 %v3117, 48
        %v3895 = vpop.permute.xlu0 %3894
        %3896 = vrot.lane.b32.xlu0 %v3118, 48
        %v3897 = vpop.permute.xlu0 %3896
        %3898 = vrot.lane.b32.xlu0 %v3119, 48
        %v3899 = vpop.permute.xlu0 %3898
        %3900 = vrot.lane.b32.xlu0 %v3120, 48
        %v3901 = vpop.permute.xlu0 %3900
        %3902 = vrot.lane.b32.xlu0 %v3121, 48
        %v3903 = vpop.permute.xlu0 %3902
        %3904 = vrot.lane.b32.xlu0 %v3122, 48
        %v3905 = vpop.permute.xlu0 %3904
        %3906 = vrot.lane.b32.xlu0 %v3123, 48
        %v3907 = vpop.permute.xlu0 %3906
        %3908 = vrot.lane.b32.xlu0 %v3124, 48
        %v3909 = vpop.permute.xlu0 %3908
        %3910 = vrot.lane.b32.xlu0 %v3125, 48
        %v3911 = vpop.permute.xlu0 %3910
        %3912 = vrot.lane.b32.xlu0 %v3126, 48
        %v3913 = vpop.permute.xlu0 %3912
        %3914 = vrot.lane.b32.xlu0 %v3127, 48
        %v3915 = vpop.permute.xlu0 %3914
        %3916 = vrot.lane.b32.xlu0 %v3128, 48
        %v3917 = vpop.permute.xlu0 %3916
        %3918 = vrot.lane.b32.xlu0 %v3129, 48
        %v3919 = vpop.permute.xlu0 %3918
        %3920 = vrot.lane.b32.xlu0 %v3130, 48
        %v3921 = vpop.permute.xlu0 %3920
        %3922 = vrot.lane.b32.xlu0 %v3131, 48
        %v3923 = vpop.permute.xlu0 %3922
        %3924 = vrot.lane.b32.xlu0 %v3132, 48
        %v3925 = vpop.permute.xlu0 %3924
        %3926 = vrot.lane.b32.xlu0 %v3133, 48
        %v3927 = vpop.permute.xlu0 %3926
        %3928 = vrot.lane.b32.xlu0 %v3134, 48
        %v3929 = vpop.permute.xlu0 %3928
        %3930 = vrot.lane.b32.xlu0 %v3135, 48
        %v3931 = vpop.permute.xlu0 %3930
        %3932 = vrot.lane.b32.xlu0 %v3136, 48
        %v3933 = vpop.permute.xlu0 %3932
        %3934 = vrot.lane.b32.xlu0 %v3137, 48
        %v3935 = vpop.permute.xlu0 %3934
        %3936 = vrot.lane.b32.xlu0 %v3138, 48
        %v3937 = vpop.permute.xlu0 %3936
        %3938 = vrot.lane.b32.xlu0 %v3139, 48
        %v3939 = vpop.permute.xlu0 %3938
        %4004 = vrot.lane.b32.xlu0 %v3140, 56
        %v4005 = vpop.permute.xlu0 %4004
        %4006 = vrot.lane.b32.xlu0 %v3141, 56
        %v4007 = vpop.permute.xlu0 %4006
        %4008 = vrot.lane.b32.xlu0 %v3142, 56
        %v4009 = vpop.permute.xlu0 %4008
        %4010 = vrot.lane.b32.xlu0 %v3143, 56
        %v4011 = vpop.permute.xlu0 %4010
        %4012 = vrot.lane.b32.xlu0 %v3144, 56
        %v4013 = vpop.permute.xlu0 %4012
        %4014 = vrot.lane.b32.xlu0 %v3145, 56
        %v4015 = vpop.permute.xlu0 %4014
        %4016 = vrot.lane.b32.xlu0 %v3146, 56
        %v4017 = vpop.permute.xlu0 %4016
        %4018 = vrot.lane.b32.xlu0 %v3147, 56
        %v4019 = vpop.permute.xlu0 %4018
        %4020 = vrot.lane.b32.xlu0 %v3148, 56
        %v4021 = vpop.permute.xlu0 %4020
        %4022 = vrot.lane.b32.xlu0 %v3149, 56
        %v4023 = vpop.permute.xlu0 %4022
        %4024 = vrot.lane.b32.xlu0 %v3150, 56
        %v4025 = vpop.permute.xlu0 %4024
        %4026 = vrot.lane.b32.xlu0 %v3151, 56
        %v4027 = vpop.permute.xlu0 %4026
        %4028 = vrot.lane.b32.xlu0 %v3152, 56
        %v4029 = vpop.permute.xlu0 %4028
        %4030 = vrot.lane.b32.xlu0 %v3153, 56
        %v4031 = vpop.permute.xlu0 %4030
        %4032 = vrot.lane.b32.xlu0 %v3154, 56
        %v4033 = vpop.permute.xlu0 %4032
        %4034 = vrot.lane.b32.xlu0 %v3155, 56
        %v4035 = vpop.permute.xlu0 %4034
        %4036 = vrot.lane.b32.xlu0 %v3156, 56
        %v4037 = vpop.permute.xlu0 %4036
        %4038 = vrot.lane.b32.xlu0 %v3157, 56
        %v4039 = vpop.permute.xlu0 %4038
        %4040 = vrot.lane.b32.xlu0 %v3158, 56
        %v4041 = vpop.permute.xlu0 %4040
        %4042 = vrot.lane.b32.xlu0 %v3159, 56
        %v4043 = vpop.permute.xlu0 %4042
        %4044 = vrot.lane.b32.xlu0 %v3160, 56
        %v4045 = vpop.permute.xlu0 %4044
        %4046 = vrot.lane.b32.xlu0 %v3161, 56
        %v4047 = vpop.permute.xlu0 %4046
        %4048 = vrot.lane.b32.xlu0 %v3162, 56
        %v4049 = vpop.permute.xlu0 %4048
        %4050 = vrot.lane.b32.xlu0 %v3163, 56
        %v4051 = vpop.permute.xlu0 %4050
        %4052 = vrot.lane.b32.xlu0 %v3164, 56
        %v4053 = vpop.permute.xlu0 %4052
        %4054 = vrot.lane.b32.xlu0 %v3165, 56
        %v4055 = vpop.permute.xlu0 %4054
        %4056 = vrot.lane.b32.xlu0 %v3166, 56
        %v4057 = vpop.permute.xlu0 %4056
        %4058 = vrot.lane.b32.xlu0 %v3167, 56
        %v4059 = vpop.permute.xlu0 %4058
        %4060 = vrot.lane.b32.xlu0 %v3168, 56
        %v4061 = vpop.permute.xlu0 %4060
        %4062 = vrot.lane.b32.xlu0 %v3169, 56
        %v4063 = vpop.permute.xlu0 %4062
        %4064 = vrot.lane.b32.xlu0 %v3170, 56
        %v4065 = vpop.permute.xlu0 %4064
        %4066 = vrot.lane.b32.xlu0 %v3171, 56
        %v4067 = vpop.permute.xlu0 %4066
        %4132 = vrot.lane.b32.xlu0 %v3172, 64
        %v4133 = vpop.permute.xlu0 %4132
        %4134 = vrot.lane.b32.xlu0 %v3173, 64
        %v4135 = vpop.permute.xlu0 %4134
        %4136 = vrot.lane.b32.xlu0 %v3174, 64
        %v4137 = vpop.permute.xlu0 %4136
        %4138 = vrot.lane.b32.xlu0 %v3175, 64
        %v4139 = vpop.permute.xlu0 %4138
        %4140 = vrot.lane.b32.xlu0 %v3176, 64
        %v4141 = vpop.permute.xlu0 %4140
        %4142 = vrot.lane.b32.xlu0 %v3177, 64
        %v4143 = vpop.permute.xlu0 %4142
        %4144 = vrot.lane.b32.xlu0 %v3178, 64
        %v4145 = vpop.permute.xlu0 %4144
        %4146 = vrot.lane.b32.xlu0 %v3179, 64
        %v4147 = vpop.permute.xlu0 %4146
        %4148 = vrot.lane.b32.xlu0 %v3180, 64
        %v4149 = vpop.permute.xlu0 %4148
        %4150 = vrot.lane.b32.xlu0 %v3181, 64
        %v4151 = vpop.permute.xlu0 %4150
        %4152 = vrot.lane.b32.xlu0 %v3182, 64
        %v4153 = vpop.permute.xlu0 %4152
        %4154 = vrot.lane.b32.xlu0 %v3183, 64
        %v4155 = vpop.permute.xlu0 %4154
        %4156 = vrot.lane.b32.xlu0 %v3184, 64
        %v4157 = vpop.permute.xlu0 %4156
        %4158 = vrot.lane.b32.xlu0 %v3185, 64
        %v4159 = vpop.permute.xlu0 %4158
        %4160 = vrot.lane.b32.xlu0 %v3186, 64
        %v4161 = vpop.permute.xlu0 %4160
        %4162 = vrot.lane.b32.xlu0 %v3187, 64
        %v4163 = vpop.permute.xlu0 %4162
        %4164 = vrot.lane.b32.xlu0 %v3188, 64
        %v4165 = vpop.permute.xlu0 %4164
        %4166 = vrot.lane.b32.xlu0 %v3189, 64
        %v4167 = vpop.permute.xlu0 %4166
        %4168 = vrot.lane.b32.xlu0 %v3190, 64
        %v4169 = vpop.permute.xlu0 %4168
        %4170 = vrot.lane.b32.xlu0 %v3191, 64
        %v4171 = vpop.permute.xlu0 %4170
        %4172 = vrot.lane.b32.xlu0 %v3192, 64
        %v4173 = vpop.permute.xlu0 %4172
        %4174 = vrot.lane.b32.xlu0 %v3193, 64
        %v4175 = vpop.permute.xlu0 %4174
        %4176 = vrot.lane.b32.xlu0 %v3194, 64
        %v4177 = vpop.permute.xlu0 %4176
        %4178 = vrot.lane.b32.xlu0 %v3195, 64
        %v4179 = vpop.permute.xlu0 %4178
        %4180 = vrot.lane.b32.xlu0 %v3196, 64
        %v4181 = vpop.permute.xlu0 %4180
        %4182 = vrot.lane.b32.xlu0 %v3197, 64
        %v4183 = vpop.permute.xlu0 %4182
        %4184 = vrot.lane.b32.xlu0 %v3198, 64
        %v4185 = vpop.permute.xlu0 %4184
        %4186 = vrot.lane.b32.xlu0 %v3199, 64
        %v4187 = vpop.permute.xlu0 %4186
        %4188 = vrot.lane.b32.xlu0 %v3200, 64
        %v4189 = vpop.permute.xlu0 %4188
        %4190 = vrot.lane.b32.xlu0 %v3201, 64
        %v4191 = vpop.permute.xlu0 %4190
        %4192 = vrot.lane.b32.xlu0 %v3202, 64
        %v4193 = vpop.permute.xlu0 %4192
        %4194 = vrot.lane.b32.xlu0 %v3203, 64
        %v4195 = vpop.permute.xlu0 %4194
        %v4228 = vsel %vm2698, %v2915, %v3237
        %v4229 = vsel %vm2698, %v2916, %v3239
        %v4230 = vsel %vm2698, %v2917, %v3241
        %v4231 = vsel %vm2698, %v2918, %v3243
        %v4232 = vsel %vm2698, %v2919, %v3245
        %v4233 = vsel %vm2698, %v2920, %v3247
        %v4234 = vsel %vm2698, %v2921, %v3249
        %v4235 = vsel %vm2698, %v2922, %v3251
        %v4236 = vsel %vm2698, %v2923, %v3253
        %v4237 = vsel %vm2698, %v2924, %v3255
        %v4238 = vsel %vm2698, %v2925, %v3257
        %v4239 = vsel %vm2698, %v2926, %v3259
        %v4240 = vsel %vm2698, %v2927, %v3261
        %v4241 = vsel %vm2698, %v2928, %v3263
        %v4242 = vsel %vm2698, %v2929, %v3265
        %v4243 = vsel %vm2698, %v2930, %v3267
        %v4244 = vsel %vm2698, %v2931, %v3269
        %v4245 = vsel %vm2698, %v2932, %v3271
        %v4246 = vsel %vm2698, %v2933, %v3273
        %v4247 = vsel %vm2698, %v2934, %v3275
        %v4248 = vsel %vm2698, %v2935, %v3277
        %v4249 = vsel %vm2698, %v2936, %v3279
        %v4250 = vsel %vm2698, %v2937, %v3281
        %v4251 = vsel %vm2698, %v2938, %v3283
        %v4252 = vsel %vm2698, %v2939, %v3285
        %v4253 = vsel %vm2698, %v2940, %v3287
        %v4254 = vsel %vm2698, %v2941, %v3289
        %v4255 = vsel %vm2698, %v2942, %v3291
        %v4256 = vsel %vm2698, %v2943, %v3293
        %v4257 = vsel %vm2698, %v2944, %v3295
        %v4258 = vsel %vm2698, %v2945, %v3297
        %v4259 = vsel %vm2698, %v2946, %v3299
        %vm4260 = vcmask 130048
        %v4261 = vsel %vm4260, %v4228, %v3365
        %v4262 = vsel %vm4260, %v4229, %v3367
        %v4263 = vsel %vm4260, %v4230, %v3369
        %v4264 = vsel %vm4260, %v4231, %v3371
        %v4265 = vsel %vm4260, %v4232, %v3373
        %v4266 = vsel %vm4260, %v4233, %v3375
        %v4267 = vsel %vm4260, %v4234, %v3377
        %v4268 = vsel %vm4260, %v4235, %v3379
        %v4269 = vsel %vm4260, %v4236, %v3381
        %v4270 = vsel %vm4260, %v4237, %v3383
        %v4271 = vsel %vm4260, %v4238, %v3385
        %v4272 = vsel %vm4260, %v4239, %v3387
        %v4273 = vsel %vm4260, %v4240, %v3389
        %v4274 = vsel %vm4260, %v4241, %v3391
        %v4275 = vsel %vm4260, %v4242, %v3393
        %v4276 = vsel %vm4260, %v4243, %v3395
        %v4277 = vsel %vm4260, %v4244, %v3397
        %v4278 = vsel %vm4260, %v4245, %v3399
        %v4279 = vsel %vm4260, %v4246, %v3401
        %v4280 = vsel %vm4260, %v4247, %v3403
        %v4281 = vsel %vm4260, %v4248, %v3405
        %v4282 = vsel %vm4260, %v4249, %v3407
        %v4283 = vsel %vm4260, %v4250, %v3409
        %v4284 = vsel %vm4260, %v4251, %v3411
        %v4285 = vsel %vm4260, %v4252, %v3413
        %v4286 = vsel %vm4260, %v4253, %v3415
        %v4287 = vsel %vm4260, %v4254, %v3417
        %v4288 = vsel %vm4260, %v4255, %v3419
        %v4289 = vsel %vm4260, %v4256, %v3421
        %v4290 = vsel %vm4260, %v4257, %v3423
        %v4291 = vsel %vm4260, %v4258, %v3425
        %v4292 = vsel %vm4260, %v4259, %v3427
        %vm4293 = vcmask 195584
        %v4294 = vsel %vm4293, %v4261, %v3493
        %v4295 = vsel %vm4293, %v4262, %v3495
        %v4296 = vsel %vm4293, %v4263, %v3497
        %v4297 = vsel %vm4293, %v4264, %v3499
        %v4298 = vsel %vm4293, %v4265, %v3501
        %v4299 = vsel %vm4293, %v4266, %v3503
        %v4300 = vsel %vm4293, %v4267, %v3505
        %v4301 = vsel %vm4293, %v4268, %v3507
        %v4302 = vsel %vm4293, %v4269, %v3509
        %v4303 = vsel %vm4293, %v4270, %v3511
        %v4304 = vsel %vm4293, %v4271, %v3513
        %v4305 = vsel %vm4293, %v4272, %v3515
        %v4306 = vsel %vm4293, %v4273, %v3517
        %v4307 = vsel %vm4293, %v4274, %v3519
        %v4308 = vsel %vm4293, %v4275, %v3521
        %v4309 = vsel %vm4293, %v4276, %v3523
        %v4310 = vsel %vm4293, %v4277, %v3525
        %v4311 = vsel %vm4293, %v4278, %v3527
        %v4312 = vsel %vm4293, %v4279, %v3529
        %v4313 = vsel %vm4293, %v4280, %v3531
        %v4314 = vsel %vm4293, %v4281, %v3533
        %v4315 = vsel %vm4293, %v4282, %v3535
        %v4316 = vsel %vm4293, %v4283, %v3537
        %v4317 = vsel %vm4293, %v4284, %v3539
        %v4318 = vsel %vm4293, %v4285, %v3541
        %v4319 = vsel %vm4293, %v4286, %v3543
        %v4320 = vsel %vm4293, %v4287, %v3545
        %v4321 = vsel %vm4293, %v4288, %v3547
        %v4322 = vsel %vm4293, %v4289, %v3549
        %v4323 = vsel %vm4293, %v4290, %v3551
        %v4324 = vsel %vm4293, %v4291, %v3553
        %v4325 = vsel %vm4293, %v4292, %v3555
        %v4326 = vsel %vm384, %v4294, %v3621
        %v4327 = vsel %vm384, %v4295, %v3623
        %v4328 = vsel %vm384, %v4296, %v3625
        %v4329 = vsel %vm384, %v4297, %v3627
        %v4330 = vsel %vm384, %v4298, %v3629
        %v4331 = vsel %vm384, %v4299, %v3631
        %v4332 = vsel %vm384, %v4300, %v3633
        %v4333 = vsel %vm384, %v4301, %v3635
        %v4334 = vsel %vm384, %v4302, %v3637
        %v4335 = vsel %vm384, %v4303, %v3639
        %v4336 = vsel %vm384, %v4304, %v3641
        %v4337 = vsel %vm384, %v4305, %v3643
        %v4338 = vsel %vm384, %v4306, %v3645
        %v4339 = vsel %vm384, %v4307, %v3647
        %v4340 = vsel %vm384, %v4308, %v3649
        %v4341 = vsel %vm384, %v4309, %v3651
        %v4342 = vsel %vm384, %v4310, %v3653
        %v4343 = vsel %vm384, %v4311, %v3655
        %v4344 = vsel %vm384, %v4312, %v3657
        %v4345 = vsel %vm384, %v4313, %v3659
        %v4346 = vsel %vm384, %v4314, %v3661
        %v4347 = vsel %vm384, %v4315, %v3663
        %v4348 = vsel %vm384, %v4316, %v3665
        %v4349 = vsel %vm384, %v4317, %v3667
        %v4350 = vsel %vm384, %v4318, %v3669
        %v4351 = vsel %vm384, %v4319, %v3671
        %v4352 = vsel %vm384, %v4320, %v3673
        %v4353 = vsel %vm384, %v4321, %v3675
        %v4354 = vsel %vm384, %v4322, %v3677
        %v4355 = vsel %vm384, %v4323, %v3679
        %v4356 = vsel %vm384, %v4324, %v3681
        %v4357 = vsel %vm384, %v4325, %v3683
        %vm4358 = vcmask 326656
        %v4359 = vsel %vm4358, %v4326, %v3749
        %v4360 = vsel %vm4358, %v4327, %v3751
        %v4361 = vsel %vm4358, %v4328, %v3753
        %v4362 = vsel %vm4358, %v4329, %v3755
        %v4363 = vsel %vm4358, %v4330, %v3757
        %v4364 = vsel %vm4358, %v4331, %v3759
        %v4365 = vsel %vm4358, %v4332, %v3761
        %v4366 = vsel %vm4358, %v4333, %v3763
        %v4367 = vsel %vm4358, %v4334, %v3765
        %v4368 = vsel %vm4358, %v4335, %v3767
        %v4369 = vsel %vm4358, %v4336, %v3769
        %v4370 = vsel %vm4358, %v4337, %v3771
        %v4371 = vsel %vm4358, %v4338, %v3773
        %v4372 = vsel %vm4358, %v4339, %v3775
        %v4373 = vsel %vm4358, %v4340, %v3777
        %v4374 = vsel %vm4358, %v4341, %v3779
        %v4375 = vsel %vm4358, %v4342, %v3781
        %v4376 = vsel %vm4358, %v4343, %v3783
        %v4377 = vsel %vm4358, %v4344, %v3785
        %v4378 = vsel %vm4358, %v4345, %v3787
        %v4379 = vsel %vm4358, %v4346, %v3789
        %v4380 = vsel %vm4358, %v4347, %v3791
        %v4381 = vsel %vm4358, %v4348, %v3793
        %v4382 = vsel %vm4358, %v4349, %v3795
        %v4383 = vsel %vm4358, %v4350, %v3797
        %v4384 = vsel %vm4358, %v4351, %v3799
        %v4385 = vsel %vm4358, %v4352, %v3801
        %v4386 = vsel %vm4358, %v4353, %v3803
        %v4387 = vsel %vm4358, %v4354, %v3805
        %v4388 = vsel %vm4358, %v4355, %v3807
        %v4389 = vsel %vm4358, %v4356, %v3809
        %v4390 = vsel %vm4358, %v4357, %v3811
        %vm4391 = vcmask 392192
        %v4392 = vsel %vm4391, %v4359, %v3877
        %v4393 = vsel %vm4391, %v4360, %v3879
        %v4394 = vsel %vm4391, %v4361, %v3881
        %v4395 = vsel %vm4391, %v4362, %v3883
        %v4396 = vsel %vm4391, %v4363, %v3885
        %v4397 = vsel %vm4391, %v4364, %v3887
        %v4398 = vsel %vm4391, %v4365, %v3889
        %v4399 = vsel %vm4391, %v4366, %v3891
        %v4400 = vsel %vm4391, %v4367, %v3893
        %v4401 = vsel %vm4391, %v4368, %v3895
        %v4402 = vsel %vm4391, %v4369, %v3897
        %v4403 = vsel %vm4391, %v4370, %v3899
        %v4404 = vsel %vm4391, %v4371, %v3901
        %v4405 = vsel %vm4391, %v4372, %v3903
        %v4406 = vsel %vm4391, %v4373, %v3905
        %v4407 = vsel %vm4391, %v4374, %v3907
        %v4408 = vsel %vm4391, %v4375, %v3909
        %v4409 = vsel %vm4391, %v4376, %v3911
        %v4410 = vsel %vm4391, %v4377, %v3913
        %v4411 = vsel %vm4391, %v4378, %v3915
        %v4412 = vsel %vm4391, %v4379, %v3917
        %v4413 = vsel %vm4391, %v4380, %v3919
        %v4414 = vsel %vm4391, %v4381, %v3921
        %v4415 = vsel %vm4391, %v4382, %v3923
        %v4416 = vsel %vm4391, %v4383, %v3925
        %v4417 = vsel %vm4391, %v4384, %v3927
        %v4418 = vsel %vm4391, %v4385, %v3929
        %v4419 = vsel %vm4391, %v4386, %v3931
        %v4420 = vsel %vm4391, %v4387, %v3933
        %v4421 = vsel %vm4391, %v4388, %v3935
        %v4422 = vsel %vm4391, %v4389, %v3937
        %v4423 = vsel %vm4391, %v4390, %v3939
        %vm4424 = vcmask 457728
        %v4425 = vsel %vm4424, %v4392, %v4005
        %v4426 = vsel %vm4424, %v4393, %v4007
        %v4427 = vsel %vm4424, %v4394, %v4009
        %v4428 = vsel %vm4424, %v4395, %v4011
        %v4429 = vsel %vm4424, %v4396, %v4013
        %v4430 = vsel %vm4424, %v4397, %v4015
        %v4431 = vsel %vm4424, %v4398, %v4017
        %v4432 = vsel %vm4424, %v4399, %v4019
        %v4433 = vsel %vm4424, %v4400, %v4021
        %v4434 = vsel %vm4424, %v4401, %v4023
        %v4435 = vsel %vm4424, %v4402, %v4025
        %v4436 = vsel %vm4424, %v4403, %v4027
        %v4437 = vsel %vm4424, %v4404, %v4029
        %v4438 = vsel %vm4424, %v4405, %v4031
        %v4439 = vsel %vm4424, %v4406, %v4033
        %v4440 = vsel %vm4424, %v4407, %v4035
        %v4441 = vsel %vm4424, %v4408, %v4037
        %v4442 = vsel %vm4424, %v4409, %v4039
        %v4443 = vsel %vm4424, %v4410, %v4041
        %v4444 = vsel %vm4424, %v4411, %v4043
        %v4445 = vsel %vm4424, %v4412, %v4045
        %v4446 = vsel %vm4424, %v4413, %v4047
        %v4447 = vsel %vm4424, %v4414, %v4049
        %v4448 = vsel %vm4424, %v4415, %v4051
        %v4449 = vsel %vm4424, %v4416, %v4053
        %v4450 = vsel %vm4424, %v4417, %v4055
        %v4451 = vsel %vm4424, %v4418, %v4057
        %v4452 = vsel %vm4424, %v4419, %v4059
        %v4453 = vsel %vm4424, %v4420, %v4061
        %v4454 = vsel %vm4424, %v4421, %v4063
        %v4455 = vsel %vm4424, %v4422, %v4065
        %v4456 = vsel %vm4424, %v4423, %v4067
        %v4457 = vsel %vm1915, %v4425, %v4133
        %v4458 = vsel %vm1915, %v4426, %v4135
        %v4459 = vsel %vm1915, %v4427, %v4137
        %v4460 = vsel %vm1915, %v4428, %v4139
        %v4461 = vsel %vm1915, %v4429, %v4141
        %v4462 = vsel %vm1915, %v4430, %v4143
        %v4463 = vsel %vm1915, %v4431, %v4145
        %v4464 = vsel %vm1915, %v4432, %v4147
        %v4465 = vsel %vm1915, %v4433, %v4149
        %v4466 = vsel %vm1915, %v4434, %v4151
        %v4467 = vsel %vm1915, %v4435, %v4153
        %v4468 = vsel %vm1915, %v4436, %v4155
        %v4469 = vsel %vm1915, %v4437, %v4157
        %v4470 = vsel %vm1915, %v4438, %v4159
        %v4471 = vsel %vm1915, %v4439, %v4161
        %v4472 = vsel %vm1915, %v4440, %v4163
        %v4473 = vsel %vm1915, %v4441, %v4165
        %v4474 = vsel %vm1915, %v4442, %v4167
        %v4475 = vsel %vm1915, %v4443, %v4169
        %v4476 = vsel %vm1915, %v4444, %v4171
        %v4477 = vsel %vm1915, %v4445, %v4173
        %v4478 = vsel %vm1915, %v4446, %v4175
        %v4479 = vsel %vm1915, %v4447, %v4177
        %v4480 = vsel %vm1915, %v4448, %v4179
        %v4481 = vsel %vm1915, %v4449, %v4181
        %v4482 = vsel %vm1915, %v4450, %v4183
        %v4483 = vsel %vm1915, %v4451, %v4185
        %v4484 = vsel %vm1915, %v4452, %v4187
        %v4485 = vsel %vm1915, %v4453, %v4189
        %v4486 = vsel %vm1915, %v4454, %v4191
        %v4487 = vsel %vm1915, %v4455, %v4193
        %v4488 = vsel %vm1915, %v4456, %v4195
        %v4489 = vld [vmem:[#allocation10] sm:$0xff]
        %v4490 = vld [vmem:[#allocation10 + $0x8] sm:$0xff]
        %v4491 = vld [vmem:[#allocation10 + $0x10] sm:$0xff]
        %v4492 = vld [vmem:[#allocation10 + $0x18] sm:$0xff]
        %v4493 = vld [vmem:[#allocation10 + $0x20] sm:$0xff]
        %v4494 = vld [vmem:[#allocation10 + $0x28] sm:$0xff]
        %v4495 = vld [vmem:[#allocation10 + $0x30] sm:$0xff]
        %v4496 = vld [vmem:[#allocation10 + $0x38] sm:$0xff]
        %v4497 = vld [vmem:[#allocation10 + $0x40] sm:$0xff]
        %v4498 = vld [vmem:[%s6] sm:$0x1]
        %v4500 = vlaneseq
        %v4501 = vshrl.u32 %v4500, 7
        %v4502 = vsub.s32 0, %v4501
        %v4503 = vrot.slane %v4498, %v4502
        %vm4505 = vcmask 588800
        %v4507 = vsel %vm4505, %v4457, 0
        %v4510 = vsel %vm4505, %v4458, 0
        %v4513 = vsel %vm4505, %v4459, 0
        %v4516 = vsel %vm4505, %v4460, 0
        %v4519 = vsel %vm4505, %v4461, 0
        %v4522 = vsel %vm4505, %v4462, 0
        %v4525 = vsel %vm4505, %v4463, 0
        %v4528 = vsel %vm4505, %v4464, 0
        %v4531 = vsel %vm4505, %v4465, 0
        %v4534 = vsel %vm4505, %v4466, 0
        %v4537 = vsel %vm4505, %v4467, 0
        %v4540 = vsel %vm4505, %v4468, 0
        %v4543 = vsel %vm4505, %v4469, 0
        %v4546 = vsel %vm4505, %v4470, 0
        %v4549 = vsel %vm4505, %v4471, 0
        %v4552 = vsel %vm4505, %v4472, 0
        %v4555 = vsel %vm4505, %v4473, 0
        %v4558 = vsel %vm4505, %v4474, 0
        %v4561 = vsel %vm4505, %v4475, 0
        %v4564 = vsel %vm4505, %v4476, 0
        %v4567 = vsel %vm4505, %v4477, 0
        %v4570 = vsel %vm4505, %v4478, 0
        %v4573 = vsel %vm4505, %v4479, 0
        %v4576 = vsel %vm4505, %v4480, 0
        %v4579 = vsel %vm4505, %v4481, 0
        %v4582 = vsel %vm4505, %v4482, 0
        %v4585 = vsel %vm4505, %v4483, 0
        %v4588 = vsel %vm4505, %v4484, 0
        %v4591 = vsel %vm4505, %v4485, 0
        %v4594 = vsel %vm4505, %v4486, 0
        %v4597 = vsel %vm4505, %v4487, 0
        %v4600 = vsel %vm4505, %v4488, 0
        %4602 = vmatprep.subr.mxu0 0.0
        %4603 = vmatpush1.msra.mxu0 %v4489
        %4604 = vmatprep.subr.mxu0 0.0
        %4605 = vmatpush1.msra.mxu0 %v4490
        %4606 = vmatprep.subr.mxu0 0.0
        %4607 = vmatpush1.msra.mxu0 %v4491
        %4608 = vmatprep.subr.mxu0 0.0
        %4609 = vmatpush1.msra.mxu0 %v4492
        %4610 = vmatprep.subr.mxu0 0.0
        %4611 = vmatpush1.msra.mxu0 %v4493
        %4612 = vmatprep.subr.mxu0 0.0
        %4613 = vmatpush1.msra.mxu0 %v4494
        %4614 = vmatprep.subr.mxu0 0.0
        %4615 = vmatpush1.msra.mxu0 %v4495
        %4616 = vmatprep.subr.mxu0 0.0
        %4617 = vmatpush1.msra.mxu0 %v4496
        %4618 = vmatprep.subr.mxu0 0.0
        %4619 = vmatpush1.msra.mxu0 %v4497
        %4620 = vmatprep.subr.mxu0 0.0
        %4621 = vmatpush1.msra.mxu0 0.0
        %4622 = vmatprep.subr.mxu0 0.0
        %4623 = vmatpush1.msra.mxu0 0.0
        %4624 = vmatprep.subr.mxu0 0.0
        %4625 = vmatpush1.msra.mxu0 0.0
        %4626 = vmatprep.subr.mxu0 0.0
        %4627 = vmatpush1.msra.mxu0 0.0
        %4628 = vmatprep.subr.mxu0 0.0
        %4629 = vmatpush1.msra.mxu0 0.0
        %4630 = vmatprep.subr.mxu0 0.0
        %4631 = vmatpush1.msra.mxu0 0.0
        %4632 = vmatprep.subr.mxu0 0.0
        %4633 = vmatpush1.msra.mxu0 0.0
        %4634 = vmatprep.subr.mxu0 0.0
        %4635 = vmatpush1.msra.mxu0 0.0
        %4636 = vmatprep.subr.mxu0 0.0
        %4637 = vmatpush1.msra.mxu0 0.0
        %4638 = vmatprep.subr.mxu0 0.0
        %4639 = vmatpush1.msra.mxu0 0.0
        %4640 = vmatprep.subr.mxu0 0.0
        %4641 = vmatpush1.msra.mxu0 0.0
        %4642 = vmatprep.subr.mxu0 0.0
        %4643 = vmatpush1.msra.mxu0 0.0
        %4644 = vmatprep.subr.mxu0 0.0
        %4645 = vmatpush1.msra.mxu0 0.0
        %4646 = vmatprep.subr.mxu0 0.0
        %4647 = vmatpush1.msra.mxu0 0.0
        %4648 = vmatprep.subr.mxu0 0.0
        %4649 = vmatpush1.msra.mxu0 0.0
        %4650 = vmatprep.subr.mxu0 0.0
        %4651 = vmatpush1.msra.mxu0 0.0
        %4652 = vmatprep.subr.mxu0 0.0
        %4653 = vmatpush1.msra.mxu0 0.0
        %4654 = vmatprep.subr.mxu0 0.0
        %4655 = vmatpush1.msra.mxu0 0.0
        %4656 = vmatprep.subr.mxu0 0.0
        %4657 = vmatpush1.msra.mxu0 0.0
        %4658 = vmatprep.subr.mxu0 0.0
        %4659 = vmatpush1.msra.mxu0 0.0
        %4660 = vmatprep.subr.mxu0 0.0
        %4661 = vmatpush1.msra.mxu0 0.0
        %4662 = vmatprep.subr.mxu0 0.0
        %4663 = vmatpush1.msra.mxu0 0.0
        %4664 = vmatprep.subr.mxu0 0.0
        %4665 = vmatpush1.msra.mxu0 0.0
        %4666 = vmatprep.mubr.f32.mxu0 0.0
        %4667 = vmatmul.mubr.f32.gmra.mrb[0].mxu0 %v4507
        %v4668 = vpop.f32.mrb[0].mxu0
        %v4669 = vadd.f32 %v4503, %v4668
        %v4670 = vpop.f32.mrb[0].mxu0
        %4671 = vmatprep.mubr.f32.mxu0 0.0
        %4672 = vmatmul.mubr.f32.gmra.mrb[0].mxu0 %v4510
        %v4673 = vpop.f32.mrb[0].mxu0
        %v4674 = vadd.f32 %v4503, %v4673
        %v4675 = vpop.f32.mrb[0].mxu0
        %4676 = vmatprep.mubr.f32.mxu0 0.0
        %4677 = vmatmul.mubr.f32.gmra.mrb[0].mxu0 %v4513
        %v4678 = vpop.f32.mrb[0].mxu0
        %v4679 = vadd.f32 %v4503, %v4678
        %v4680 = vpop.f32.mrb[0].mxu0
        %4681 = vmatprep.mubr.f32.mxu0 0.0
        %4682 = vmatmul.mubr.f32.gmra.mrb[0].mxu0 %v4516
        %v4683 = vpop.f32.mrb[0].mxu0
        %v4684 = vadd.f32 %v4503, %v4683
        %v4685 = vpop.f32.mrb[0].mxu0
        %4686 = vmatprep.mubr.f32.mxu0 0.0
        %4687 = vmatmul.mubr.f32.gmra.mrb[0].mxu0 %v4519
        %v4688 = vpop.f32.mrb[0].mxu0
        %v4689 = vadd.f32 %v4503, %v4688
        %v4690 = vpop.f32.mrb[0].mxu0
        %4691 = vmatprep.mubr.f32.mxu0 0.0
        %4692 = vmatmul.mubr.f32.gmra.mrb[0].mxu0 %v4522
        %v4693 = vpop.f32.mrb[0].mxu0
        %v4694 = vadd.f32 %v4503, %v4693
        %v4695 = vpop.f32.mrb[0].mxu0
        %4696 = vmatprep.mubr.f32.mxu0 0.0
        %4697 = vmatmul.mubr.f32.gmra.mrb[0].mxu0 %v4525
        %v4698 = vpop.f32.mrb[0].mxu0
        %v4699 = vadd.f32 %v4503, %v4698
        %v4700 = vpop.f32.mrb[0].mxu0
        %4701 = vmatprep.mubr.f32.mxu0 0.0
        %4702 = vmatmul.mubr.f32.gmra.mrb[0].mxu0 %v4528
        %v4703 = vpop.f32.mrb[0].mxu0
        %v4704 = vadd.f32 %v4503, %v4703
        %v4705 = vpop.f32.mrb[0].mxu0
        %4706 = vmatprep.mubr.f32.mxu0 0.0
        %4707 = vmatmul.mubr.f32.gmra.mrb[0].mxu0 %v4531
        %v4708 = vpop.f32.mrb[0].mxu0
        %v4709 = vadd.f32 %v4503, %v4708
        %v4710 = vpop.f32.mrb[0].mxu0
        %4711 = vmatprep.mubr.f32.mxu0 0.0
        %4712 = vmatmul.mubr.f32.gmra.mrb[0].mxu0 %v4534
        %v4713 = vpop.f32.mrb[0].mxu0
        %v4714 = vadd.f32 %v4503, %v4713
        %v4715 = vpop.f32.mrb[0].mxu0
        %4716 = vmatprep.mubr.f32.mxu0 0.0
        %4717 = vmatmul.mubr.f32.gmra.mrb[0].mxu0 %v4537
        %v4718 = vpop.f32.mrb[0].mxu0
        %v4719 = vadd.f32 %v4503, %v4718
        %v4720 = vpop.f32.mrb[0].mxu0
        %4721 = vmatprep.mubr.f32.mxu0 0.0
        %4722 = vmatmul.mubr.f32.gmra.mrb[0].mxu0 %v4540
        %v4723 = vpop.f32.mrb[0].mxu0
        %v4724 = vadd.f32 %v4503, %v4723
        %v4725 = vpop.f32.mrb[0].mxu0
        %4726 = vmatprep.mubr.f32.mxu0 0.0
        %4727 = vmatmul.mubr.f32.gmra.mrb[0].mxu0 %v4543
        %v4728 = vpop.f32.mrb[0].mxu0
        %v4729 = vadd.f32 %v4503, %v4728
        %v4730 = vpop.f32.mrb[0].mxu0
        %4731 = vmatprep.mubr.f32.mxu0 0.0
        %4732 = vmatmul.mubr.f32.gmra.mrb[0].mxu0 %v4546
        %v4733 = vpop.f32.mrb[0].mxu0
        %v4734 = vadd.f32 %v4503, %v4733
        %v4735 = vpop.f32.mrb[0].mxu0
        %4736 = vmatprep.mubr.f32.mxu0 0.0
        %4737 = vmatmul.mubr.f32.gmra.mrb[0].mxu0 %v4549
        %v4738 = vpop.f32.mrb[0].mxu0
        %v4739 = vadd.f32 %v4503, %v4738
        %v4740 = vpop.f32.mrb[0].mxu0
        %4741 = vmatprep.mubr.f32.mxu0 0.0
        %4742 = vmatmul.mubr.f32.gmra.mrb[0].mxu0 %v4552
        %v4743 = vpop.f32.mrb[0].mxu0
        %v4744 = vadd.f32 %v4503, %v4743
        %v4745 = vpop.f32.mrb[0].mxu0
        %4746 = vmatprep.mubr.f32.mxu0 0.0
        %4747 = vmatmul.mubr.f32.gmra.mrb[0].mxu0 %v4555
        %v4748 = vpop.f32.mrb[0].mxu0
        %v4749 = vadd.f32 %v4503, %v4748
        %v4750 = vpop.f32.mrb[0].mxu0
        %4751 = vmatprep.mubr.f32.mxu0 0.0
        %4752 = vmatmul.mubr.f32.gmra.mrb[0].mxu0 %v4558
        %v4753 = vpop.f32.mrb[0].mxu0
        %v4754 = vadd.f32 %v4503, %v4753
        %v4755 = vpop.f32.mrb[0].mxu0
        %4756 = vmatprep.mubr.f32.mxu0 0.0
        %4757 = vmatmul.mubr.f32.gmra.mrb[0].mxu0 %v4561
        %v4758 = vpop.f32.mrb[0].mxu0
        %v4759 = vadd.f32 %v4503, %v4758
        %v4760 = vpop.f32.mrb[0].mxu0
        %4761 = vmatprep.mubr.f32.mxu0 0.0
        %4762 = vmatmul.mubr.f32.gmra.mrb[0].mxu0 %v4564
        %v4763 = vpop.f32.mrb[0].mxu0
        %v4764 = vadd.f32 %v4503, %v4763
        %v4765 = vpop.f32.mrb[0].mxu0
        %4766 = vmatprep.mubr.f32.mxu0 0.0
        %4767 = vmatmul.mubr.f32.gmra.mrb[0].mxu0 %v4567
        %v4768 = vpop.f32.mrb[0].mxu0
        %v4769 = vadd.f32 %v4503, %v4768
        %v4770 = vpop.f32.mrb[0].mxu0
        %4771 = vmatprep.mubr.f32.mxu0 0.0
        %4772 = vmatmul.mubr.f32.gmra.mrb[0].mxu0 %v4570
        %v4773 = vpop.f32.mrb[0].mxu0
        %v4774 = vadd.f32 %v4503, %v4773
        %v4775 = vpop.f32.mrb[0].mxu0
        %4776 = vmatprep.mubr.f32.mxu0 0.0
        %4777 = vmatmul.mubr.f32.gmra.mrb[0].mxu0 %v4573
        %v4778 = vpop.f32.mrb[0].mxu0
        %v4779 = vadd.f32 %v4503, %v4778
        %v4780 = vpop.f32.mrb[0].mxu0
        %4781 = vmatprep.mubr.f32.mxu0 0.0
        %4782 = vmatmul.mubr.f32.gmra.mrb[0].mxu0 %v4576
        %v4783 = vpop.f32.mrb[0].mxu0
        %v4784 = vadd.f32 %v4503, %v4783
        %v4785 = vpop.f32.mrb[0].mxu0
        %4786 = vmatprep.mubr.f32.mxu0 0.0
        %4787 = vmatmul.mubr.f32.gmra.mrb[0].mxu0 %v4579
        %v4788 = vpop.f32.mrb[0].mxu0
        %v4789 = vadd.f32 %v4503, %v4788
        %v4790 = vpop.f32.mrb[0].mxu0
        %4791 = vmatprep.mubr.f32.mxu0 0.0
        %4792 = vmatmul.mubr.f32.gmra.mrb[0].mxu0 %v4582
        %v4793 = vpop.f32.mrb[0].mxu0
        %v4794 = vadd.f32 %v4503, %v4793
        %v4795 = vpop.f32.mrb[0].mxu0
        %4796 = vmatprep.mubr.f32.mxu0 0.0
        %4797 = vmatmul.mubr.f32.gmra.mrb[0].mxu0 %v4585
        %v4798 = vpop.f32.mrb[0].mxu0
        %v4799 = vadd.f32 %v4503, %v4798
        %v4800 = vpop.f32.mrb[0].mxu0
        %4801 = vmatprep.mubr.f32.mxu0 0.0
        %4802 = vmatmul.mubr.f32.gmra.mrb[0].mxu0 %v4588
        %v4803 = vpop.f32.mrb[0].mxu0
        %v4804 = vadd.f32 %v4503, %v4803
        %v4805 = vpop.f32.mrb[0].mxu0
        %4806 = vmatprep.mubr.f32.mxu0 0.0
        %4807 = vmatmul.mubr.f32.gmra.mrb[0].mxu0 %v4591
        %v4808 = vpop.f32.mrb[0].mxu0
        %v4809 = vadd.f32 %v4503, %v4808
        %v4810 = vpop.f32.mrb[0].mxu0
        %4811 = vmatprep.mubr.f32.mxu0 0.0
        %4812 = vmatmul.mubr.f32.gmra.mrb[0].mxu0 %v4594
        %v4813 = vpop.f32.mrb[0].mxu0
        %v4814 = vadd.f32 %v4503, %v4813
        %v4815 = vpop.f32.mrb[0].mxu0
        %4816 = vmatprep.mubr.f32.mxu0 0.0
        %4817 = vmatmul.mubr.f32.gmra.mrb[0].mxu0 %v4597
        %v4818 = vpop.f32.mrb[0].mxu0
        %v4819 = vadd.f32 %v4503, %v4818
        %v4820 = vpop.f32.mrb[0].mxu0
        %4821 = vmatprep.mubr.f32.mxu0 0.0
        %4822 = vmatmul.mubr.f32.gmra.mrb[0].mxu0 %v4600
        %v4823 = vpop.f32.mrb[0].mxu0
        %v4824 = vadd.f32 %v4503, %v4823
        %v4825 = vpop.f32.mrb[0].mxu0
        %4826 = vdwg.mxu0
        %v4827 = vmax.f32 %v4669, 0.0
        %v4828 = vmax.f32 %v4674, 0.0
        %v4829 = vmax.f32 %v4679, 0.0
        %v4830 = vmax.f32 %v4684, 0.0
        %v4831 = vmax.f32 %v4689, 0.0
        %v4832 = vmax.f32 %v4694, 0.0
        %v4833 = vmax.f32 %v4699, 0.0
        %v4834 = vmax.f32 %v4704, 0.0
        %v4835 = vmax.f32 %v4709, 0.0
        %v4836 = vmax.f32 %v4714, 0.0
        %v4837 = vmax.f32 %v4719, 0.0
        %v4838 = vmax.f32 %v4724, 0.0
        %v4839 = vmax.f32 %v4729, 0.0
        %v4840 = vmax.f32 %v4734, 0.0
        %v4841 = vmax.f32 %v4739, 0.0
        %v4842 = vmax.f32 %v4744, 0.0
        %v4843 = vmax.f32 %v4749, 0.0
        %v4844 = vmax.f32 %v4754, 0.0
        %v4845 = vmax.f32 %v4759, 0.0
        %v4846 = vmax.f32 %v4764, 0.0
        %v4847 = vmax.f32 %v4769, 0.0
        %v4848 = vmax.f32 %v4774, 0.0
        %v4849 = vmax.f32 %v4779, 0.0
        %v4850 = vmax.f32 %v4784, 0.0
        %v4851 = vmax.f32 %v4789, 0.0
        %v4852 = vmax.f32 %v4794, 0.0
        %v4853 = vmax.f32 %v4799, 0.0
        %v4854 = vmax.f32 %v4804, 0.0
        %v4855 = vmax.f32 %v4809, 0.0
        %v4856 = vmax.f32 %v4814, 0.0
        %v4857 = vmax.f32 %v4819, 0.0
        %v4858 = vmax.f32 %v4824, 0.0
        %4859 = vrot.lane.b32.xlu0 %v2666, 32
        %v4860 = vpop.permute.xlu0 %4859
        %4861 = vrot.lane.b32.xlu0 %v2667, 32
        %v4862 = vpop.permute.xlu0 %4861
        %4863 = vrot.lane.b32.xlu0 %v2668, 32
        %v4864 = vpop.permute.xlu0 %4863
        %4865 = vrot.lane.b32.xlu0 %v2669, 32
        %v4866 = vpop.permute.xlu0 %4865
        %4867 = vrot.lane.b32.xlu0 %v2670, 32
        %v4868 = vpop.permute.xlu0 %4867
        %4869 = vrot.lane.b32.xlu0 %v2671, 32
        %v4870 = vpop.permute.xlu0 %4869
        %4871 = vrot.lane.b32.xlu0 %v2672, 32
        %v4872 = vpop.permute.xlu0 %4871
        %4873 = vrot.lane.b32.xlu0 %v2673, 32
        %v4874 = vpop.permute.xlu0 %4873
        %4875 = vrot.lane.b32.xlu0 %v2674, 32
        %v4876 = vpop.permute.xlu0 %4875
        %4877 = vrot.lane.b32.xlu0 %v2675, 32
        %v4878 = vpop.permute.xlu0 %4877
        %4879 = vrot.lane.b32.xlu0 %v2676, 32
        %v4880 = vpop.permute.xlu0 %4879
        %4881 = vrot.lane.b32.xlu0 %v2677, 32
        %v4882 = vpop.permute.xlu0 %4881
        %4883 = vrot.lane.b32.xlu0 %v2678, 32
        %v4884 = vpop.permute.xlu0 %4883
        %4885 = vrot.lane.b32.xlu0 %v2679, 32
        %v4886 = vpop.permute.xlu0 %4885
        %4887 = vrot.lane.b32.xlu0 %v2680, 32
        %v4888 = vpop.permute.xlu0 %4887
        %4889 = vrot.lane.b32.xlu0 %v2681, 32
        %v4890 = vpop.permute.xlu0 %4889
        %4891 = vrot.lane.b32.xlu0 %v2682, 32
        %v4892 = vpop.permute.xlu0 %4891
        %4893 = vrot.lane.b32.xlu0 %v2683, 32
        %v4894 = vpop.permute.xlu0 %4893
        %4895 = vrot.lane.b32.xlu0 %v2684, 32
        %v4896 = vpop.permute.xlu0 %4895
        %4897 = vrot.lane.b32.xlu0 %v2685, 32
        %v4898 = vpop.permute.xlu0 %4897
        %4899 = vrot.lane.b32.xlu0 %v2686, 32
        %v4900 = vpop.permute.xlu0 %4899
        %4901 = vrot.lane.b32.xlu0 %v2687, 32
        %v4902 = vpop.permute.xlu0 %4901
        %4903 = vrot.lane.b32.xlu0 %v2688, 32
        %v4904 = vpop.permute.xlu0 %4903
        %4905 = vrot.lane.b32.xlu0 %v2689, 32
        %v4906 = vpop.permute.xlu0 %4905
        %4907 = vrot.lane.b32.xlu0 %v2690, 32
        %v4908 = vpop.permute.xlu0 %4907
        %4909 = vrot.lane.b32.xlu0 %v2691, 32
        %v4910 = vpop.permute.xlu0 %4909
        %4911 = vrot.lane.b32.xlu0 %v2692, 32
        %v4912 = vpop.permute.xlu0 %4911
        %4913 = vrot.lane.b32.xlu0 %v2693, 32
        %v4914 = vpop.permute.xlu0 %4913
        %4915 = vrot.lane.b32.xlu0 %v2694, 32
        %v4916 = vpop.permute.xlu0 %4915
        %4917 = vrot.lane.b32.xlu0 %v2695, 32
        %v4918 = vpop.permute.xlu0 %4917
        %4919 = vrot.lane.b32.xlu0 %v2696, 32
        %v4920 = vpop.permute.xlu0 %4919
        %4921 = vrot.lane.b32.xlu0 %v2697, 32
        %v4922 = vpop.permute.xlu0 %4921
        %4987 = vrot.lane.b32.xlu0 %v4827, 40
        %v4988 = vpop.permute.xlu0 %4987
        %4989 = vrot.lane.b32.xlu0 %v4828, 40
        %v4990 = vpop.permute.xlu0 %4989
        %4991 = vrot.lane.b32.xlu0 %v4829, 40
        %v4992 = vpop.permute.xlu0 %4991
        %4993 = vrot.lane.b32.xlu0 %v4830, 40
        %v4994 = vpop.permute.xlu0 %4993
        %4995 = vrot.lane.b32.xlu0 %v4831, 40
        %v4996 = vpop.permute.xlu0 %4995
        %4997 = vrot.lane.b32.xlu0 %v4832, 40
        %v4998 = vpop.permute.xlu0 %4997
        %4999 = vrot.lane.b32.xlu0 %v4833, 40
        %v5000 = vpop.permute.xlu0 %4999
        %5001 = vrot.lane.b32.xlu0 %v4834, 40
        %v5002 = vpop.permute.xlu0 %5001
        %5003 = vrot.lane.b32.xlu0 %v4835, 40
        %v5004 = vpop.permute.xlu0 %5003
        %5005 = vrot.lane.b32.xlu0 %v4836, 40
        %v5006 = vpop.permute.xlu0 %5005
        %5007 = vrot.lane.b32.xlu0 %v4837, 40
        %v5008 = vpop.permute.xlu0 %5007
        %5009 = vrot.lane.b32.xlu0 %v4838, 40
        %v5010 = vpop.permute.xlu0 %5009
        %5011 = vrot.lane.b32.xlu0 %v4839, 40
        %v5012 = vpop.permute.xlu0 %5011
        %5013 = vrot.lane.b32.xlu0 %v4840, 40
        %v5014 = vpop.permute.xlu0 %5013
        %5015 = vrot.lane.b32.xlu0 %v4841, 40
        %v5016 = vpop.permute.xlu0 %5015
        %5017 = vrot.lane.b32.xlu0 %v4842, 40
        %v5018 = vpop.permute.xlu0 %5017
        %5019 = vrot.lane.b32.xlu0 %v4843, 40
        %v5020 = vpop.permute.xlu0 %5019
        %5021 = vrot.lane.b32.xlu0 %v4844, 40
        %v5022 = vpop.permute.xlu0 %5021
        %5023 = vrot.lane.b32.xlu0 %v4845, 40
        %v5024 = vpop.permute.xlu0 %5023
        %5025 = vrot.lane.b32.xlu0 %v4846, 40
        %v5026 = vpop.permute.xlu0 %5025
        %5027 = vrot.lane.b32.xlu0 %v4847, 40
        %v5028 = vpop.permute.xlu0 %5027
        %5029 = vrot.lane.b32.xlu0 %v4848, 40
        %v5030 = vpop.permute.xlu0 %5029
        %5031 = vrot.lane.b32.xlu0 %v4849, 40
        %v5032 = vpop.permute.xlu0 %5031
        %5033 = vrot.lane.b32.xlu0 %v4850, 40
        %v5034 = vpop.permute.xlu0 %5033
        %5035 = vrot.lane.b32.xlu0 %v4851, 40
        %v5036 = vpop.permute.xlu0 %5035
        %5037 = vrot.lane.b32.xlu0 %v4852, 40
        %v5038 = vpop.permute.xlu0 %5037
        %5039 = vrot.lane.b32.xlu0 %v4853, 40
        %v5040 = vpop.permute.xlu0 %5039
        %5041 = vrot.lane.b32.xlu0 %v4854, 40
        %v5042 = vpop.permute.xlu0 %5041
        %5043 = vrot.lane.b32.xlu0 %v4855, 40
        %v5044 = vpop.permute.xlu0 %5043
        %5045 = vrot.lane.b32.xlu0 %v4856, 40
        %v5046 = vpop.permute.xlu0 %5045
        %5047 = vrot.lane.b32.xlu0 %v4857, 40
        %v5048 = vpop.permute.xlu0 %5047
        %5049 = vrot.lane.b32.xlu0 %v4858, 40
        %v5050 = vpop.permute.xlu0 %5049
        %v5083 = vsel %vm384, %v341, %v4860
        %v5084 = vsel %vm384, %v342, %v4862
        %v5085 = vsel %vm384, %v343, %v4864
        %v5086 = vsel %vm384, %v344, %v4866
        %v5087 = vsel %vm384, %v345, %v4868
        %v5088 = vsel %vm384, %v346, %v4870
        %v5089 = vsel %vm384, %v347, %v4872
        %v5090 = vsel %vm384, %v348, %v4874
        %v5091 = vsel %vm384, %v349, %v4876
        %v5092 = vsel %vm384, %v350, %v4878
        %v5093 = vsel %vm384, %v351, %v4880
        %v5094 = vsel %vm384, %v352, %v4882
        %v5095 = vsel %vm384, %v353, %v4884
        %v5096 = vsel %vm384, %v354, %v4886
        %v5097 = vsel %vm384, %v355, %v4888
        %v5098 = vsel %vm384, %v356, %v4890
        %v5099 = vsel %vm384, %v357, %v4892
        %v5100 = vsel %vm384, %v358, %v4894
        %v5101 = vsel %vm384, %v359, %v4896
        %v5102 = vsel %vm384, %v360, %v4898
        %v5103 = vsel %vm384, %v361, %v4900
        %v5104 = vsel %vm384, %v362, %v4902
        %v5105 = vsel %vm384, %v363, %v4904
        %v5106 = vsel %vm384, %v364, %v4906
        %v5107 = vsel %vm384, %v365, %v4908
        %v5108 = vsel %vm384, %v366, %v4910
        %v5109 = vsel %vm384, %v367, %v4912
        %v5110 = vsel %vm384, %v368, %v4914
        %v5111 = vsel %vm384, %v369, %v4916
        %v5112 = vsel %vm384, %v370, %v4918
        %v5113 = vsel %vm384, %v371, %v4920
        %v5114 = vsel %vm384, %v372, %v4922
        %v5115 = vsel %vm4358, %v5083, %v4988
        %v5116 = vsel %vm4358, %v5084, %v4990
        %v5117 = vsel %vm4358, %v5085, %v4992
        %v5118 = vsel %vm4358, %v5086, %v4994
        %v5119 = vsel %vm4358, %v5087, %v4996
        %v5120 = vsel %vm4358, %v5088, %v4998
        %v5121 = vsel %vm4358, %v5089, %v5000
        %v5122 = vsel %vm4358, %v5090, %v5002
        %v5123 = vsel %vm4358, %v5091, %v5004
        %v5124 = vsel %vm4358, %v5092, %v5006
        %v5125 = vsel %vm4358, %v5093, %v5008
        %v5126 = vsel %vm4358, %v5094, %v5010
        %v5127 = vsel %vm4358, %v5095, %v5012
        %v5128 = vsel %vm4358, %v5096, %v5014
        %v5129 = vsel %vm4358, %v5097, %v5016
        %v5130 = vsel %vm4358, %v5098, %v5018
        %v5131 = vsel %vm4358, %v5099, %v5020
        %v5132 = vsel %vm4358, %v5100, %v5022
        %v5133 = vsel %vm4358, %v5101, %v5024
        %v5134 = vsel %vm4358, %v5102, %v5026
        %v5135 = vsel %vm4358, %v5103, %v5028
        %v5136 = vsel %vm4358, %v5104, %v5030
        %v5137 = vsel %vm4358, %v5105, %v5032
        %v5138 = vsel %vm4358, %v5106, %v5034
        %v5139 = vsel %vm4358, %v5107, %v5036
        %v5140 = vsel %vm4358, %v5108, %v5038
        %v5141 = vsel %vm4358, %v5109, %v5040
        %v5142 = vsel %vm4358, %v5110, %v5042
        %v5143 = vsel %vm4358, %v5111, %v5044
        %v5144 = vsel %vm4358, %v5112, %v5046
        %v5145 = vsel %vm4358, %v5113, %v5048
        %v5146 = vsel %vm4358, %v5114, %v5050
        %5147 = vst.msk [vmem:[%s340] sm:$0xff] %vm4391, %v5115
        %5148 = vst.msk [vmem:[%s340 + $0x8] sm:$0xff] %vm4391, %v5116
        %5149 = vst.msk [vmem:[%s340 + $0x10] sm:$0xff] %vm4391, %v5117
        %5150 = vst.msk [vmem:[%s340 + $0x18] sm:$0xff] %vm4391, %v5118
        %5151 = vst.msk [vmem:[%s340 + $0x20] sm:$0xff] %vm4391, %v5119
        %5152 = vst.msk [vmem:[%s340 + $0x28] sm:$0xff] %vm4391, %v5120
        %5153 = vst.msk [vmem:[%s340 + $0x30] sm:$0xff] %vm4391, %v5121
        %5154 = vst.msk [vmem:[%s340 + $0x38] sm:$0xff] %vm4391, %v5122
        %5155 = vst.msk [vmem:[%s340 + $0x40] sm:$0xff] %vm4391, %v5123
        %5156 = vst.msk [vmem:[%s340 + $0x48] sm:$0xff] %vm4391, %v5124
        %5157 = vst.msk [vmem:[%s340 + $0x50] sm:$0xff] %vm4391, %v5125
        %5158 = vst.msk [vmem:[%s340 + $0x58] sm:$0xff] %vm4391, %v5126
        %5159 = vst.msk [vmem:[%s340 + $0x60] sm:$0xff] %vm4391, %v5127
        %5160 = vst.msk [vmem:[%s340 + $0x68] sm:$0xff] %vm4391, %v5128
        %5161 = vst.msk [vmem:[%s340 + $0x70] sm:$0xff] %vm4391, %v5129
        %5162 = vst.msk [vmem:[%s340 + $0x78] sm:$0xff] %vm4391, %v5130
        %5163 = vst.msk [vmem:[%s340 + $0x80] sm:$0xff] %vm4391, %v5131
        %5164 = vst.msk [vmem:[%s340 + $0x88] sm:$0xff] %vm4391, %v5132
        %5165 = vst.msk [vmem:[%s340 + $0x90] sm:$0xff] %vm4391, %v5133
        %5166 = vst.msk [vmem:[%s340 + $0x98] sm:$0xff] %vm4391, %v5134
        %5167 = vst.msk [vmem:[%s340 + $0xa0] sm:$0xff] %vm4391, %v5135
        %5168 = vst.msk [vmem:[%s340 + $0xa8] sm:$0xff] %vm4391, %v5136
        %5169 = vst.msk [vmem:[%s340 + $0xb0] sm:$0xff] %vm4391, %v5137
        %5170 = vst.msk [vmem:[%s340 + $0xb8] sm:$0xff] %vm4391, %v5138
        %5171 = vst.msk [vmem:[%s340 + $0xc0] sm:$0xff] %vm4391, %v5139
        %5172 = vst.msk [vmem:[%s340 + $0xc8] sm:$0xff] %vm4391, %v5140
        %5173 = vst.msk [vmem:[%s340 + $0xd0] sm:$0xff] %vm4391, %v5141
        %5174 = vst.msk [vmem:[%s340 + $0xd8] sm:$0xff] %vm4391, %v5142
        %5175 = vst.msk [vmem:[%s340 + $0xe0] sm:$0xff] %vm4391, %v5143
        %5176 = vst.msk [vmem:[%s340 + $0xe8] sm:$0xff] %vm4391, %v5144
        %5177 = vst.msk [vmem:[%s340 + $0xf0] sm:$0xff] %vm4391, %v5145
        %5178 = vst.msk [vmem:[%s340 + $0xf8] sm:$0xff] %vm4391, %v5146
        %s5179 = sand.u32 %s186, 1
        %s5180 = scalar_lea.sflag [#allocation6], %s5179
        %s5181 = sand.u32 %s186, 1
        %s5182 = smul.addr %s5181, 256
        %s5183 = scalar_lea.vmem [#allocation12], %s5182
        // Predicated region
        $region65: #{dense_layer_forward.1} parent=47 // pred_check
          %p5184 = pneg %p196
        $region66: #{dense_layer_forward.1} parent=47 // pred_check_branch
          %5186 = sbr.rel (%p5184) target = $region68
        $region67: #{dense_layer_forward.1} parent=47 // pred_region
          %s5188 = ssub.s32 4096, 4096
          %5189 = vsyncadd %s5180, %s5188
          %s5190 = smul.addr %s26, 32
          %s5191 = smul.addr %s5190, 128
          %s5192 = scalar_lea.hbm %s7, %s5191
          %s5193 = sshll.u32 %s5183, 4
          %s5194 = int_to_ptr.vmem [resolvable:$true] %s5193
          %5199 = dma.vmem_to_hbm [thread:$0]  %s5194, 4096, %s5192, %s5180, 128, 128, 8
        $region68: #{dense_layer_forward.1} parent=47 // pred_fallthru
          _
      $region48: #{dense_layer_forward.1} parent=5 // pred_fallthru
        _
      %p5200 = scmp.le.s32.totalorder 2, %s21
      // Predicated region
      $region69: #{dense_layer_forward.1} parent=5 // pred_check
        %p5201 = pneg %p5200
      $region70: #{dense_layer_forward.1} parent=5 // pred_check_branch
        %5203 = sbr.rel (%p5201) target = $region72
      $region71: #{dense_layer_forward.1} parent=5 // pred_region
        %s5204 = ssub.s32 %s21, 2
        // Predicated region
        $region73: #{dense_layer_forward.1} parent=71 // pred_check
          %p5205 = pneg %p202
        $region74: #{dense_layer_forward.1} parent=71 // pred_check_branch
          %5207 = sbr.rel (%p5205) target = $region76
        $region75: #{dense_layer_forward.1} parent=71 // pred_region
          %s5208 = sand.u32 %s187, 1
          %s5209 = scalar_lea.sflag [#allocation6], %s5208
          %s5210 = sand.u32 %s187, 1
          %s5211 = smul.addr %s5210, 256
          %s5212 = scalar_lea.vmem [#allocation12], %s5211
          %5213 = dma.done %s5209, 4096
        $region76: #{dense_layer_forward.1} parent=71 // pred_fallthru
          _
      $region72: #{dense_layer_forward.1} parent=5 // pred_fallthru
        _
    $region6: #{dense_layer_forward.1} parent=1 // loop_footer
      %s25 = sadd.s32 1, %s21
    $region7: #{dense_layer_forward.1} parent=1 // loop_footer_branch
      %20 = sbr.rel target = $region3
    $region8: #{dense_layer_forward.1} parent=1 // loop_exit
      _
    %5214 = vsyncpa [#allocation5], 1
    %s5215 = scalar_lea.sflag [#allocation5], 1
    %5216 = vsyncpa %s5215, 1
    %5217 = vsyncpa [#allocation8], 1
    %5218 = vsyncpa [#allocation11], 1
    %5219 = vsyncpa [#allocation6], 1
    %s5220 = scalar_lea.sflag [#allocation6], 1
    %5221 = vsyncpa %s5220, 1

</llo_original>
